<compile_context>
chip_gen: v7x
topology: tpu7x:2x2x1
jax: 0.10.0
libtpu: 0.0.40
codegen_flags: <defaults>
</compile_context>

<pallas_src>
import functools

import jax
import jax.numpy as jnp
from jax import lax
from jax.experimental import pallas as pl
from jax.experimental.pallas import tpu as pltpu

BN_EPS = 1e-5                       # nn.BatchNorm2d default eps
VMEM_LIMIT = 32 * 1024 * 1024       # safe on v5e / v6e / v7x


def _pick_th(H, Wp, row_target):
    """Largest divisor of H whose conv tile (TH * Wp rows) fits the row target."""
    best = 1
    for th in range(1, H + 1):
        if H % th == 0 and th * Wp <= max(row_target, Wp):
            best = th
    return best


def _conv_stats_kernel(x_ref, w_ref, b_ref, m_ref, conv_ref, stats_ref,
                       *, tap_offsets, tile_rows):
    """One (image, h-block) tile: conv output + partial BN sum / sum-of-squares."""
    cp = conv_ref.shape[-1]
    # bf16 in HBM/VMEM; unpack once to f32 vregs, slice the 9 shifted windows.
    x = x_ref[...].astype(jnp.float32)                       # (EXT_ROWS, Cin)
    acc = jnp.zeros((tile_rows, cp), jnp.float32)
    for t, off in enumerate(tap_offsets):
        tap = x[off:off + tile_rows, :].astype(jnp.bfloat16)  # lossless re-pack
        acc = acc + jnp.dot(tap, w_ref[t],
                            preferred_element_type=jnp.float32)
    acc = acc + b_ref[...]                                   # conv bias
    conv_ref[...] = acc

    # Streaming BN reduction: mask kills rows whose window is centred on a
    # padding column (they are never real output pixels).
    m = m_ref[...]                                           # (tile_rows, 1)
    stats_ref[0:1, :] = jnp.sum(acc * m, axis=0, keepdims=True)
    stats_ref[1:2, :] = jnp.sum(acc * acc * m, axis=0, keepdims=True)


def _bn_relu_kernel(y_ref, scale_ref, shift_ref, o_ref):
    # Fused BN constants: one FMA + max per element, lane-dense output.
    o_ref[...] = jnp.maximum(y_ref[...] * scale_ref[...] + shift_ref[...], 0.0)


def unit_forward(x_nchw, weight, bias, gamma, beta, *, row_tile_target=1024):
    """x_nchw: (N, Cin, H, W); weight: (Cout, Cin, 3, 3) (PyTorch layouts)."""
    N, Cin, H, W = x_nchw.shape
    Cout = weight.shape[0]
    Hp, Wp = H + 2, W + 2
    Cp = 128 * ((Cout + 127) // 128)          # lane-dense output channels

    TH = _pick_th(H, Wp, row_tile_target)     # output image rows per tile
    HB = H // TH                              # h-blocks per image
    TPW = TH * Wp                             # conv rows computed per tile
    EXT = (TH + 2) * Wp + 2                   # activation rows needed per tile

    # ---- layout glue (cheap; ~1.3x activation traffic, no 9x im2col) ----
    x = jnp.transpose(x_nchw, (0, 2, 3, 1))                    # NHWC
    xp = jnp.pad(x, ((0, 0), (1, 1), (1, 1), (0, 0)))          # (N, Hp, Wp, Cin)
    blocks = jnp.stack([xp[:, hb * TH: hb * TH + TH + 2]
                        for hb in range(HB)], axis=1)          # halo h-blocks
    blocks = blocks.reshape(N, HB, (TH + 2) * Wp, Cin)
    blocks = jnp.pad(blocks, ((0, 0), (0, 0), (1, 1), (0, 0)))  # 1-row guards
    blocks = blocks.astype(jnp.bfloat16)                       # bf16 stream

    # (Cout, Cin, 3, 3) -> (3, 3, Cin, Cout) -> (9, Cin, Cp); tap-major
    wmat = jnp.transpose(weight, (2, 3, 1, 0)).reshape(9, Cin, Cout)
    wmat = jnp.pad(wmat, ((0, 0), (0, 0), (0, Cp - Cout))).astype(jnp.bfloat16)
    b2 = jnp.pad(bias.astype(jnp.float32), (0, Cp - Cout)).reshape(1, Cp)

    # Row r of a tile is a real output pixel iff its padded column r % Wp is
    # in [1, W]; same mask for every tile (TH divides H exactly).
    col = jnp.arange(TPW, dtype=jnp.int32) % Wp
    mask = ((col >= 1) & (col <= W)).astype(jnp.float32).reshape(TPW, 1)

    # tap (kh, kw) of output row r reads flattened-block row r + kh*Wp + kw
    tap_offsets = tuple(kh * Wp + kw for kh in range(3) for kw in range(3))

    kernel1 = functools.partial(_conv_stats_kernel,
                                tap_offsets=tap_offsets, tile_rows=TPW)
    conv_full, stats = pl.pallas_call(
        kernel1,
        out_shape=(jax.ShapeDtypeStruct((N, HB, TPW, Cp), jnp.float32),
                   jax.ShapeDtypeStruct((N, HB, 2, Cp), jnp.float32)),
        grid=(N, HB),
        in_specs=[
            pl.BlockSpec((None, None, EXT, Cin), lambda n, hb: (n, hb, 0, 0)),
            pl.BlockSpec((9, Cin, Cp), lambda n, hb: (0, 0, 0)),
            pl.BlockSpec((1, Cp), lambda n, hb: (0, 0)),
            pl.BlockSpec((TPW, 1), lambda n, hb: (0, 0)),
        ],
        out_specs=(
            pl.BlockSpec((None, None, TPW, Cp), lambda n, hb: (n, hb, 0, 0)),
            pl.BlockSpec((None, None, 2, Cp), lambda n, hb: (n, hb, 0, 0)),
        ),
        compiler_params=pltpu.CompilerParams(
            dimension_semantics=("parallel", "parallel"),
            vmem_limit_bytes=VMEM_LIMIT),
    )(blocks, wmat, b2, mask)

    # ---- tiny global BN reduction (training-mode batch statistics) ----
    cnt = jnp.float32(N * H * W)
    total = jnp.sum(stats[:, :, 0, :], axis=(0, 1))            # (Cp,)
    total_sq = jnp.sum(stats[:, :, 1, :], axis=(0, 1))         # (Cp,)
    mean = total / cnt
    var = jnp.maximum(total_sq / cnt - mean * mean, 0.0)       # biased variance
    inv_std = lax.rsqrt(var + BN_EPS)
    gamma_p = jnp.pad(gamma.astype(jnp.float32), (0, Cp - Cout))
    beta_p = jnp.pad(beta.astype(jnp.float32), (0, Cp - Cout))
    scale = (gamma_p * inv_std).reshape(1, Cp)
    shift = (beta_p - mean * gamma_p * inv_std).reshape(1, Cp)

    y_full = pl.pallas_call(
        _bn_relu_kernel,
        out_shape=jax.ShapeDtypeStruct((N, HB, TPW, Cp), jnp.float32),
        grid=(N, HB),
        in_specs=[
            pl.BlockSpec((None, None, TPW, Cp), lambda n, hb: (n, hb, 0, 0)),
            pl.BlockSpec((1, Cp), lambda n, hb: (0, 0)),
            pl.BlockSpec((1, Cp), lambda n, hb: (0, 0)),
        ],
        out_specs=pl.BlockSpec((None, None, TPW, Cp), lambda n, hb: (n, hb, 0, 0)),
        compiler_params=pltpu.CompilerParams(
            dimension_semantics=("parallel", "parallel"),
            vmem_limit_bytes=VMEM_LIMIT),
    )(conv_full, scale, shift)

    # ---- glue back to NCHW: drop padding columns / padded channels ----
    y = y_full.reshape(N, HB, TH, Wp, Cp)[:, :, :, 1:W + 1, :Cout]
    y = y.reshape(N, H, W, Cout)
    return jnp.transpose(y, (0, 3, 1, 2))


def reference_forward(x_nchw, weight, bias, gamma, beta):
    """Pure-JAX reference (NCHW conv + training-mode BN + ReLU).

    Inputs/weights are rounded to bf16 first to match the kernel's
    mixed-precision (bf16 operands, f32 accumulation) convolution.
    """
    xf = x_nchw.astype(jnp.bfloat16).astype(jnp.float32)
    wf = weight.astype(jnp.bfloat16).astype(jnp.float32)
    y = lax.conv_general_dilated(
        xf, wf, window_strides=(1, 1), padding=((1, 1), (1, 1)),
        dimension_numbers=("NCHW", "OIHW", "NCHW"))
    y = y + bias.reshape(1, -1, 1, 1)
    mean = jnp.mean(y, axis=(0, 2, 3), keepdims=True)
    var = jnp.mean((y - mean) ** 2, axis=(0, 2, 3), keepdims=True)
    y = (y - mean) * lax.rsqrt(var + BN_EPS)
    y = y * gamma.reshape(1, -1, 1, 1) + beta.reshape(1, -1, 1, 1)
    return jnp.maximum(y, 0.0)


if __name__ == "__main__":
    N, Cin, Cout, H, W = 2, 4, 8, 16, 16

    key = jax.random.PRNGKey(0)
    kx, kw, kb = jax.random.split(key, 3)

    # Deterministic parameter init (PyTorch-Conv2d-style uniform bounds).
    fan_in = Cin * 3 * 3
    bound = 1.0 / (fan_in ** 0.5)
    weight = jax.random.uniform(kw, (Cout, Cin, 3, 3), jnp.float32, -bound, bound)
    bias = jax.random.uniform(kb, (Cout,), jnp.float32, -bound, bound)
    gamma = jnp.ones((Cout,), jnp.float32)   # BatchNorm2d weight init
    beta = jnp.zeros((Cout,), jnp.float32)   # BatchNorm2d bias init

    x = jax.random.normal(kx, (N, Cin, H, W), jnp.float32)

    ref = jax.block_until_ready(reference_forward(x, weight, bias, gamma, beta))

    # Run with the default tiling (one h-block per image) and with a forced
    # smaller row tile (exercises halo replication + cross-tile BN reduction).
    for target in (1024, 160):
        out = unit_forward(x, weight, bias, gamma, beta, row_tile_target=target)
        out = jax.block_until_ready(out)
        if not jnp.allclose(out, ref, rtol=1e-3, atol=1e-3):
            raise AssertionError(
                f"Pallas kernel output mismatch vs JAX reference "
                f"(row_tile_target={target})")

    print("KERNEL_OK")
</pallas_src>

<mosaic_0001>
module attributes {stable_mosaic.version = 11 : i64} {
  func.func @_conv_stats_kernel(%arg0: i32, %arg1: i32, %arg2: memref<1x1x326x4xbf16, #tpu.memory_space<vmem>>, %arg3: memref<9x4x128xbf16, #tpu.memory_space<vmem>>, %arg4: memref<1x128xf32, #tpu.memory_space<vmem>>, %arg5: memref<288x1xf32, #tpu.memory_space<vmem>>, %arg6: memref<1x1x288x128xf32, #tpu.memory_space<vmem>>, %arg7: memref<1x1x2x128xf32, #tpu.memory_space<vmem>>) attributes {dimension_semantics = [#tpu.dimension_semantics<parallel>, #tpu.dimension_semantics<parallel>], iteration_bounds = array<i64: 2, 1>, scalar_prefetch = 0 : i64, scratch_operands = 0 : i64, tpu.core_type = #tpu.core_type<tc>, window_params = [{transform_indices = @transform_0, window_bounds = array<i64: 1, 1, 326, 4>}, {pipeline_mode = #tpu.pipeline_mode<synchronous>, transform_indices = @transform_1, window_bounds = array<i64: 9, 4, 128>}, {pipeline_mode = #tpu.pipeline_mode<synchronous>, transform_indices = @transform_2, window_bounds = array<i64: 1, 128>}, {pipeline_mode = #tpu.pipeline_mode<synchronous>, transform_indices = @transform_3, window_bounds = array<i64: 288, 1>}, {transform_indices = @transform_4, window_bounds = array<i64: 1, 1, 288, 128>}, {transform_indices = @transform_5, window_bounds = array<i64: 1, 1, 2, 128>}]} {
    %c0 = arith.constant 0 : index
    %c0_0 = arith.constant 0 : index
    %c0_1 = arith.constant 0 : index
    %c0_2 = arith.constant 0 : index
    %0 = vector.load %arg2[%c0, %c0_0, %c0_1, %c0_2] : memref<1x1x326x4xbf16, #tpu.memory_space<vmem>>, vector<1x1x326x4xbf16>
    %1 = vector.shape_cast %0 : vector<1x1x326x4xbf16> to vector<326x4xbf16>
    %2 = arith.extf %1 : vector<326x4xbf16> to vector<326x4xf32>
    %cst = arith.constant 0.000000e+00 : f32
    %3 = vector.broadcast %cst : f32 to vector<288x128xf32>
    %4 = vector.extract_strided_slice %2 {offsets = [0, 0], sizes = [288, 4], strides = [1, 1]} : vector<326x4xf32> to vector<288x4xf32>
    %5 = arith.truncf %4 : vector<288x4xf32> to vector<288x4xbf16>
    %c0_3 = arith.constant 0 : index
    %c0_4 = arith.constant 0 : index
    %c0_5 = arith.constant 0 : index
    %6 = vector.load %arg3[%c0_3, %c0_4, %c0_5] : memref<9x4x128xbf16, #tpu.memory_space<vmem>>, vector<1x4x128xbf16>
    %7 = vector.shape_cast %6 : vector<1x4x128xbf16> to vector<4x128xbf16>
    %cst_6 = arith.constant dense<0.000000e+00> : vector<288x128xf32>
    %8 = tpu.matmul %5, %7, %cst_6 {dimension_numbers = #tpu.dot_dimension_numbers<[1], [0], [0], [1], [0, 0, 1, 1], [], []>} : vector<288x4xbf16>, vector<4x128xbf16>, vector<288x128xf32> -> vector<288x128xf32>
    %9 = arith.addf %3, %8 : vector<288x128xf32>
    %10 = vector.extract_strided_slice %2 {offsets = [1, 0], sizes = [288, 4], strides = [1, 1]} : vector<326x4xf32> to vector<288x4xf32>
    %11 = arith.truncf %10 : vector<288x4xf32> to vector<288x4xbf16>
    %c1 = arith.constant 1 : index
    %c0_7 = arith.constant 0 : index
    %c0_8 = arith.constant 0 : index
    %12 = vector.load %arg3[%c1, %c0_7, %c0_8] : memref<9x4x128xbf16, #tpu.memory_space<vmem>>, vector<1x4x128xbf16>
    %13 = vector.shape_cast %12 : vector<1x4x128xbf16> to vector<4x128xbf16>
    %cst_9 = arith.constant dense<0.000000e+00> : vector<288x128xf32>
    %14 = tpu.matmul %11, %13, %cst_9 {dimension_numbers = #tpu.dot_dimension_numbers<[1], [0], [0], [1], [0, 0, 1, 1], [], []>} : vector<288x4xbf16>, vector<4x128xbf16>, vector<288x128xf32> -> vector<288x128xf32>
    %15 = arith.addf %9, %14 : vector<288x128xf32>
    %16 = vector.extract_strided_slice %2 {offsets = [2, 0], sizes = [288, 4], strides = [1, 1]} : vector<326x4xf32> to vector<288x4xf32>
    %17 = arith.truncf %16 : vector<288x4xf32> to vector<288x4xbf16>
    %c2 = arith.constant 2 : index
    %c0_10 = arith.constant 0 : index
    %c0_11 = arith.constant 0 : index
    %18 = vector.load %arg3[%c2, %c0_10, %c0_11] : memref<9x4x128xbf16, #tpu.memory_space<vmem>>, vector<1x4x128xbf16>
    %19 = vector.shape_cast %18 : vector<1x4x128xbf16> to vector<4x128xbf16>
    %cst_12 = arith.constant dense<0.000000e+00> : vector<288x128xf32>
    %20 = tpu.matmul %17, %19, %cst_12 {dimension_numbers = #tpu.dot_dimension_numbers<[1], [0], [0], [1], [0, 0, 1, 1], [], []>} : vector<288x4xbf16>, vector<4x128xbf16>, vector<288x128xf32> -> vector<288x128xf32>
    %21 = arith.addf %15, %20 : vector<288x128xf32>
    %22 = vector.extract_strided_slice %2 {offsets = [18, 0], sizes = [288, 4], strides = [1, 1]} : vector<326x4xf32> to vector<288x4xf32>
    %23 = arith.truncf %22 : vector<288x4xf32> to vector<288x4xbf16>
    %c3 = arith.constant 3 : index
    %c0_13 = arith.constant 0 : index
    %c0_14 = arith.constant 0 : index
    %24 = vector.load %arg3[%c3, %c0_13, %c0_14] : memref<9x4x128xbf16, #tpu.memory_space<vmem>>, vector<1x4x128xbf16>
    %25 = vector.shape_cast %24 : vector<1x4x128xbf16> to vector<4x128xbf16>
    %cst_15 = arith.constant dense<0.000000e+00> : vector<288x128xf32>
    %26 = tpu.matmul %23, %25, %cst_15 {dimension_numbers = #tpu.dot_dimension_numbers<[1], [0], [0], [1], [0, 0, 1, 1], [], []>} : vector<288x4xbf16>, vector<4x128xbf16>, vector<288x128xf32> -> vector<288x128xf32>
    %27 = arith.addf %21, %26 : vector<288x128xf32>
    %28 = vector.extract_strided_slice %2 {offsets = [19, 0], sizes = [288, 4], strides = [1, 1]} : vector<326x4xf32> to vector<288x4xf32>
    %29 = arith.truncf %28 : vector<288x4xf32> to vector<288x4xbf16>
    %c4 = arith.constant 4 : index
    %c0_16 = arith.constant 0 : index
    %c0_17 = arith.constant 0 : index
    %30 = vector.load %arg3[%c4, %c0_16, %c0_17] : memref<9x4x128xbf16, #tpu.memory_space<vmem>>, vector<1x4x128xbf16>
    %31 = vector.shape_cast %30 : vector<1x4x128xbf16> to vector<4x128xbf16>
    %cst_18 = arith.constant dense<0.000000e+00> : vector<288x128xf32>
    %32 = tpu.matmul %29, %31, %cst_18 {dimension_numbers = #tpu.dot_dimension_numbers<[1], [0], [0], [1], [0, 0, 1, 1], [], []>} : vector<288x4xbf16>, vector<4x128xbf16>, vector<288x128xf32> -> vector<288x128xf32>
    %33 = arith.addf %27, %32 : vector<288x128xf32>
    %34 = vector.extract_strided_slice %2 {offsets = [20, 0], sizes = [288, 4], strides = [1, 1]} : vector<326x4xf32> to vector<288x4xf32>
    %35 = arith.truncf %34 : vector<288x4xf32> to vector<288x4xbf16>
    %c5 = arith.constant 5 : index
    %c0_19 = arith.constant 0 : index
    %c0_20 = arith.constant 0 : index
    %36 = vector.load %arg3[%c5, %c0_19, %c0_20] : memref<9x4x128xbf16, #tpu.memory_space<vmem>>, vector<1x4x128xbf16>
    %37 = vector.shape_cast %36 : vector<1x4x128xbf16> to vector<4x128xbf16>
    %cst_21 = arith.constant dense<0.000000e+00> : vector<288x128xf32>
    %38 = tpu.matmul %35, %37, %cst_21 {dimension_numbers = #tpu.dot_dimension_numbers<[1], [0], [0], [1], [0, 0, 1, 1], [], []>} : vector<288x4xbf16>, vector<4x128xbf16>, vector<288x128xf32> -> vector<288x128xf32>
    %39 = arith.addf %33, %38 : vector<288x128xf32>
    %40 = vector.extract_strided_slice %2 {offsets = [36, 0], sizes = [288, 4], strides = [1, 1]} : vector<326x4xf32> to vector<288x4xf32>
    %41 = arith.truncf %40 : vector<288x4xf32> to vector<288x4xbf16>
    %c6 = arith.constant 6 : index
    %c0_22 = arith.constant 0 : index
    %c0_23 = arith.constant 0 : index
    %42 = vector.load %arg3[%c6, %c0_22, %c0_23] : memref<9x4x128xbf16, #tpu.memory_space<vmem>>, vector<1x4x128xbf16>
    %43 = vector.shape_cast %42 : vector<1x4x128xbf16> to vector<4x128xbf16>
    %cst_24 = arith.constant dense<0.000000e+00> : vector<288x128xf32>
    %44 = tpu.matmul %41, %43, %cst_24 {dimension_numbers = #tpu.dot_dimension_numbers<[1], [0], [0], [1], [0, 0, 1, 1], [], []>} : vector<288x4xbf16>, vector<4x128xbf16>, vector<288x128xf32> -> vector<288x128xf32>
    %45 = arith.addf %39, %44 : vector<288x128xf32>
    %46 = vector.extract_strided_slice %2 {offsets = [37, 0], sizes = [288, 4], strides = [1, 1]} : vector<326x4xf32> to vector<288x4xf32>
    %47 = arith.truncf %46 : vector<288x4xf32> to vector<288x4xbf16>
    %c7 = arith.constant 7 : index
    %c0_25 = arith.constant 0 : index
    %c0_26 = arith.constant 0 : index
    %48 = vector.load %arg3[%c7, %c0_25, %c0_26] : memref<9x4x128xbf16, #tpu.memory_space<vmem>>, vector<1x4x128xbf16>
    %49 = vector.shape_cast %48 : vector<1x4x128xbf16> to vector<4x128xbf16>
    %cst_27 = arith.constant dense<0.000000e+00> : vector<288x128xf32>
    %50 = tpu.matmul %47, %49, %cst_27 {dimension_numbers = #tpu.dot_dimension_numbers<[1], [0], [0], [1], [0, 0, 1, 1], [], []>} : vector<288x4xbf16>, vector<4x128xbf16>, vector<288x128xf32> -> vector<288x128xf32>
    %51 = arith.addf %45, %50 : vector<288x128xf32>
    %52 = vector.extract_strided_slice %2 {offsets = [38, 0], sizes = [288, 4], strides = [1, 1]} : vector<326x4xf32> to vector<288x4xf32>
    %53 = arith.truncf %52 : vector<288x4xf32> to vector<288x4xbf16>
    %c8 = arith.constant 8 : index
    %c0_28 = arith.constant 0 : index
    %c0_29 = arith.constant 0 : index
    %54 = vector.load %arg3[%c8, %c0_28, %c0_29] : memref<9x4x128xbf16, #tpu.memory_space<vmem>>, vector<1x4x128xbf16>
    %55 = vector.shape_cast %54 : vector<1x4x128xbf16> to vector<4x128xbf16>
    %cst_30 = arith.constant dense<0.000000e+00> : vector<288x128xf32>
    %56 = tpu.matmul %53, %55, %cst_30 {dimension_numbers = #tpu.dot_dimension_numbers<[1], [0], [0], [1], [0, 0, 1, 1], [], []>} : vector<288x4xbf16>, vector<4x128xbf16>, vector<288x128xf32> -> vector<288x128xf32>
    %57 = arith.addf %51, %56 : vector<288x128xf32>
    %c0_31 = arith.constant 0 : index
    %c0_32 = arith.constant 0 : index
    %58 = vector.load %arg4[%c0_31, %c0_32] : memref<1x128xf32, #tpu.memory_space<vmem>>, vector<1x128xf32>
    %59 = vector.broadcast %58 : vector<1x128xf32> to vector<288x128xf32>
    %60 = arith.addf %57, %59 : vector<288x128xf32>
    %c0_33 = arith.constant 0 : index
    %c0_34 = arith.constant 0 : index
    %c0_35 = arith.constant 0 : index
    %c0_36 = arith.constant 0 : index
    %61 = vector.load %arg6[%c0_33, %c0_34, %c0_35, %c0_36] : memref<1x1x288x128xf32, #tpu.memory_space<vmem>>, vector<1x1x288x128xf32>
    %62 = vector.shape_cast %61 : vector<1x1x288x128xf32> to vector<288x128xf32>
    %63 = vector.shape_cast %60 : vector<288x128xf32> to vector<1x1x288x128xf32>
    tpu.vector_store %arg6[%c0_33, %c0_34, %c0_35, %c0_36], %63 {strides = array<i32>} : memref<1x1x288x128xf32, #tpu.memory_space<vmem>>, vector<1x1x288x128xf32>,
    %c0_37 = arith.constant 0 : index
    %c0_38 = arith.constant 0 : index
    %64 = vector.load %arg5[%c0_37, %c0_38] : memref<288x1xf32, #tpu.memory_space<vmem>>, vector<288x1xf32>
    %65 = vector.broadcast %64 : vector<288x1xf32> to vector<288x128xf32>
    %66 = arith.mulf %60, %65 : vector<288x128xf32>
    %cst_39 = arith.constant dense<0.000000e+00> : vector<128xf32>
    %67 = vector.multi_reduction <add>, %66, %cst_39 [0] : vector<288x128xf32> to vector<128xf32>
    %68 = vector.shape_cast %67 : vector<128xf32> to vector<1x128xf32>
    %c0_40 = arith.constant 0 : index
    %c0_41 = arith.constant 0 : index
    %c0_42 = arith.constant 0 : index
    %c0_43 = arith.constant 0 : index
    %69 = vector.load %arg7[%c0_40, %c0_41, %c0_42, %c0_43] : memref<1x1x2x128xf32, #tpu.memory_space<vmem>>, vector<1x1x1x128xf32>
    %70 = vector.shape_cast %69 : vector<1x1x1x128xf32> to vector<1x128xf32>
    %71 = vector.shape_cast %68 : vector<1x128xf32> to vector<1x1x1x128xf32>
    tpu.vector_store %arg7[%c0_40, %c0_41, %c0_42, %c0_43], %71 {strides = array<i32>} : memref<1x1x2x128xf32, #tpu.memory_space<vmem>>, vector<1x1x1x128xf32>,
    %72 = arith.mulf %60, %60 : vector<288x128xf32>
    %73 = vector.broadcast %64 : vector<288x1xf32> to vector<288x128xf32>
    %74 = arith.mulf %72, %73 : vector<288x128xf32>
    %cst_44 = arith.constant dense<0.000000e+00> : vector<128xf32>
    %75 = vector.multi_reduction <add>, %74, %cst_44 [0] : vector<288x128xf32> to vector<128xf32>
    %76 = vector.shape_cast %75 : vector<128xf32> to vector<1x128xf32>
    %c0_45 = arith.constant 0 : index
    %c0_46 = arith.constant 0 : index
    %c1_47 = arith.constant 1 : index
    %c0_48 = arith.constant 0 : index
    %77 = vector.load %arg7[%c0_45, %c0_46, %c1_47, %c0_48] : memref<1x1x2x128xf32, #tpu.memory_space<vmem>>, vector<1x1x1x128xf32>
    %78 = vector.shape_cast %77 : vector<1x1x1x128xf32> to vector<1x128xf32>
    %79 = vector.shape_cast %76 : vector<1x128xf32> to vector<1x1x1x128xf32>
    tpu.vector_store %arg7[%c0_45, %c0_46, %c1_47, %c0_48], %79 {strides = array<i32>} : memref<1x1x2x128xf32, #tpu.memory_space<vmem>>, vector<1x1x1x128xf32>,
    return
  }
  func.func @transform_0(%arg0: i32, %arg1: i32) -> (i32, i32, i32, i32) {
    %c0_i32 = arith.constant 0 : i32
    %c0_i32_0 = arith.constant 0 : i32
    %c0_i32_1 = arith.constant 0 : i32
    return %arg0, %arg1, %c0_i32, %c0_i32_0 : i32, i32, i32, i32
  }
  func.func @transform_1(%arg0: i32, %arg1: i32) -> (i32, i32, i32) {
    %c0_i32 = arith.constant 0 : i32
    %c0_i32_0 = arith.constant 0 : i32
    %c0_i32_1 = arith.constant 0 : i32
    %c0_i32_2 = arith.constant 0 : i32
    return %c0_i32, %c0_i32_0, %c0_i32_1 : i32, i32, i32
  }
  func.func @transform_2(%arg0: i32, %arg1: i32) -> (i32, i32) {
    %c0_i32 = arith.constant 0 : i32
    %c0_i32_0 = arith.constant 0 : i32
    %c0_i32_1 = arith.constant 0 : i32
    return %c0_i32, %c0_i32_0 : i32, i32
  }
  func.func @transform_3(%arg0: i32, %arg1: i32) -> (i32, i32) {
    %c0_i32 = arith.constant 0 : i32
    %c0_i32_0 = arith.constant 0 : i32
    %c0_i32_1 = arith.constant 0 : i32
    return %c0_i32, %c0_i32_0 : i32, i32
  }
  func.func @transform_4(%arg0: i32, %arg1: i32) -> (i32, i32, i32, i32) {
    %c0_i32 = arith.constant 0 : i32
    %c0_i32_0 = arith.constant 0 : i32
    %c0_i32_1 = arith.constant 0 : i32
    return %arg0, %arg1, %c0_i32, %c0_i32_0 : i32, i32, i32, i32
  }
  func.func @transform_5(%arg0: i32, %arg1: i32) -> (i32, i32, i32, i32) {
    %c0_i32 = arith.constant 0 : i32
    %c0_i32_0 = arith.constant 0 : i32
    %c0_i32_1 = arith.constant 0 : i32
    return %arg0, %arg1, %c0_i32, %c0_i32_0 : i32, i32, i32, i32
  }
}

</mosaic_0001>

<llo_original>
// kernel: tpu_custom_call.1
$region0: #{tpu_custom_call.1}
  #allocation0 [shape = 'u32[]', space=smem, size = 0x4, offset = 0x4, fixed_abs, tag = 'smem constant byte address 0x4 - core index']
  #allocation1 [shape = 'u32[144,128]{1,0:T(1,128)}', space=vmem, size = 0x12000, scoped, tag = 'internal scratch']
  %s0 = inlined_call_operand.vmem [shape: bf16[2,1,326,4], index: 0, kind: input, shape index: {}]
  %s1 = inlined_call_operand.vmem [shape: bf16[9,4,128], index: 1, kind: input, shape index: {}]
  %s2 = inlined_call_operand.vmem [shape: f32[1,128], index: 2, kind: input, shape index: {}]
  %s3 = inlined_call_operand.vmem [shape: f32[288,1], index: 3, kind: input, shape index: {}]
  %s4 = inlined_call_operand.hbm [shape: f32[2,1,288,128], index: 4, kind: output, shape index: {0}]
  %s5 = inlined_call_operand.hbm [shape: f32[2,1,2,128], index: 5, kind: output, shape index: {1}]
  %6 = xla_tuple %s4, %s5
  %s7 = sld [smem:[#allocation0]]
  $region57: #{tpu_custom_call.1} parent=0
    _
  %s9 = ssub.s32 1, %s7
  %s10 = scalar_select 0, %s9, %s7
  $region1: #{tpu_custom_call.1} parent=0
    #allocation2 [shape = 'u8[294912]{0}', space=vmem, size = 0x48000, scoped, tag = 'output window, operand 0']
    #allocation3 [shape = 's32[2]{0}', space=sflag, size = 0x8, scoped, tag = 'scoped memory for tpu_custom_call.1']
    #allocation4 [shape = 'u8[2048]{0}', space=vmem, size = 0x800, scoped, tag = 'output window, operand 1']
    #allocation5 [shape = 's32[2]{0}', space=sflag, size = 0x8, scoped, tag = 'scoped memory for tpu_custom_call.1']
    %11 = vsyncpa [#allocation3], 0
    %s12 = scalar_lea.sflag [#allocation3], 1
    %13 = vsyncpa %s12, 0
    %14 = vsyncpa [#allocation5], 0
    %s15 = scalar_lea.sflag [#allocation5], 1
    %16 = vsyncpa %s15, 0
    loop: start=0, step=1, limit=4
    $region2: #{tpu_custom_call.1} parent=1 // loop_pre_header
      _
    $region3: #{tpu_custom_call.1} parent=1 // loop_header
      %s18 = sphi 0, %s22
      %p19 = scmp.ge.s32.totalorder %s18, 4
      %s25 = sphi 0, %s37
      %s26 = sphi 0, %s33
      %s27 = sphi 0, %s25
      %s28 = sphi 0, %s26
      %s29 = sphi 0, %s27
      %s30 = sphi 0, %s28
      %s42 = sphi 0, %s44
      %s45 = sphi 0, %s42
      %s46 = sphi 0, %s45
      %s62 = sphi 0, %s46
      %s66 = sphi 0, %s66
      %s68 = sphi 0, %s66
      %s69 = sphi 0, %s68
      %s83 = sphi 0, %s69
      %s87 = sphi 0, %s87
      %s89 = sphi 0, %s87
      %s90 = sphi 0, %s89
      %s104 = sphi 0, %s90
      %s108 = sphi 0, %s108
      %s110 = sphi 0, %s108
      %s111 = sphi 0, %s110
      %s125 = sphi 0, %s111
      %s133 = sphi 0, %s135
      %s136 = sphi 0, %s133
      %s137 = sphi 0, %s136
      %s153 = sphi 0, %s137
      %s161 = sphi 0, %s163
      %s164 = sphi 0, %s161
      %s165 = sphi 0, %s164
      %s181 = sphi 0, %s165
    $region4: #{tpu_custom_call.1} parent=1 // loop_header_branch
      %21 = sbr.rel (%p19) target = $region8
    $region5: #{tpu_custom_call.1} parent=1 // loop_body
      %s23 = ssub.s32 %s18, 1
      %s24 = ssub.s32 %s18, 2
      %s31 = sadd.s32 1, %s26
      %p32 = scmp.ge.s32.totalorder %s31, 1
      %s33 = scalar_select %p32, 0, %s31
      %s34 = sadd.s32 1, %s25
      %s35 = scalar_select %p32, %s34, %s25
      %p36 = scmp.ge.s32.totalorder %s35, 2
      %s37 = scalar_select %p36, 0, %s35
      %s38 = ssub.s32 %s25, %s37
      %s39 = ssub.s32 %s26, %s33
      %s40 = sor.u32 %s38, %s39
      %p41 = scmp.eq.s32.totalorder %s40, 0
      %s43 = sadd.s32 %s42, 1
      %s44 = scalar_select %p41, %s42, %s43
      %p47 = pneg %p41
      %p48 = scmp.eq.s32.totalorder %s18, 1
      %p49 = por %p47, %p48
      %p50 = scmp.ne.s32.totalorder %s42, %s45
      %p51 = scmp.eq.s32.totalorder %s18, 0
      %p52 = por %p50, %p51
      %p53 = scmp.ne.s32.totalorder %s42, %s45
      %p54 = scmp.eq.s32.totalorder %s23, 1
      %p55 = por %p53, %p54
      %p56 = scmp.ne.s32.totalorder %s45, %s46
      %p57 = scmp.eq.s32.totalorder %s23, 0
      %p58 = por %p56, %p57
      %p59 = scmp.ne.s32.totalorder %s45, %s46
      %p60 = scmp.eq.s32.totalorder %s24, 1
      %p61 = por %p59, %p60
      %p63 = scmp.ne.s32.totalorder %s46, %s62
      %p64 = scmp.eq.s32.totalorder %s24, 0
      %p65 = por %p63, %p64
      %s67 = sadd.s32 %s66, 1
      %p70 = scmp.eq.s32.totalorder %s18, 1
      %p71 = scmp.ne.s32.totalorder %s66, %s68
      %p72 = scmp.eq.s32.totalorder %s18, 0
      %p73 = por %p71, %p72
      %p74 = scmp.ne.s32.totalorder %s66, %s68
      %p75 = scmp.eq.s32.totalorder %s23, 1
      %p76 = por %p74, %p75
      %p77 = scmp.ne.s32.totalorder %s68, %s69
      %p78 = scmp.eq.s32.totalorder %s23, 0
      %p79 = por %p77, %p78
      %p80 = scmp.ne.s32.totalorder %s68, %s69
      %p81 = scmp.eq.s32.totalorder %s24, 1
      %p82 = por %p80, %p81
      %p84 = scmp.ne.s32.totalorder %s69, %s83
      %p85 = scmp.eq.s32.totalorder %s24, 0
      %p86 = por %p84, %p85
      %s88 = sadd.s32 %s87, 1
      %p91 = scmp.eq.s32.totalorder %s18, 1
      %p92 = scmp.ne.s32.totalorder %s87, %s89
      %p93 = scmp.eq.s32.totalorder %s18, 0
      %p94 = por %p92, %p93
      %p95 = scmp.ne.s32.totalorder %s87, %s89
      %p96 = scmp.eq.s32.totalorder %s23, 1
      %p97 = por %p95, %p96
      %p98 = scmp.ne.s32.totalorder %s89, %s90
      %p99 = scmp.eq.s32.totalorder %s23, 0
      %p100 = por %p98, %p99
      %p101 = scmp.ne.s32.totalorder %s89, %s90
      %p102 = scmp.eq.s32.totalorder %s24, 1
      %p103 = por %p101, %p102
      %p105 = scmp.ne.s32.totalorder %s90, %s104
      %p106 = scmp.eq.s32.totalorder %s24, 0
      %p107 = por %p105, %p106
      %s109 = sadd.s32 %s108, 1
      %p112 = scmp.eq.s32.totalorder %s18, 1
      %p113 = scmp.ne.s32.totalorder %s108, %s110
      %p114 = scmp.eq.s32.totalorder %s18, 0
      %p115 = por %p113, %p114
      %p116 = scmp.ne.s32.totalorder %s108, %s110
      %p117 = scmp.eq.s32.totalorder %s23, 1
      %p118 = por %p116, %p117
      %p119 = scmp.ne.s32.totalorder %s110, %s111
      %p120 = scmp.eq.s32.totalorder %s23, 0
      %p121 = por %p119, %p120
      %p122 = scmp.ne.s32.totalorder %s110, %s111
      %p123 = scmp.eq.s32.totalorder %s24, 1
      %p124 = por %p122, %p123
      %p126 = scmp.ne.s32.totalorder %s111, %s125
      %p127 = scmp.eq.s32.totalorder %s24, 0
      %p128 = por %p126, %p127
      %s129 = ssub.s32 %s25, %s37
      %s130 = ssub.s32 %s26, %s33
      %s131 = sor.u32 %s129, %s130
      %p132 = scmp.eq.s32.totalorder %s131, 0
      %s134 = sadd.s32 %s133, 1
      %s135 = scalar_select %p132, %s133, %s134
      %p138 = pneg %p132
      %p139 = scmp.eq.s32.totalorder %s18, 1
      %p140 = por %p138, %p139
      %p141 = scmp.ne.s32.totalorder %s133, %s136
      %p142 = scmp.eq.s32.totalorder %s18, 0
      %p143 = por %p141, %p142
      %p144 = scmp.ne.s32.totalorder %s133, %s136
      %p145 = scmp.eq.s32.totalorder %s23, 1
      %p146 = por %p144, %p145
      %p147 = scmp.ne.s32.totalorder %s136, %s137
      %p148 = scmp.eq.s32.totalorder %s23, 0
      %p149 = por %p147, %p148
      %p150 = scmp.ne.s32.totalorder %s136, %s137
      %p151 = scmp.eq.s32.totalorder %s24, 1
      %p152 = por %p150, %p151
      %p154 = scmp.ne.s32.totalorder %s137, %s153
      %p155 = scmp.eq.s32.totalorder %s24, 0
      %p156 = por %p154, %p155
      %s157 = ssub.s32 %s25, %s37
      %s158 = ssub.s32 %s26, %s33
      %s159 = sor.u32 %s157, %s158
      %p160 = scmp.eq.s32.totalorder %s159, 0
      %s162 = sadd.s32 %s161, 1
      %s163 = scalar_select %p160, %s161, %s162
      %p166 = pneg %p160
      %p167 = scmp.eq.s32.totalorder %s18, 1
      %p168 = por %p166, %p167
      %p169 = scmp.ne.s32.totalorder %s161, %s164
      %p170 = scmp.eq.s32.totalorder %s18, 0
      %p171 = por %p169, %p170
      %p172 = scmp.ne.s32.totalorder %s161, %s164
      %p173 = scmp.eq.s32.totalorder %s23, 1
      %p174 = por %p172, %p173
      %p175 = scmp.ne.s32.totalorder %s164, %s165
      %p176 = scmp.eq.s32.totalorder %s23, 0
      %p177 = por %p175, %p176
      %p178 = scmp.ne.s32.totalorder %s164, %s165
      %p179 = scmp.eq.s32.totalorder %s24, 1
      %p180 = por %p178, %p179
      %p182 = scmp.ne.s32.totalorder %s165, %s181
      %p183 = scmp.eq.s32.totalorder %s24, 0
      %p184 = por %p182, %p183
      %p185 = scmp.le.s32.totalorder 1, %s18
      %p186 = scmp.lt.s32.totalorder %s18, 3
      %p187 = pnand %p185, %p186
      %p188 = pneg %p187
      // Predicated region
      $region9: #{tpu_custom_call.1} parent=5 // pred_check
        _
      $region10: #{tpu_custom_call.1} parent=5 // pred_check_branch
        %190 = sbr.rel (%p187) target = $region12
      $region11: #{tpu_custom_call.1} parent=5 // pred_region
        %s191 = ssub.s32 %s18, 1
        // Predicated region
        $region13: #{tpu_custom_call.1} parent=11 // pred_check
          %p192 = pneg %p79
        $region14: #{tpu_custom_call.1} parent=11 // pred_check_branch
          %194 = sbr.rel (%p192) target = $region16
        $region15: #{tpu_custom_call.1} parent=11 // pred_region
          _
        $region16: #{tpu_custom_call.1} parent=11 // pred_fallthru
          _
        // Predicated region
        $region17: #{tpu_custom_call.1} parent=11 // pred_check
          %p195 = pneg %p100
        $region18: #{tpu_custom_call.1} parent=11 // pred_check_branch
          %197 = sbr.rel (%p195) target = $region20
        $region19: #{tpu_custom_call.1} parent=11 // pred_region
          _
        $region20: #{tpu_custom_call.1} parent=11 // pred_fallthru
          _
        // Predicated region
        $region21: #{tpu_custom_call.1} parent=11 // pred_check
          %p198 = pneg %p121
        $region22: #{tpu_custom_call.1} parent=11 // pred_check_branch
          %200 = sbr.rel (%p198) target = $region24
        $region23: #{tpu_custom_call.1} parent=11 // pred_region
          _
        $region24: #{tpu_custom_call.1} parent=11 // pred_fallthru
          _
      $region12: #{tpu_custom_call.1} parent=5 // pred_fallthru
        _
      %p201 = scmp.lt.s32.totalorder %s18, 2
      // Predicated region
      $region25: #{tpu_custom_call.1} parent=5 // pred_check
        %p202 = pneg %p201
      $region26: #{tpu_custom_call.1} parent=5 // pred_check_branch
        %204 = sbr.rel (%p202) target = $region28
      $region27: #{tpu_custom_call.1} parent=5 // pred_region
        // Predicated region
        $region29: #{tpu_custom_call.1} parent=27 // pred_check
          %p205 = pneg %p52
        $region30: #{tpu_custom_call.1} parent=27 // pred_check_branch
          %207 = sbr.rel (%p205) target = $region32
        $region31: #{tpu_custom_call.1} parent=27 // pred_region
          %p208 = scmp.lt.s32.totalorder %s25, 1
          %s209 = scalar_select %p208, %s25, 1
          %p210 = scmp.lt.s32.totalorder %s26, 0
          %s211 = scalar_select %p210, %s26, 0
          %s212 = smul.addr %s211, 41
          %s213 = smul.addr %s209, 41
          %s214 = sadd.s32 %s212, %s213
          %s215 = smul.addr %s214, 4
          %s216 = scalar_lea.vmem %s0, %s215
        $region32: #{tpu_custom_call.1} parent=27 // pred_fallthru
          _
      $region28: #{tpu_custom_call.1} parent=5 // pred_fallthru
        _
      %p217 = scmp.le.s32.totalorder 1, %s18
      %p218 = scmp.lt.s32.totalorder %s18, 3
      %p219 = pnand %p217, %p218
      %p220 = pneg %p219
      // Predicated region
      $region33: #{tpu_custom_call.1} parent=5 // pred_check
        _
      $region34: #{tpu_custom_call.1} parent=5 // pred_check_branch
        %222 = sbr.rel (%p219) target = $region36
      $region35: #{tpu_custom_call.1} parent=5 // pred_region
        %s223 = ssub.s32 %s18, 1
        %p224 = scmp.lt.s32.totalorder %s27, 1
        %s225 = scalar_select %p224, %s27, 1
        %p226 = scmp.lt.s32.totalorder %s28, 0
        %s227 = scalar_select %p226, %s28, 0
        %s228 = smul.addr %s227, 41
        %s229 = smul.addr %s225, 41
        %s230 = sadd.s32 %s228, %s229
        %s231 = smul.addr %s230, 4
        %s232 = scalar_lea.vmem %s0, %s231
        %p233 = pneg %p58
        %p234 = pneg %p55
        %p235 = pneg %p79
        %p236 = pneg %p76
        %p237 = pneg %p100
        %p238 = pneg %p97
        %p239 = pneg %p121
        %p240 = pneg %p118
        %p241 = pneg %p149
        %p242 = pneg %p146
        %s243 = sand.u32 %s136, 1
        %s244 = scalar_lea.sflag [#allocation3], %s243
        %s245 = sand.u32 %s136, 1
        %s246 = smul.addr %s245, 288
        %s247 = scalar_lea.vmem [#allocation2], %s246
        %p248 = pneg %p177
        %p249 = pneg %p174
        %s250 = sand.u32 %s164, 1
        %s251 = scalar_lea.sflag [#allocation5], %s250
        %s252 = sand.u32 %s164, 1
        %s253 = smul.addr %s252, 2
        %s254 = scalar_lea.vmem [#allocation4], %s253
        %p255 = scmp.lt.s32.totalorder %s27, 1
        %s256 = scalar_select %p255, %s27, 1
        %p257 = scmp.lt.s32.totalorder %s28, 0
        %s258 = scalar_select %p257, %s28, 0
        %s259 = smul.addr %s258, 41
        %s260 = smul.addr %s256, 41
        %s261 = sadd.s32 %s259, %s260
        %s262 = smul.addr %s261, 4
        %s263 = scalar_lea.vmem %s0, %s262
        %v265 = vld [vmem:[%s263] sm:$0xf]
        %v266 = vld [vmem:[%s263 + $0x4] sm:$0xf]
        %v267 = vld [vmem:[%s263 + $0x8] sm:$0xf]
        %v268 = vld [vmem:[%s263 + $0xc] sm:$0xf]
        %v269 = vld [vmem:[%s263 + $0x10] sm:$0xf]
        %v270 = vld [vmem:[%s263 + $0x14] sm:$0xf]
        %v271 = vld [vmem:[%s263 + $0x18] sm:$0xf]
        %v272 = vld [vmem:[%s263 + $0x1c] sm:$0xf]
        %v273 = vld [vmem:[%s263 + $0x20] sm:$0xf]
        %v274 = vld [vmem:[%s263 + $0x24] sm:$0xf]
        %v275 = vld [vmem:[%s263 + $0x28] sm:$0xf]
        %v276 = vld [vmem:[%s263 + $0x2c] sm:$0xf]
        %v277 = vld [vmem:[%s263 + $0x30] sm:$0xf]
        %v278 = vld [vmem:[%s263 + $0x34] sm:$0xf]
        %v279 = vld [vmem:[%s263 + $0x38] sm:$0xf]
        %v280 = vld [vmem:[%s263 + $0x3c] sm:$0xf]
        %v281 = vld [vmem:[%s263 + $0x40] sm:$0xf]
        %v282 = vld [vmem:[%s263 + $0x44] sm:$0xf]
        %v283 = vld [vmem:[%s263 + $0x48] sm:$0xf]
        %v284 = vld [vmem:[%s263 + $0x4c] sm:$0xf]
        %v285 = vld [vmem:[%s263 + $0x50] sm:$0xf]
        %v286 = vld [vmem:[%s263 + $0x54] sm:$0xf]
        %v287 = vld [vmem:[%s263 + $0x58] sm:$0xf]
        %v288 = vld [vmem:[%s263 + $0x5c] sm:$0xf]
        %v289 = vld [vmem:[%s263 + $0x60] sm:$0xf]
        %v290 = vld [vmem:[%s263 + $0x64] sm:$0xf]
        %v291 = vld [vmem:[%s263 + $0x68] sm:$0xf]
        %v292 = vld [vmem:[%s263 + $0x6c] sm:$0xf]
        %v293 = vld [vmem:[%s263 + $0x70] sm:$0xf]
        %v294 = vld [vmem:[%s263 + $0x74] sm:$0xf]
        %v295 = vld [vmem:[%s263 + $0x78] sm:$0xf]
        %v296 = vld [vmem:[%s263 + $0x7c] sm:$0xf]
        %v297 = vld [vmem:[%s263 + $0x80] sm:$0xf]
        %v298 = vld [vmem:[%s263 + $0x84] sm:$0xf]
        %v299 = vld [vmem:[%s263 + $0x88] sm:$0xf]
        %v300 = vld [vmem:[%s263 + $0x8c] sm:$0xf]
        %v301 = vld [vmem:[%s263 + $0x90] sm:$0xf]
        %v302 = vld [vmem:[%s263 + $0x94] sm:$0xf]
        %v303 = vld [vmem:[%s263 + $0x98] sm:$0xf]
        %v304 = vld [vmem:[%s263 + $0x9c] sm:$0xf]
        %v305 = vld [vmem:[%s263 + $0xa0] sm:$0x7]
        %v306 = vunpack.c.l.bf16 %v265
        %v307 = vunpack.c.l.bf16 %v266
        %v308 = vunpack.c.l.bf16 %v267
        %v309 = vunpack.c.l.bf16 %v268
        %v310 = vunpack.c.l.bf16 %v269
        %v311 = vunpack.c.l.bf16 %v270
        %v312 = vunpack.c.l.bf16 %v271
        %v313 = vunpack.c.l.bf16 %v272
        %v314 = vunpack.c.l.bf16 %v273
        %v315 = vunpack.c.l.bf16 %v274
        %v316 = vunpack.c.l.bf16 %v275
        %v317 = vunpack.c.l.bf16 %v276
        %v318 = vunpack.c.l.bf16 %v277
        %v319 = vunpack.c.l.bf16 %v278
        %v320 = vunpack.c.l.bf16 %v279
        %v321 = vunpack.c.l.bf16 %v280
        %v322 = vunpack.c.l.bf16 %v281
        %v323 = vunpack.c.l.bf16 %v282
        %v324 = vunpack.c.l.bf16 %v283
        %v325 = vunpack.c.l.bf16 %v284
        %v326 = vunpack.c.l.bf16 %v285
        %v327 = vunpack.c.l.bf16 %v286
        %v328 = vunpack.c.l.bf16 %v287
        %v329 = vunpack.c.l.bf16 %v288
        %v330 = vunpack.c.l.bf16 %v289
        %v331 = vunpack.c.l.bf16 %v290
        %v332 = vunpack.c.l.bf16 %v291
        %v333 = vunpack.c.l.bf16 %v292
        %v334 = vunpack.c.l.bf16 %v293
        %v335 = vunpack.c.l.bf16 %v294
        %v336 = vunpack.c.l.bf16 %v295
        %v337 = vunpack.c.l.bf16 %v296
        %v338 = vunpack.c.l.bf16 %v297
        %v339 = vunpack.c.l.bf16 %v298
        %v340 = vunpack.c.l.bf16 %v299
        %v341 = vunpack.c.l.bf16 %v300
        %v342 = vunpack.c.l.bf16 %v301
        %v343 = vunpack.c.l.bf16 %v302
        %v344 = vunpack.c.l.bf16 %v303
        %v345 = vunpack.c.l.bf16 %v304
        %v346 = vunpack.c.l.bf16 %v305
        %v347 = vpack.c.bf16 %v307, %v306
        %v348 = vpack.c.bf16 %v309, %v308
        %v349 = vpack.c.bf16 %v311, %v310
        %v350 = vpack.c.bf16 %v313, %v312
        %v351 = vpack.c.bf16 %v315, %v314
        %v352 = vpack.c.bf16 %v317, %v316
        %v353 = vpack.c.bf16 %v319, %v318
        %v354 = vpack.c.bf16 %v321, %v320
        %v355 = vpack.c.bf16 %v323, %v322
        %v356 = vpack.c.bf16 %v325, %v324
        %v357 = vpack.c.bf16 %v327, %v326
        %v358 = vpack.c.bf16 %v329, %v328
        %v359 = vpack.c.bf16 %v331, %v330
        %v360 = vpack.c.bf16 %v333, %v332
        %v361 = vpack.c.bf16 %v335, %v334
        %v362 = vpack.c.bf16 %v337, %v336
        %v363 = vpack.c.bf16 %v339, %v338
        %v364 = vpack.c.bf16 %v341, %v340
        %v365 = vld [vmem:[%s1] sm:$0x3]
        %v366 = vpack.c.bf16 %v342, %v342
        %s367 = scalar_lea.vmem %s1, 2
        %v368 = vld [vmem:[%s367] sm:$0x3]
        %vm369 = vsmask.f32 7424
        %v371 = vshrl.u32 %v347, 16
        %v373 = vshll.u32 %v347, 16
        %v375 = vrot.slane %v373, 1
        %v376 = vor.u32 %v371, %v375
        %v378 = vshll.u32 %v348, 16
        %v380 = vrot.slane %v378, 1
        %v381 = vsel %vm369, %v376, %v380
        %v382 = vshrl.u32 %v348, 16
        %v384 = vor.u32 %v382, %v380
        %v386 = vshll.u32 %v349, 16
        %v388 = vrot.slane %v386, 1
        %v389 = vsel %vm369, %v384, %v388
        %v390 = vshrl.u32 %v349, 16
        %v392 = vor.u32 %v390, %v388
        %v394 = vshll.u32 %v350, 16
        %v396 = vrot.slane %v394, 1
        %v397 = vsel %vm369, %v392, %v396
        %v398 = vshrl.u32 %v350, 16
        %v400 = vor.u32 %v398, %v396
        %v402 = vshll.u32 %v351, 16
        %v404 = vrot.slane %v402, 1
        %v405 = vsel %vm369, %v400, %v404
        %v406 = vshrl.u32 %v351, 16
        %v408 = vor.u32 %v406, %v404
        %v410 = vshll.u32 %v352, 16
        %v412 = vrot.slane %v410, 1
        %v413 = vsel %vm369, %v408, %v412
        %v414 = vshrl.u32 %v352, 16
        %v416 = vor.u32 %v414, %v412
        %v418 = vshll.u32 %v353, 16
        %v420 = vrot.slane %v418, 1
        %v421 = vsel %vm369, %v416, %v420
        %v422 = vshrl.u32 %v353, 16
        %v424 = vor.u32 %v422, %v420
        %v426 = vshll.u32 %v354, 16
        %v428 = vrot.slane %v426, 1
        %v429 = vsel %vm369, %v424, %v428
        %v430 = vshrl.u32 %v354, 16
        %v432 = vor.u32 %v430, %v428
        %v434 = vshll.u32 %v355, 16
        %v436 = vrot.slane %v434, 1
        %v437 = vsel %vm369, %v432, %v436
        %v438 = vshrl.u32 %v355, 16
        %v440 = vor.u32 %v438, %v436
        %v442 = vshll.u32 %v356, 16
        %v444 = vrot.slane %v442, 1
        %v445 = vsel %vm369, %v440, %v444
        %v446 = vshrl.u32 %v356, 16
        %v448 = vor.u32 %v446, %v444
        %v450 = vshll.u32 %v357, 16
        %v452 = vrot.slane %v450, 1
        %v453 = vsel %vm369, %v448, %v452
        %v454 = vshrl.u32 %v357, 16
        %v456 = vor.u32 %v454, %v452
        %v458 = vshll.u32 %v358, 16
        %v460 = vrot.slane %v458, 1
        %v461 = vsel %vm369, %v456, %v460
        %v462 = vshrl.u32 %v358, 16
        %v464 = vor.u32 %v462, %v460
        %v466 = vshll.u32 %v359, 16
        %v468 = vrot.slane %v466, 1
        %v469 = vsel %vm369, %v464, %v468
        %v470 = vshrl.u32 %v359, 16
        %v472 = vor.u32 %v470, %v468
        %v474 = vshll.u32 %v360, 16
        %v476 = vrot.slane %v474, 1
        %v477 = vsel %vm369, %v472, %v476
        %v478 = vshrl.u32 %v360, 16
        %v480 = vor.u32 %v478, %v476
        %v482 = vshll.u32 %v361, 16
        %v484 = vrot.slane %v482, 1
        %v485 = vsel %vm369, %v480, %v484
        %v486 = vshrl.u32 %v361, 16
        %v488 = vor.u32 %v486, %v484
        %v490 = vshll.u32 %v362, 16
        %v492 = vrot.slane %v490, 1
        %v493 = vsel %vm369, %v488, %v492
        %v494 = vshrl.u32 %v362, 16
        %v496 = vor.u32 %v494, %v492
        %v498 = vshll.u32 %v363, 16
        %v500 = vrot.slane %v498, 1
        %v501 = vsel %vm369, %v496, %v500
        %v502 = vshrl.u32 %v363, 16
        %v504 = vor.u32 %v502, %v500
        %v506 = vshll.u32 %v364, 16
        %v508 = vrot.slane %v506, 1
        %v509 = vsel %vm369, %v504, %v508
        %v510 = vshrl.u32 %v364, 16
        %v512 = vor.u32 %v510, %v508
        %v514 = vshll.u32 %v366, 16
        %v516 = vrot.slane %v514, 1
        %v517 = vsel %vm369, %v512, %v516
        %vm518 = vcmask 31744
        %v520 = vsel %vm518, %v381, 0
        %v523 = vsel %vm518, %v389, 0
        %v526 = vsel %vm518, %v397, 0
        %v529 = vsel %vm518, %v405, 0
        %v532 = vsel %vm518, %v413, 0
        %v535 = vsel %vm518, %v421, 0
        %v538 = vsel %vm518, %v429, 0
        %v541 = vsel %vm518, %v437, 0
        %v544 = vsel %vm518, %v445, 0
        %v547 = vsel %vm518, %v453, 0
        %v550 = vsel %vm518, %v461, 0
        %v553 = vsel %vm518, %v469, 0
        %v556 = vsel %vm518, %v477, 0
        %v559 = vsel %vm518, %v485, 0
        %v562 = vsel %vm518, %v493, 0
        %v565 = vsel %vm518, %v501, 0
        %v568 = vsel %vm518, %v509, 0
        %v571 = vsel %vm518, %v517, 0
        %vm573 = vcmask 1041408
        %v575 = vsel %vm573, %v368, 0
        %577 = vmatprep.subr.bf16.mxu0 0
        %578 = vmatpush1.bf16.msra.mxu0 %v575
        %579 = vmatprep.subr.bf16.mxu0 0
        %580 = vmatpush1.bf16.msra.mxu0 0
        %581 = vmatprep.subr.bf16.mxu0 0
        %582 = vmatpush1.bf16.msra.mxu0 0
        %583 = vmatprep.subr.bf16.mxu0 0
        %584 = vmatpush1.bf16.msra.mxu0 0
        %585 = vmatprep.subr.bf16.mxu0 0
        %586 = vmatpush1.bf16.msra.mxu0 0
        %587 = vmatprep.subr.bf16.mxu0 0
        %588 = vmatpush1.bf16.msra.mxu0 0
        %589 = vmatprep.subr.bf16.mxu0 0
        %590 = vmatpush1.bf16.msra.mxu0 0
        %591 = vmatprep.subr.bf16.mxu0 0
        %592 = vmatpush1.bf16.msra.mxu0 0
        %593 = vmatprep.subr.bf16.mxu0 0
        %594 = vmatpush1.bf16.msra.mxu0 0
        %595 = vmatprep.subr.bf16.mxu0 0
        %596 = vmatpush1.bf16.msra.mxu0 0
        %597 = vmatprep.subr.bf16.mxu0 0
        %598 = vmatpush1.bf16.msra.mxu0 0
        %599 = vmatprep.subr.bf16.mxu0 0
        %600 = vmatpush1.bf16.msra.mxu0 0
        %601 = vmatprep.subr.bf16.mxu0 0
        %602 = vmatpush1.bf16.msra.mxu0 0
        %603 = vmatprep.subr.bf16.mxu0 0
        %604 = vmatpush1.bf16.msra.mxu0 0
        %605 = vmatprep.subr.bf16.mxu0 0
        %606 = vmatpush1.bf16.msra.mxu0 0
        %607 = vmatprep.subr.bf16.mxu0 0
        %608 = vmatpush1.bf16.msra.mxu0 0
        %609 = vmatprep.mubr.bf16.mxu0 0
        %610 = vmatmul.mubr.bf16.gmra.mrb[0].mxu0 %v520
        %v611 = vpop.f32.mrb[0].mxu0
        %v612 = vadd.f32 0.0, %v611
        %v613 = vpop.f32.mrb[0].mxu0
        %v614 = vpop.f32.mrb[0].mxu0
        %v615 = vadd.f32 0.0, %v614
        %v616 = vpop.f32.mrb[0].mxu0
        %617 = vmatprep.mubr.bf16.mxu0 0
        %618 = vmatmul.mubr.bf16.gmra.mrb[0].mxu0 %v523
        %v619 = vpop.f32.mrb[0].mxu0
        %v620 = vadd.f32 0.0, %v619
        %v621 = vpop.f32.mrb[0].mxu0
        %v622 = vpop.f32.mrb[0].mxu0
        %v623 = vadd.f32 0.0, %v622
        %v624 = vpop.f32.mrb[0].mxu0
        %625 = vmatprep.mubr.bf16.mxu0 0
        %626 = vmatmul.mubr.bf16.gmra.mrb[0].mxu0 %v526
        %v627 = vpop.f32.mrb[0].mxu0
        %v628 = vadd.f32 0.0, %v627
        %v629 = vpop.f32.mrb[0].mxu0
        %v630 = vpop.f32.mrb[0].mxu0
        %v631 = vadd.f32 0.0, %v630
        %v632 = vpop.f32.mrb[0].mxu0
        %633 = vmatprep.mubr.bf16.mxu0 0
        %634 = vmatmul.mubr.bf16.gmra.mrb[0].mxu0 %v529
        %v635 = vpop.f32.mrb[0].mxu0
        %v636 = vadd.f32 0.0, %v635
        %v637 = vpop.f32.mrb[0].mxu0
        %v638 = vpop.f32.mrb[0].mxu0
        %v639 = vadd.f32 0.0, %v638
        %v640 = vpop.f32.mrb[0].mxu0
        %641 = vmatprep.mubr.bf16.mxu0 0
        %642 = vmatmul.mubr.bf16.gmra.mrb[0].mxu0 %v532
        %v643 = vpop.f32.mrb[0].mxu0
        %v644 = vadd.f32 0.0, %v643
        %v645 = vpop.f32.mrb[0].mxu0
        %v646 = vpop.f32.mrb[0].mxu0
        %v647 = vadd.f32 0.0, %v646
        %v648 = vpop.f32.mrb[0].mxu0
        %649 = vmatprep.mubr.bf16.mxu0 0
        %650 = vmatmul.mubr.bf16.gmra.mrb[0].mxu0 %v535
        %v651 = vpop.f32.mrb[0].mxu0
        %v652 = vadd.f32 0.0, %v651
        %v653 = vpop.f32.mrb[0].mxu0
        %v654 = vpop.f32.mrb[0].mxu0
        %v655 = vadd.f32 0.0, %v654
        %v656 = vpop.f32.mrb[0].mxu0
        %657 = vmatprep.mubr.bf16.mxu0 0
        %658 = vmatmul.mubr.bf16.gmra.mrb[0].mxu0 %v538
        %v659 = vpop.f32.mrb[0].mxu0
        %v660 = vadd.f32 0.0, %v659
        %v661 = vpop.f32.mrb[0].mxu0
        %v662 = vpop.f32.mrb[0].mxu0
        %v663 = vadd.f32 0.0, %v662
        %v664 = vpop.f32.mrb[0].mxu0
        %665 = vmatprep.mubr.bf16.mxu0 0
        %666 = vmatmul.mubr.bf16.gmra.mrb[0].mxu0 %v541
        %v667 = vpop.f32.mrb[0].mxu0
        %v668 = vadd.f32 0.0, %v667
        %v669 = vpop.f32.mrb[0].mxu0
        %v670 = vpop.f32.mrb[0].mxu0
        %v671 = vadd.f32 0.0, %v670
        %v672 = vpop.f32.mrb[0].mxu0
        %673 = vmatprep.mubr.bf16.mxu0 0
        %674 = vmatmul.mubr.bf16.gmra.mrb[0].mxu0 %v544
        %v675 = vpop.f32.mrb[0].mxu0
        %v676 = vadd.f32 0.0, %v675
        %v677 = vpop.f32.mrb[0].mxu0
        %v678 = vpop.f32.mrb[0].mxu0
        %v679 = vadd.f32 0.0, %v678
        %v680 = vpop.f32.mrb[0].mxu0
        %681 = vmatprep.mubr.bf16.mxu0 0
        %682 = vmatmul.mubr.bf16.gmra.mrb[0].mxu0 %v547
        %v683 = vpop.f32.mrb[0].mxu0
        %v684 = vadd.f32 0.0, %v683
        %v685 = vpop.f32.mrb[0].mxu0
        %v686 = vpop.f32.mrb[0].mxu0
        %v687 = vadd.f32 0.0, %v686
        %v688 = vpop.f32.mrb[0].mxu0
        %689 = vmatprep.mubr.bf16.mxu0 0
        %690 = vmatmul.mubr.bf16.gmra.mrb[0].mxu0 %v550
        %v691 = vpop.f32.mrb[0].mxu0
        %v692 = vadd.f32 0.0, %v691
        %v693 = vpop.f32.mrb[0].mxu0
        %v694 = vpop.f32.mrb[0].mxu0
        %v695 = vadd.f32 0.0, %v694
        %v696 = vpop.f32.mrb[0].mxu0
        %697 = vmatprep.mubr.bf16.mxu0 0
        %698 = vmatmul.mubr.bf16.gmra.mrb[0].mxu0 %v553
        %v699 = vpop.f32.mrb[0].mxu0
        %v700 = vadd.f32 0.0, %v699
        %v701 = vpop.f32.mrb[0].mxu0
        %v702 = vpop.f32.mrb[0].mxu0
        %v703 = vadd.f32 0.0, %v702
        %v704 = vpop.f32.mrb[0].mxu0
        %705 = vmatprep.mubr.bf16.mxu0 0
        %706 = vmatmul.mubr.bf16.gmra.mrb[0].mxu0 %v556
        %v707 = vpop.f32.mrb[0].mxu0
        %v708 = vadd.f32 0.0, %v707
        %v709 = vpop.f32.mrb[0].mxu0
        %v710 = vpop.f32.mrb[0].mxu0
        %v711 = vadd.f32 0.0, %v710
        %v712 = vpop.f32.mrb[0].mxu0
        %713 = vmatprep.mubr.bf16.mxu0 0
        %714 = vmatmul.mubr.bf16.gmra.mrb[0].mxu0 %v559
        %v715 = vpop.f32.mrb[0].mxu0
        %v716 = vadd.f32 0.0, %v715
        %v717 = vpop.f32.mrb[0].mxu0
        %v718 = vpop.f32.mrb[0].mxu0
        %v719 = vadd.f32 0.0, %v718
        %v720 = vpop.f32.mrb[0].mxu0
        %721 = vmatprep.mubr.bf16.mxu0 0
        %722 = vmatmul.mubr.bf16.gmra.mrb[0].mxu0 %v562
        %v723 = vpop.f32.mrb[0].mxu0
        %v724 = vadd.f32 0.0, %v723
        %v725 = vpop.f32.mrb[0].mxu0
        %v726 = vpop.f32.mrb[0].mxu0
        %v727 = vadd.f32 0.0, %v726
        %v728 = vpop.f32.mrb[0].mxu0
        %729 = vmatprep.mubr.bf16.mxu0 0
        %730 = vmatmul.mubr.bf16.gmra.mrb[0].mxu0 %v565
        %v731 = vpop.f32.mrb[0].mxu0
        %v732 = vadd.f32 0.0, %v731
        %v733 = vpop.f32.mrb[0].mxu0
        %v734 = vpop.f32.mrb[0].mxu0
        %v735 = vadd.f32 0.0, %v734
        %v736 = vpop.f32.mrb[0].mxu0
        %737 = vmatprep.mubr.bf16.mxu0 0
        %738 = vmatmul.mubr.bf16.gmra.mrb[0].mxu0 %v568
        %v739 = vpop.f32.mrb[0].mxu0
        %v740 = vadd.f32 0.0, %v739
        %v741 = vpop.f32.mrb[0].mxu0
        %v742 = vpop.f32.mrb[0].mxu0
        %v743 = vadd.f32 0.0, %v742
        %v744 = vpop.f32.mrb[0].mxu0
        %745 = vmatprep.mubr.bf16.mxu0 0
        %746 = vmatmul.mubr.bf16.gmra.mrb[0].mxu0 %v571
        %v747 = vpop.f32.mrb[0].mxu0
        %v748 = vadd.f32 0.0, %v747
        %v749 = vpop.f32.mrb[0].mxu0
        %v750 = vpop.f32.mrb[0].mxu0
        %v751 = vadd.f32 0.0, %v750
        %v752 = vpop.f32.mrb[0].mxu0
        %753 = vdwg.mxu0
        %v754 = vsel %vm518, %v347, 0
        %v756 = vsel %vm518, %v348, 0
        %v758 = vsel %vm518, %v349, 0
        %v760 = vsel %vm518, %v350, 0
        %v762 = vsel %vm518, %v351, 0
        %v764 = vsel %vm518, %v352, 0
        %v766 = vsel %vm518, %v353, 0
        %v768 = vsel %vm518, %v354, 0
        %v770 = vsel %vm518, %v355, 0
        %v772 = vsel %vm518, %v356, 0
        %v774 = vsel %vm518, %v357, 0
        %v776 = vsel %vm518, %v358, 0
        %v778 = vsel %vm518, %v359, 0
        %v780 = vsel %vm518, %v360, 0
        %v782 = vsel %vm518, %v361, 0
        %v784 = vsel %vm518, %v362, 0
        %v786 = vsel %vm518, %v363, 0
        %v788 = vsel %vm518, %v364, 0
        %v791 = vsel %vm573, %v365, 0
        %793 = vmatprep.subr.bf16.mxu0 0
        %794 = vmatpush1.bf16.msra.mxu0 %v791
        %795 = vmatprep.subr.bf16.mxu0 0
        %796 = vmatpush1.bf16.msra.mxu0 0
        %797 = vmatprep.subr.bf16.mxu0 0
        %798 = vmatpush1.bf16.msra.mxu0 0
        %799 = vmatprep.subr.bf16.mxu0 0
        %800 = vmatpush1.bf16.msra.mxu0 0
        %801 = vmatprep.subr.bf16.mxu0 0
        %802 = vmatpush1.bf16.msra.mxu0 0
        %803 = vmatprep.subr.bf16.mxu0 0
        %804 = vmatpush1.bf16.msra.mxu0 0
        %805 = vmatprep.subr.bf16.mxu0 0
        %806 = vmatpush1.bf16.msra.mxu0 0
        %807 = vmatprep.subr.bf16.mxu0 0
        %808 = vmatpush1.bf16.msra.mxu0 0
        %809 = vmatprep.subr.bf16.mxu0 0
        %810 = vmatpush1.bf16.msra.mxu0 0
        %811 = vmatprep.subr.bf16.mxu0 0
        %812 = vmatpush1.bf16.msra.mxu0 0
        %813 = vmatprep.subr.bf16.mxu0 0
        %814 = vmatpush1.bf16.msra.mxu0 0
        %815 = vmatprep.subr.bf16.mxu0 0
        %816 = vmatpush1.bf16.msra.mxu0 0
        %817 = vmatprep.subr.bf16.mxu0 0
        %818 = vmatpush1.bf16.msra.mxu0 0
        %819 = vmatprep.subr.bf16.mxu0 0
        %820 = vmatpush1.bf16.msra.mxu0 0
        %821 = vmatprep.subr.bf16.mxu0 0
        %822 = vmatpush1.bf16.msra.mxu0 0
        %823 = vmatprep.subr.bf16.mxu0 0
        %824 = vmatpush1.bf16.msra.mxu0 0
        %825 = vmatprep.mubr.bf16.mxu0 0
        %826 = vmatmul.mubr.bf16.gmra.mrb[0].mxu0 %v754
        %v827 = vpop.f32.mrb[0].mxu0
        %v828 = vadd.f32 %v612, %v827
        %v829 = vpop.f32.mrb[0].mxu0
        %v830 = vpop.f32.mrb[0].mxu0
        %v831 = vadd.f32 %v615, %v830
        %v832 = vpop.f32.mrb[0].mxu0
        %833 = vmatprep.mubr.bf16.mxu0 0
        %834 = vmatmul.mubr.bf16.gmra.mrb[0].mxu0 %v756
        %v835 = vpop.f32.mrb[0].mxu0
        %v836 = vadd.f32 %v620, %v835
        %v837 = vpop.f32.mrb[0].mxu0
        %v838 = vpop.f32.mrb[0].mxu0
        %v839 = vadd.f32 %v623, %v838
        %v840 = vpop.f32.mrb[0].mxu0
        %841 = vmatprep.mubr.bf16.mxu0 0
        %842 = vmatmul.mubr.bf16.gmra.mrb[0].mxu0 %v758
        %v843 = vpop.f32.mrb[0].mxu0
        %v844 = vadd.f32 %v628, %v843
        %v845 = vpop.f32.mrb[0].mxu0
        %v846 = vpop.f32.mrb[0].mxu0
        %v847 = vadd.f32 %v631, %v846
        %v848 = vpop.f32.mrb[0].mxu0
        %849 = vmatprep.mubr.bf16.mxu0 0
        %850 = vmatmul.mubr.bf16.gmra.mrb[0].mxu0 %v760
        %v851 = vpop.f32.mrb[0].mxu0
        %v852 = vadd.f32 %v636, %v851
        %v853 = vpop.f32.mrb[0].mxu0
        %v854 = vpop.f32.mrb[0].mxu0
        %v855 = vadd.f32 %v639, %v854
        %v856 = vpop.f32.mrb[0].mxu0
        %857 = vmatprep.mubr.bf16.mxu0 0
        %858 = vmatmul.mubr.bf16.gmra.mrb[0].mxu0 %v762
        %v859 = vpop.f32.mrb[0].mxu0
        %v860 = vadd.f32 %v644, %v859
        %v861 = vpop.f32.mrb[0].mxu0
        %v862 = vpop.f32.mrb[0].mxu0
        %v863 = vadd.f32 %v647, %v862
        %v864 = vpop.f32.mrb[0].mxu0
        %865 = vmatprep.mubr.bf16.mxu0 0
        %866 = vmatmul.mubr.bf16.gmra.mrb[0].mxu0 %v764
        %v867 = vpop.f32.mrb[0].mxu0
        %v868 = vadd.f32 %v652, %v867
        %v869 = vpop.f32.mrb[0].mxu0
        %v870 = vpop.f32.mrb[0].mxu0
        %v871 = vadd.f32 %v655, %v870
        %v872 = vpop.f32.mrb[0].mxu0
        %873 = vmatprep.mubr.bf16.mxu0 0
        %874 = vmatmul.mubr.bf16.gmra.mrb[0].mxu0 %v766
        %v875 = vpop.f32.mrb[0].mxu0
        %v876 = vadd.f32 %v660, %v875
        %v877 = vpop.f32.mrb[0].mxu0
        %v878 = vpop.f32.mrb[0].mxu0
        %v879 = vadd.f32 %v663, %v878
        %v880 = vpop.f32.mrb[0].mxu0
        %881 = vmatprep.mubr.bf16.mxu0 0
        %882 = vmatmul.mubr.bf16.gmra.mrb[0].mxu0 %v768
        %v883 = vpop.f32.mrb[0].mxu0
        %v884 = vadd.f32 %v668, %v883
        %v885 = vpop.f32.mrb[0].mxu0
        %v886 = vpop.f32.mrb[0].mxu0
        %v887 = vadd.f32 %v671, %v886
        %v888 = vpop.f32.mrb[0].mxu0
        %889 = vmatprep.mubr.bf16.mxu0 0
        %890 = vmatmul.mubr.bf16.gmra.mrb[0].mxu0 %v770
        %v891 = vpop.f32.mrb[0].mxu0
        %v892 = vadd.f32 %v676, %v891
        %v893 = vpop.f32.mrb[0].mxu0
        %v894 = vpop.f32.mrb[0].mxu0
        %v895 = vadd.f32 %v679, %v894
        %v896 = vpop.f32.mrb[0].mxu0
        %897 = vmatprep.mubr.bf16.mxu0 0
        %898 = vmatmul.mubr.bf16.gmra.mrb[0].mxu0 %v772
        %v899 = vpop.f32.mrb[0].mxu0
        %v900 = vadd.f32 %v684, %v899
        %v901 = vpop.f32.mrb[0].mxu0
        %v902 = vpop.f32.mrb[0].mxu0
        %v903 = vadd.f32 %v687, %v902
        %v904 = vpop.f32.mrb[0].mxu0
        %905 = vmatprep.mubr.bf16.mxu0 0
        %906 = vmatmul.mubr.bf16.gmra.mrb[0].mxu0 %v774
        %v907 = vpop.f32.mrb[0].mxu0
        %v908 = vadd.f32 %v692, %v907
        %v909 = vpop.f32.mrb[0].mxu0
        %v910 = vpop.f32.mrb[0].mxu0
        %v911 = vadd.f32 %v695, %v910
        %v912 = vpop.f32.mrb[0].mxu0
        %913 = vmatprep.mubr.bf16.mxu0 0
        %914 = vmatmul.mubr.bf16.gmra.mrb[0].mxu0 %v776
        %v915 = vpop.f32.mrb[0].mxu0
        %v916 = vadd.f32 %v700, %v915
        %v917 = vpop.f32.mrb[0].mxu0
        %v918 = vpop.f32.mrb[0].mxu0
        %v919 = vadd.f32 %v703, %v918
        %v920 = vpop.f32.mrb[0].mxu0
        %921 = vmatprep.mubr.bf16.mxu0 0
        %922 = vmatmul.mubr.bf16.gmra.mrb[0].mxu0 %v778
        %v923 = vpop.f32.mrb[0].mxu0
        %v924 = vadd.f32 %v708, %v923
        %v925 = vpop.f32.mrb[0].mxu0
        %v926 = vpop.f32.mrb[0].mxu0
        %v927 = vadd.f32 %v711, %v926
        %v928 = vpop.f32.mrb[0].mxu0
        %929 = vmatprep.mubr.bf16.mxu0 0
        %930 = vmatmul.mubr.bf16.gmra.mrb[0].mxu0 %v780
        %v931 = vpop.f32.mrb[0].mxu0
        %v932 = vadd.f32 %v716, %v931
        %v933 = vpop.f32.mrb[0].mxu0
        %v934 = vpop.f32.mrb[0].mxu0
        %v935 = vadd.f32 %v719, %v934
        %v936 = vpop.f32.mrb[0].mxu0
        %937 = vmatprep.mubr.bf16.mxu0 0
        %938 = vmatmul.mubr.bf16.gmra.mrb[0].mxu0 %v782
        %v939 = vpop.f32.mrb[0].mxu0
        %v940 = vadd.f32 %v724, %v939
        %v941 = vpop.f32.mrb[0].mxu0
        %v942 = vpop.f32.mrb[0].mxu0
        %v943 = vadd.f32 %v727, %v942
        %v944 = vpop.f32.mrb[0].mxu0
        %945 = vmatprep.mubr.bf16.mxu0 0
        %946 = vmatmul.mubr.bf16.gmra.mrb[0].mxu0 %v784
        %v947 = vpop.f32.mrb[0].mxu0
        %v948 = vadd.f32 %v732, %v947
        %v949 = vpop.f32.mrb[0].mxu0
        %v950 = vpop.f32.mrb[0].mxu0
        %v951 = vadd.f32 %v735, %v950
        %v952 = vpop.f32.mrb[0].mxu0
        %953 = vmatprep.mubr.bf16.mxu0 0
        %954 = vmatmul.mubr.bf16.gmra.mrb[0].mxu0 %v786
        %v955 = vpop.f32.mrb[0].mxu0
        %v956 = vadd.f32 %v740, %v955
        %v957 = vpop.f32.mrb[0].mxu0
        %v958 = vpop.f32.mrb[0].mxu0
        %v959 = vadd.f32 %v743, %v958
        %v960 = vpop.f32.mrb[0].mxu0
        %961 = vmatprep.mubr.bf16.mxu0 0
        %962 = vmatmul.mubr.bf16.gmra.mrb[0].mxu0 %v788
        %v963 = vpop.f32.mrb[0].mxu0
        %v964 = vadd.f32 %v748, %v963
        %v965 = vpop.f32.mrb[0].mxu0
        %v966 = vpop.f32.mrb[0].mxu0
        %v967 = vadd.f32 %v751, %v966
        %v968 = vpop.f32.mrb[0].mxu0
        %969 = vdwg.mxu0
        %s970 = scalar_lea.vmem %s1, 4
        %v971 = vld [vmem:[%s970] sm:$0x3]
        %vm991 = vcmask 1046528
        %v992 = vrot.slane %v347, 1
        %v993 = vrot.slane %v348, 1
        %v994 = vsel %vm991, %v992, %v993
        %v995 = vrot.slane %v349, 1
        %v996 = vsel %vm991, %v993, %v995
        %v997 = vrot.slane %v350, 1
        %v998 = vsel %vm991, %v995, %v997
        %v999 = vrot.slane %v351, 1
        %v1000 = vsel %vm991, %v997, %v999
        %v1001 = vrot.slane %v352, 1
        %v1002 = vsel %vm991, %v999, %v1001
        %v1003 = vrot.slane %v353, 1
        %v1004 = vsel %vm991, %v1001, %v1003
        %v1005 = vrot.slane %v354, 1
        %v1006 = vsel %vm991, %v1003, %v1005
        %v1007 = vrot.slane %v355, 1
        %v1008 = vsel %vm991, %v1005, %v1007
        %v1009 = vrot.slane %v356, 1
        %v1010 = vsel %vm991, %v1007, %v1009
        %v1011 = vrot.slane %v357, 1
        %v1012 = vsel %vm991, %v1009, %v1011
        %v1013 = vrot.slane %v358, 1
        %v1014 = vsel %vm991, %v1011, %v1013
        %v1015 = vrot.slane %v359, 1
        %v1016 = vsel %vm991, %v1013, %v1015
        %v1017 = vrot.slane %v360, 1
        %v1018 = vsel %vm991, %v1015, %v1017
        %v1019 = vrot.slane %v361, 1
        %v1020 = vsel %vm991, %v1017, %v1019
        %v1021 = vrot.slane %v362, 1
        %v1022 = vsel %vm991, %v1019, %v1021
        %v1023 = vrot.slane %v363, 1
        %v1024 = vsel %vm991, %v1021, %v1023
        %v1025 = vrot.slane %v364, 1
        %v1026 = vsel %vm991, %v1023, %v1025
        %v1027 = vrot.slane %v366, 1
        %v1028 = vsel %vm991, %v1025, %v1027
        %v1030 = vsel %vm518, %v994, 0
        %v1033 = vsel %vm518, %v996, 0
        %v1036 = vsel %vm518, %v998, 0
        %v1039 = vsel %vm518, %v1000, 0
        %v1042 = vsel %vm518, %v1002, 0
        %v1045 = vsel %vm518, %v1004, 0
        %v1048 = vsel %vm518, %v1006, 0
        %v1051 = vsel %vm518, %v1008, 0
        %v1054 = vsel %vm518, %v1010, 0
        %v1057 = vsel %vm518, %v1012, 0
        %v1060 = vsel %vm518, %v1014, 0
        %v1063 = vsel %vm518, %v1016, 0
        %v1066 = vsel %vm518, %v1018, 0
        %v1069 = vsel %vm518, %v1020, 0
        %v1072 = vsel %vm518, %v1022, 0
        %v1075 = vsel %vm518, %v1024, 0
        %v1078 = vsel %vm518, %v1026, 0
        %v1081 = vsel %vm518, %v1028, 0
        %v1084 = vsel %vm573, %v971, 0
        %1086 = vmatprep.subr.bf16.mxu0 0
        %1087 = vmatpush1.bf16.msra.mxu0 %v1084
        %1088 = vmatprep.subr.bf16.mxu0 0
        %1089 = vmatpush1.bf16.msra.mxu0 0
        %1090 = vmatprep.subr.bf16.mxu0 0
        %1091 = vmatpush1.bf16.msra.mxu0 0
        %1092 = vmatprep.subr.bf16.mxu0 0
        %1093 = vmatpush1.bf16.msra.mxu0 0
        %1094 = vmatprep.subr.bf16.mxu0 0
        %1095 = vmatpush1.bf16.msra.mxu0 0
        %1096 = vmatprep.subr.bf16.mxu0 0
        %1097 = vmatpush1.bf16.msra.mxu0 0
        %1098 = vmatprep.subr.bf16.mxu0 0
        %1099 = vmatpush1.bf16.msra.mxu0 0
        %1100 = vmatprep.subr.bf16.mxu0 0
        %1101 = vmatpush1.bf16.msra.mxu0 0
        %1102 = vmatprep.subr.bf16.mxu0 0
        %1103 = vmatpush1.bf16.msra.mxu0 0
        %1104 = vmatprep.subr.bf16.mxu0 0
        %1105 = vmatpush1.bf16.msra.mxu0 0
        %1106 = vmatprep.subr.bf16.mxu0 0
        %1107 = vmatpush1.bf16.msra.mxu0 0
        %1108 = vmatprep.subr.bf16.mxu0 0
        %1109 = vmatpush1.bf16.msra.mxu0 0
        %1110 = vmatprep.subr.bf16.mxu0 0
        %1111 = vmatpush1.bf16.msra.mxu0 0
        %1112 = vmatprep.subr.bf16.mxu0 0
        %1113 = vmatpush1.bf16.msra.mxu0 0
        %1114 = vmatprep.subr.bf16.mxu0 0
        %1115 = vmatpush1.bf16.msra.mxu0 0
        %1116 = vmatprep.subr.bf16.mxu0 0
        %1117 = vmatpush1.bf16.msra.mxu0 0
        %1118 = vmatprep.mubr.bf16.mxu0 0
        %1119 = vmatmul.mubr.bf16.gmra.mrb[0].mxu0 %v1030
        %v1120 = vpop.f32.mrb[0].mxu0
        %v1121 = vadd.f32 0.0, %v1120
        %v1122 = vpop.f32.mrb[0].mxu0
        %v1123 = vpop.f32.mrb[0].mxu0
        %v1124 = vadd.f32 0.0, %v1123
        %v1125 = vpop.f32.mrb[0].mxu0
        %1126 = vmatprep.mubr.bf16.mxu0 0
        %1127 = vmatmul.mubr.bf16.gmra.mrb[0].mxu0 %v1033
        %v1128 = vpop.f32.mrb[0].mxu0
        %v1129 = vadd.f32 0.0, %v1128
        %v1130 = vpop.f32.mrb[0].mxu0
        %v1131 = vpop.f32.mrb[0].mxu0
        %v1132 = vadd.f32 0.0, %v1131
        %v1133 = vpop.f32.mrb[0].mxu0
        %1134 = vmatprep.mubr.bf16.mxu0 0
        %1135 = vmatmul.mubr.bf16.gmra.mrb[0].mxu0 %v1036
        %v1136 = vpop.f32.mrb[0].mxu0
        %v1137 = vadd.f32 0.0, %v1136
        %v1138 = vpop.f32.mrb[0].mxu0
        %v1139 = vpop.f32.mrb[0].mxu0
        %v1140 = vadd.f32 0.0, %v1139
        %v1141 = vpop.f32.mrb[0].mxu0
        %1142 = vmatprep.mubr.bf16.mxu0 0
        %1143 = vmatmul.mubr.bf16.gmra.mrb[0].mxu0 %v1039
        %v1144 = vpop.f32.mrb[0].mxu0
        %v1145 = vadd.f32 0.0, %v1144
        %v1146 = vpop.f32.mrb[0].mxu0
        %v1147 = vpop.f32.mrb[0].mxu0
        %v1148 = vadd.f32 0.0, %v1147
        %v1149 = vpop.f32.mrb[0].mxu0
        %1150 = vmatprep.mubr.bf16.mxu0 0
        %1151 = vmatmul.mubr.bf16.gmra.mrb[0].mxu0 %v1042
        %v1152 = vpop.f32.mrb[0].mxu0
        %v1153 = vadd.f32 0.0, %v1152
        %v1154 = vpop.f32.mrb[0].mxu0
        %v1155 = vpop.f32.mrb[0].mxu0
        %v1156 = vadd.f32 0.0, %v1155
        %v1157 = vpop.f32.mrb[0].mxu0
        %1158 = vmatprep.mubr.bf16.mxu0 0
        %1159 = vmatmul.mubr.bf16.gmra.mrb[0].mxu0 %v1045
        %v1160 = vpop.f32.mrb[0].mxu0
        %v1161 = vadd.f32 0.0, %v1160
        %v1162 = vpop.f32.mrb[0].mxu0
        %v1163 = vpop.f32.mrb[0].mxu0
        %v1164 = vadd.f32 0.0, %v1163
        %v1165 = vpop.f32.mrb[0].mxu0
        %1166 = vmatprep.mubr.bf16.mxu0 0
        %1167 = vmatmul.mubr.bf16.gmra.mrb[0].mxu0 %v1048
        %v1168 = vpop.f32.mrb[0].mxu0
        %v1169 = vadd.f32 0.0, %v1168
        %v1170 = vpop.f32.mrb[0].mxu0
        %v1171 = vpop.f32.mrb[0].mxu0
        %v1172 = vadd.f32 0.0, %v1171
        %v1173 = vpop.f32.mrb[0].mxu0
        %1174 = vmatprep.mubr.bf16.mxu0 0
        %1175 = vmatmul.mubr.bf16.gmra.mrb[0].mxu0 %v1051
        %v1176 = vpop.f32.mrb[0].mxu0
        %v1177 = vadd.f32 0.0, %v1176
        %v1178 = vpop.f32.mrb[0].mxu0
        %v1179 = vpop.f32.mrb[0].mxu0
        %v1180 = vadd.f32 0.0, %v1179
        %v1181 = vpop.f32.mrb[0].mxu0
        %1182 = vmatprep.mubr.bf16.mxu0 0
        %1183 = vmatmul.mubr.bf16.gmra.mrb[0].mxu0 %v1054
        %v1184 = vpop.f32.mrb[0].mxu0
        %v1185 = vadd.f32 0.0, %v1184
        %v1186 = vpop.f32.mrb[0].mxu0
        %v1187 = vpop.f32.mrb[0].mxu0
        %v1188 = vadd.f32 0.0, %v1187
        %v1189 = vpop.f32.mrb[0].mxu0
        %1190 = vmatprep.mubr.bf16.mxu0 0
        %1191 = vmatmul.mubr.bf16.gmra.mrb[0].mxu0 %v1057
        %v1192 = vpop.f32.mrb[0].mxu0
        %v1193 = vadd.f32 0.0, %v1192
        %v1194 = vpop.f32.mrb[0].mxu0
        %v1195 = vpop.f32.mrb[0].mxu0
        %v1196 = vadd.f32 0.0, %v1195
        %v1197 = vpop.f32.mrb[0].mxu0
        %1198 = vmatprep.mubr.bf16.mxu0 0
        %1199 = vmatmul.mubr.bf16.gmra.mrb[0].mxu0 %v1060
        %v1200 = vpop.f32.mrb[0].mxu0
        %v1201 = vadd.f32 0.0, %v1200
        %v1202 = vpop.f32.mrb[0].mxu0
        %v1203 = vpop.f32.mrb[0].mxu0
        %v1204 = vadd.f32 0.0, %v1203
        %v1205 = vpop.f32.mrb[0].mxu0
        %1206 = vmatprep.mubr.bf16.mxu0 0
        %1207 = vmatmul.mubr.bf16.gmra.mrb[0].mxu0 %v1063
        %v1208 = vpop.f32.mrb[0].mxu0
        %v1209 = vadd.f32 0.0, %v1208
        %v1210 = vpop.f32.mrb[0].mxu0
        %v1211 = vpop.f32.mrb[0].mxu0
        %v1212 = vadd.f32 0.0, %v1211
        %v1213 = vpop.f32.mrb[0].mxu0
        %1214 = vmatprep.mubr.bf16.mxu0 0
        %1215 = vmatmul.mubr.bf16.gmra.mrb[0].mxu0 %v1066
        %v1216 = vpop.f32.mrb[0].mxu0
        %v1217 = vadd.f32 0.0, %v1216
        %v1218 = vpop.f32.mrb[0].mxu0
        %v1219 = vpop.f32.mrb[0].mxu0
        %v1220 = vadd.f32 0.0, %v1219
        %v1221 = vpop.f32.mrb[0].mxu0
        %1222 = vmatprep.mubr.bf16.mxu0 0
        %1223 = vmatmul.mubr.bf16.gmra.mrb[0].mxu0 %v1069
        %v1224 = vpop.f32.mrb[0].mxu0
        %v1225 = vadd.f32 0.0, %v1224
        %v1226 = vpop.f32.mrb[0].mxu0
        %v1227 = vpop.f32.mrb[0].mxu0
        %v1228 = vadd.f32 0.0, %v1227
        %v1229 = vpop.f32.mrb[0].mxu0
        %1230 = vmatprep.mubr.bf16.mxu0 0
        %1231 = vmatmul.mubr.bf16.gmra.mrb[0].mxu0 %v1072
        %v1232 = vpop.f32.mrb[0].mxu0
        %v1233 = vadd.f32 0.0, %v1232
        %v1234 = vpop.f32.mrb[0].mxu0
        %v1235 = vpop.f32.mrb[0].mxu0
        %v1236 = vadd.f32 0.0, %v1235
        %v1237 = vpop.f32.mrb[0].mxu0
        %1238 = vmatprep.mubr.bf16.mxu0 0
        %1239 = vmatmul.mubr.bf16.gmra.mrb[0].mxu0 %v1075
        %v1240 = vpop.f32.mrb[0].mxu0
        %v1241 = vadd.f32 0.0, %v1240
        %v1242 = vpop.f32.mrb[0].mxu0
        %v1243 = vpop.f32.mrb[0].mxu0
        %v1244 = vadd.f32 0.0, %v1243
        %v1245 = vpop.f32.mrb[0].mxu0
        %1246 = vmatprep.mubr.bf16.mxu0 0
        %1247 = vmatmul.mubr.bf16.gmra.mrb[0].mxu0 %v1078
        %v1248 = vpop.f32.mrb[0].mxu0
        %v1249 = vadd.f32 0.0, %v1248
        %v1250 = vpop.f32.mrb[0].mxu0
        %v1251 = vpop.f32.mrb[0].mxu0
        %v1252 = vadd.f32 0.0, %v1251
        %v1253 = vpop.f32.mrb[0].mxu0
        %1254 = vmatprep.mubr.bf16.mxu0 0
        %1255 = vmatmul.mubr.bf16.gmra.mrb[0].mxu0 %v1081
        %v1256 = vpop.f32.mrb[0].mxu0
        %v1257 = vadd.f32 0.0, %v1256
        %v1258 = vpop.f32.mrb[0].mxu0
        %v1259 = vpop.f32.mrb[0].mxu0
        %v1260 = vadd.f32 0.0, %v1259
        %v1261 = vpop.f32.mrb[0].mxu0
        %1262 = vdwg.mxu0
        %v1263 = vadd.f32 %v828, %v1121
        %v1264 = vadd.f32 %v831, %v1124
        %v1265 = vadd.f32 %v836, %v1129
        %v1266 = vadd.f32 %v839, %v1132
        %v1267 = vadd.f32 %v844, %v1137
        %v1268 = vadd.f32 %v847, %v1140
        %v1269 = vadd.f32 %v852, %v1145
        %v1270 = vadd.f32 %v855, %v1148
        %v1271 = vadd.f32 %v860, %v1153
        %v1272 = vadd.f32 %v863, %v1156
        %v1273 = vadd.f32 %v868, %v1161
        %v1274 = vadd.f32 %v871, %v1164
        %v1275 = vadd.f32 %v876, %v1169
        %v1276 = vadd.f32 %v879, %v1172
        %v1277 = vadd.f32 %v884, %v1177
        %v1278 = vadd.f32 %v887, %v1180
        %v1279 = vadd.f32 %v892, %v1185
        %v1280 = vadd.f32 %v895, %v1188
        %v1281 = vadd.f32 %v900, %v1193
        %v1282 = vadd.f32 %v903, %v1196
        %v1283 = vadd.f32 %v908, %v1201
        %v1284 = vadd.f32 %v911, %v1204
        %v1285 = vadd.f32 %v916, %v1209
        %v1286 = vadd.f32 %v919, %v1212
        %v1287 = vadd.f32 %v924, %v1217
        %v1288 = vadd.f32 %v927, %v1220
        %v1289 = vadd.f32 %v932, %v1225
        %v1290 = vadd.f32 %v935, %v1228
        %v1291 = vadd.f32 %v940, %v1233
        %v1292 = vadd.f32 %v943, %v1236
        %v1293 = vadd.f32 %v948, %v1241
        %v1294 = vadd.f32 %v951, %v1244
        %v1295 = vadd.f32 %v956, %v1249
        %v1296 = vadd.f32 %v959, %v1252
        %v1297 = vadd.f32 %v964, %v1257
        %v1298 = vadd.f32 %v967, %v1260
        %v1299 = vpack.c.bf16 %v343, %v342
        %v1300 = vpack.c.bf16 %v344, %v344
        %s1301 = scalar_lea.vmem %s1, 6
        %v1302 = vld [vmem:[%s1301] sm:$0x3]
        %v1305 = vrot.slane %v1299, 1
        %v1306 = vsel %vm991, %v1025, %v1305
        %v1307 = vrot.slane %v1300, 1
        %v1308 = vsel %vm991, %v1305, %v1307
        %v1310 = vsel %vm518, %v1306, 0
        %v1313 = vsel %vm518, %v1308, 0
        %v1316 = vsel %vm573, %v1302, 0
        %1318 = vmatprep.subr.bf16.mxu0 0
        %1319 = vmatpush1.bf16.msra.mxu0 %v1316
        %1320 = vmatprep.subr.bf16.mxu0 0
        %1321 = vmatpush1.bf16.msra.mxu0 0
        %1322 = vmatprep.subr.bf16.mxu0 0
        %1323 = vmatpush1.bf16.msra.mxu0 0
        %1324 = vmatprep.subr.bf16.mxu0 0
        %1325 = vmatpush1.bf16.msra.mxu0 0
        %1326 = vmatprep.subr.bf16.mxu0 0
        %1327 = vmatpush1.bf16.msra.mxu0 0
        %1328 = vmatprep.subr.bf16.mxu0 0
        %1329 = vmatpush1.bf16.msra.mxu0 0
        %1330 = vmatprep.subr.bf16.mxu0 0
        %1331 = vmatpush1.bf16.msra.mxu0 0
        %1332 = vmatprep.subr.bf16.mxu0 0
        %1333 = vmatpush1.bf16.msra.mxu0 0
        %1334 = vmatprep.subr.bf16.mxu0 0
        %1335 = vmatpush1.bf16.msra.mxu0 0
        %1336 = vmatprep.subr.bf16.mxu0 0
        %1337 = vmatpush1.bf16.msra.mxu0 0
        %1338 = vmatprep.subr.bf16.mxu0 0
        %1339 = vmatpush1.bf16.msra.mxu0 0
        %1340 = vmatprep.subr.bf16.mxu0 0
        %1341 = vmatpush1.bf16.msra.mxu0 0
        %1342 = vmatprep.subr.bf16.mxu0 0
        %1343 = vmatpush1.bf16.msra.mxu0 0
        %1344 = vmatprep.subr.bf16.mxu0 0
        %1345 = vmatpush1.bf16.msra.mxu0 0
        %1346 = vmatprep.subr.bf16.mxu0 0
        %1347 = vmatpush1.bf16.msra.mxu0 0
        %1348 = vmatprep.subr.bf16.mxu0 0
        %1349 = vmatpush1.bf16.msra.mxu0 0
        %1350 = vmatprep.mubr.bf16.mxu0 0
        %1351 = vmatmul.mubr.bf16.gmra.mrb[0].mxu0 %v1033
        %v1352 = vpop.f32.mrb[0].mxu0
        %v1353 = vadd.f32 0.0, %v1352
        %v1354 = vpop.f32.mrb[0].mxu0
        %v1355 = vpop.f32.mrb[0].mxu0
        %v1356 = vadd.f32 0.0, %v1355
        %v1357 = vpop.f32.mrb[0].mxu0
        %1358 = vmatprep.mubr.bf16.mxu0 0
        %1359 = vmatmul.mubr.bf16.gmra.mrb[0].mxu0 %v1036
        %v1360 = vpop.f32.mrb[0].mxu0
        %v1361 = vadd.f32 0.0, %v1360
        %v1362 = vpop.f32.mrb[0].mxu0
        %v1363 = vpop.f32.mrb[0].mxu0
        %v1364 = vadd.f32 0.0, %v1363
        %v1365 = vpop.f32.mrb[0].mxu0
        %1366 = vmatprep.mubr.bf16.mxu0 0
        %1367 = vmatmul.mubr.bf16.gmra.mrb[0].mxu0 %v1039
        %v1368 = vpop.f32.mrb[0].mxu0
        %v1369 = vadd.f32 0.0, %v1368
        %v1370 = vpop.f32.mrb[0].mxu0
        %v1371 = vpop.f32.mrb[0].mxu0
        %v1372 = vadd.f32 0.0, %v1371
        %v1373 = vpop.f32.mrb[0].mxu0
        %1374 = vmatprep.mubr.bf16.mxu0 0
        %1375 = vmatmul.mubr.bf16.gmra.mrb[0].mxu0 %v1042
        %v1376 = vpop.f32.mrb[0].mxu0
        %v1377 = vadd.f32 0.0, %v1376
        %v1378 = vpop.f32.mrb[0].mxu0
        %v1379 = vpop.f32.mrb[0].mxu0
        %v1380 = vadd.f32 0.0, %v1379
        %v1381 = vpop.f32.mrb[0].mxu0
        %1382 = vmatprep.mubr.bf16.mxu0 0
        %1383 = vmatmul.mubr.bf16.gmra.mrb[0].mxu0 %v1045
        %v1384 = vpop.f32.mrb[0].mxu0
        %v1385 = vadd.f32 0.0, %v1384
        %v1386 = vpop.f32.mrb[0].mxu0
        %v1387 = vpop.f32.mrb[0].mxu0
        %v1388 = vadd.f32 0.0, %v1387
        %v1389 = vpop.f32.mrb[0].mxu0
        %1390 = vmatprep.mubr.bf16.mxu0 0
        %1391 = vmatmul.mubr.bf16.gmra.mrb[0].mxu0 %v1048
        %v1392 = vpop.f32.mrb[0].mxu0
        %v1393 = vadd.f32 0.0, %v1392
        %v1394 = vpop.f32.mrb[0].mxu0
        %v1395 = vpop.f32.mrb[0].mxu0
        %v1396 = vadd.f32 0.0, %v1395
        %v1397 = vpop.f32.mrb[0].mxu0
        %1398 = vmatprep.mubr.bf16.mxu0 0
        %1399 = vmatmul.mubr.bf16.gmra.mrb[0].mxu0 %v1051
        %v1400 = vpop.f32.mrb[0].mxu0
        %v1401 = vadd.f32 0.0, %v1400
        %v1402 = vpop.f32.mrb[0].mxu0
        %v1403 = vpop.f32.mrb[0].mxu0
        %v1404 = vadd.f32 0.0, %v1403
        %v1405 = vpop.f32.mrb[0].mxu0
        %1406 = vmatprep.mubr.bf16.mxu0 0
        %1407 = vmatmul.mubr.bf16.gmra.mrb[0].mxu0 %v1054
        %v1408 = vpop.f32.mrb[0].mxu0
        %v1409 = vadd.f32 0.0, %v1408
        %v1410 = vpop.f32.mrb[0].mxu0
        %v1411 = vpop.f32.mrb[0].mxu0
        %v1412 = vadd.f32 0.0, %v1411
        %v1413 = vpop.f32.mrb[0].mxu0
        %1414 = vmatprep.mubr.bf16.mxu0 0
        %1415 = vmatmul.mubr.bf16.gmra.mrb[0].mxu0 %v1057
        %v1416 = vpop.f32.mrb[0].mxu0
        %v1417 = vadd.f32 0.0, %v1416
        %v1418 = vpop.f32.mrb[0].mxu0
        %v1419 = vpop.f32.mrb[0].mxu0
        %v1420 = vadd.f32 0.0, %v1419
        %v1421 = vpop.f32.mrb[0].mxu0
        %1422 = vmatprep.mubr.bf16.mxu0 0
        %1423 = vmatmul.mubr.bf16.gmra.mrb[0].mxu0 %v1060
        %v1424 = vpop.f32.mrb[0].mxu0
        %v1425 = vadd.f32 0.0, %v1424
        %v1426 = vpop.f32.mrb[0].mxu0
        %v1427 = vpop.f32.mrb[0].mxu0
        %v1428 = vadd.f32 0.0, %v1427
        %v1429 = vpop.f32.mrb[0].mxu0
        %1430 = vmatprep.mubr.bf16.mxu0 0
        %1431 = vmatmul.mubr.bf16.gmra.mrb[0].mxu0 %v1063
        %v1432 = vpop.f32.mrb[0].mxu0
        %v1433 = vadd.f32 0.0, %v1432
        %v1434 = vpop.f32.mrb[0].mxu0
        %v1435 = vpop.f32.mrb[0].mxu0
        %v1436 = vadd.f32 0.0, %v1435
        %v1437 = vpop.f32.mrb[0].mxu0
        %1438 = vmatprep.mubr.bf16.mxu0 0
        %1439 = vmatmul.mubr.bf16.gmra.mrb[0].mxu0 %v1066
        %v1440 = vpop.f32.mrb[0].mxu0
        %v1441 = vadd.f32 0.0, %v1440
        %v1442 = vpop.f32.mrb[0].mxu0
        %v1443 = vpop.f32.mrb[0].mxu0
        %v1444 = vadd.f32 0.0, %v1443
        %v1445 = vpop.f32.mrb[0].mxu0
        %1446 = vmatprep.mubr.bf16.mxu0 0
        %1447 = vmatmul.mubr.bf16.gmra.mrb[0].mxu0 %v1069
        %v1448 = vpop.f32.mrb[0].mxu0
        %v1449 = vadd.f32 0.0, %v1448
        %v1450 = vpop.f32.mrb[0].mxu0
        %v1451 = vpop.f32.mrb[0].mxu0
        %v1452 = vadd.f32 0.0, %v1451
        %v1453 = vpop.f32.mrb[0].mxu0
        %1454 = vmatprep.mubr.bf16.mxu0 0
        %1455 = vmatmul.mubr.bf16.gmra.mrb[0].mxu0 %v1072
        %v1456 = vpop.f32.mrb[0].mxu0
        %v1457 = vadd.f32 0.0, %v1456
        %v1458 = vpop.f32.mrb[0].mxu0
        %v1459 = vpop.f32.mrb[0].mxu0
        %v1460 = vadd.f32 0.0, %v1459
        %v1461 = vpop.f32.mrb[0].mxu0
        %1462 = vmatprep.mubr.bf16.mxu0 0
        %1463 = vmatmul.mubr.bf16.gmra.mrb[0].mxu0 %v1075
        %v1464 = vpop.f32.mrb[0].mxu0
        %v1465 = vadd.f32 0.0, %v1464
        %v1466 = vpop.f32.mrb[0].mxu0
        %v1467 = vpop.f32.mrb[0].mxu0
        %v1468 = vadd.f32 0.0, %v1467
        %v1469 = vpop.f32.mrb[0].mxu0
        %1470 = vmatprep.mubr.bf16.mxu0 0
        %1471 = vmatmul.mubr.bf16.gmra.mrb[0].mxu0 %v1078
        %v1472 = vpop.f32.mrb[0].mxu0
        %v1473 = vadd.f32 0.0, %v1472
        %v1474 = vpop.f32.mrb[0].mxu0
        %v1475 = vpop.f32.mrb[0].mxu0
        %v1476 = vadd.f32 0.0, %v1475
        %v1477 = vpop.f32.mrb[0].mxu0
        %1478 = vmatprep.mubr.bf16.mxu0 0
        %1479 = vmatmul.mubr.bf16.gmra.mrb[0].mxu0 %v1310
        %v1480 = vpop.f32.mrb[0].mxu0
        %v1481 = vadd.f32 0.0, %v1480
        %v1482 = vpop.f32.mrb[0].mxu0
        %v1483 = vpop.f32.mrb[0].mxu0
        %v1484 = vadd.f32 0.0, %v1483
        %v1485 = vpop.f32.mrb[0].mxu0
        %1486 = vmatprep.mubr.bf16.mxu0 0
        %1487 = vmatmul.mubr.bf16.gmra.mrb[0].mxu0 %v1313
        %v1488 = vpop.f32.mrb[0].mxu0
        %v1489 = vadd.f32 0.0, %v1488
        %v1490 = vpop.f32.mrb[0].mxu0
        %v1491 = vpop.f32.mrb[0].mxu0
        %v1492 = vadd.f32 0.0, %v1491
        %v1493 = vpop.f32.mrb[0].mxu0
        %1494 = vdwg.mxu0
        %v1495 = vadd.f32 %v1263, %v1353
        %v1496 = vadd.f32 %v1264, %v1356
        %v1497 = vadd.f32 %v1265, %v1361
        %v1498 = vadd.f32 %v1266, %v1364
        %v1499 = vadd.f32 %v1267, %v1369
        %v1500 = vadd.f32 %v1268, %v1372
        %v1501 = vadd.f32 %v1269, %v1377
        %v1502 = vadd.f32 %v1270, %v1380
        %v1503 = vadd.f32 %v1271, %v1385
        %v1504 = vadd.f32 %v1272, %v1388
        %v1505 = vadd.f32 %v1273, %v1393
        %v1506 = vadd.f32 %v1274, %v1396
        %v1507 = vadd.f32 %v1275, %v1401
        %v1508 = vadd.f32 %v1276, %v1404
        %v1509 = vadd.f32 %v1277, %v1409
        %v1510 = vadd.f32 %v1278, %v1412
        %v1511 = vadd.f32 %v1279, %v1417
        %v1512 = vadd.f32 %v1280, %v1420
        %v1513 = vadd.f32 %v1281, %v1425
        %v1514 = vadd.f32 %v1282, %v1428
        %v1515 = vadd.f32 %v1283, %v1433
        %v1516 = vadd.f32 %v1284, %v1436
        %v1517 = vadd.f32 %v1285, %v1441
        %v1518 = vadd.f32 %v1286, %v1444
        %v1519 = vadd.f32 %v1287, %v1449
        %v1520 = vadd.f32 %v1288, %v1452
        %v1521 = vadd.f32 %v1289, %v1457
        %v1522 = vadd.f32 %v1290, %v1460
        %v1523 = vadd.f32 %v1291, %v1465
        %v1524 = vadd.f32 %v1292, %v1468
        %v1525 = vadd.f32 %v1293, %v1473
        %v1526 = vadd.f32 %v1294, %v1476
        %v1527 = vadd.f32 %v1295, %v1481
        %v1528 = vadd.f32 %v1296, %v1484
        %v1529 = vadd.f32 %v1297, %v1489
        %v1530 = vadd.f32 %v1298, %v1492
        %s1531 = scalar_lea.vmem %s1, 8
        %v1532 = vld [vmem:[%s1531] sm:$0x3]
        %vm1533 = vsmask.f32 6400
        %v1534 = vrot.slane %v382, 1
        %v1535 = vrot.slane %v378, 2
        %v1536 = vor.u32 %v1534, %v1535
        %v1537 = vrot.slane %v390, 1
        %v1538 = vrot.slane %v386, 2
        %v1539 = vor.u32 %v1537, %v1538
        %v1540 = vsel %vm1533, %v1536, %v1539
        %v1541 = vrot.slane %v398, 1
        %v1542 = vrot.slane %v394, 2
        %v1543 = vor.u32 %v1541, %v1542
        %v1544 = vsel %vm1533, %v1539, %v1543
        %v1545 = vrot.slane %v406, 1
        %v1546 = vrot.slane %v402, 2
        %v1547 = vor.u32 %v1545, %v1546
        %v1548 = vsel %vm1533, %v1543, %v1547
        %v1549 = vrot.slane %v414, 1
        %v1550 = vrot.slane %v410, 2
        %v1551 = vor.u32 %v1549, %v1550
        %v1552 = vsel %vm1533, %v1547, %v1551
        %v1553 = vrot.slane %v422, 1
        %v1554 = vrot.slane %v418, 2
        %v1555 = vor.u32 %v1553, %v1554
        %v1556 = vsel %vm1533, %v1551, %v1555
        %v1557 = vrot.slane %v430, 1
        %v1558 = vrot.slane %v426, 2
        %v1559 = vor.u32 %v1557, %v1558
        %v1560 = vsel %vm1533, %v1555, %v1559
        %v1561 = vrot.slane %v438, 1
        %v1562 = vrot.slane %v434, 2
        %v1563 = vor.u32 %v1561, %v1562
        %v1564 = vsel %vm1533, %v1559, %v1563
        %v1565 = vrot.slane %v446, 1
        %v1566 = vrot.slane %v442, 2
        %v1567 = vor.u32 %v1565, %v1566
        %v1568 = vsel %vm1533, %v1563, %v1567
        %v1569 = vrot.slane %v454, 1
        %v1570 = vrot.slane %v450, 2
        %v1571 = vor.u32 %v1569, %v1570
        %v1572 = vsel %vm1533, %v1567, %v1571
        %v1573 = vrot.slane %v462, 1
        %v1574 = vrot.slane %v458, 2
        %v1575 = vor.u32 %v1573, %v1574
        %v1576 = vsel %vm1533, %v1571, %v1575
        %v1577 = vrot.slane %v470, 1
        %v1578 = vrot.slane %v466, 2
        %v1579 = vor.u32 %v1577, %v1578
        %v1580 = vsel %vm1533, %v1575, %v1579
        %v1581 = vrot.slane %v478, 1
        %v1582 = vrot.slane %v474, 2
        %v1583 = vor.u32 %v1581, %v1582
        %v1584 = vsel %vm1533, %v1579, %v1583
        %v1585 = vrot.slane %v486, 1
        %v1586 = vrot.slane %v482, 2
        %v1587 = vor.u32 %v1585, %v1586
        %v1588 = vsel %vm1533, %v1583, %v1587
        %v1589 = vrot.slane %v494, 1
        %v1590 = vrot.slane %v490, 2
        %v1591 = vor.u32 %v1589, %v1590
        %v1592 = vsel %vm1533, %v1587, %v1591
        %v1593 = vrot.slane %v502, 1
        %v1594 = vrot.slane %v498, 2
        %v1595 = vor.u32 %v1593, %v1594
        %v1596 = vsel %vm1533, %v1591, %v1595
        %v1597 = vrot.slane %v510, 1
        %v1598 = vrot.slane %v506, 2
        %v1599 = vor.u32 %v1597, %v1598
        %v1600 = vsel %vm1533, %v1595, %v1599
        %v1602 = vshrl.u32 %v1299, 16
        %v1604 = vrot.slane %v1602, 1
        %v1605 = vshll.u32 %v1299, 16
        %v1607 = vrot.slane %v1605, 2
        %v1608 = vor.u32 %v1604, %v1607
        %v1609 = vsel %vm1533, %v1599, %v1608
        %v1611 = vshrl.u32 %v1300, 16
        %v1613 = vrot.slane %v1611, 1
        %v1614 = vshll.u32 %v1300, 16
        %v1616 = vrot.slane %v1614, 2
        %v1617 = vor.u32 %v1613, %v1616
        %v1618 = vsel %vm1533, %v1608, %v1617
        %v1620 = vsel %vm518, %v1540, 0
        %v1623 = vsel %vm518, %v1544, 0
        %v1626 = vsel %vm518, %v1548, 0
        %v1629 = vsel %vm518, %v1552, 0
        %v1632 = vsel %vm518, %v1556, 0
        %v1635 = vsel %vm518, %v1560, 0
        %v1638 = vsel %vm518, %v1564, 0
        %v1641 = vsel %vm518, %v1568, 0
        %v1644 = vsel %vm518, %v1572, 0
        %v1647 = vsel %vm518, %v1576, 0
        %v1650 = vsel %vm518, %v1580, 0
        %v1653 = vsel %vm518, %v1584, 0
        %v1656 = vsel %vm518, %v1588, 0
        %v1659 = vsel %vm518, %v1592, 0
        %v1662 = vsel %vm518, %v1596, 0
        %v1665 = vsel %vm518, %v1600, 0
        %v1668 = vsel %vm518, %v1609, 0
        %v1671 = vsel %vm518, %v1618, 0
        %v1674 = vsel %vm573, %v1532, 0
        %1676 = vmatprep.subr.bf16.mxu0 0
        %1677 = vmatpush1.bf16.msra.mxu0 %v1674
        %1678 = vmatprep.subr.bf16.mxu0 0
        %1679 = vmatpush1.bf16.msra.mxu0 0
        %1680 = vmatprep.subr.bf16.mxu0 0
        %1681 = vmatpush1.bf16.msra.mxu0 0
        %1682 = vmatprep.subr.bf16.mxu0 0
        %1683 = vmatpush1.bf16.msra.mxu0 0
        %1684 = vmatprep.subr.bf16.mxu0 0
        %1685 = vmatpush1.bf16.msra.mxu0 0
        %1686 = vmatprep.subr.bf16.mxu0 0
        %1687 = vmatpush1.bf16.msra.mxu0 0
        %1688 = vmatprep.subr.bf16.mxu0 0
        %1689 = vmatpush1.bf16.msra.mxu0 0
        %1690 = vmatprep.subr.bf16.mxu0 0
        %1691 = vmatpush1.bf16.msra.mxu0 0
        %1692 = vmatprep.subr.bf16.mxu0 0
        %1693 = vmatpush1.bf16.msra.mxu0 0
        %1694 = vmatprep.subr.bf16.mxu0 0
        %1695 = vmatpush1.bf16.msra.mxu0 0
        %1696 = vmatprep.subr.bf16.mxu0 0
        %1697 = vmatpush1.bf16.msra.mxu0 0
        %1698 = vmatprep.subr.bf16.mxu0 0
        %1699 = vmatpush1.bf16.msra.mxu0 0
        %1700 = vmatprep.subr.bf16.mxu0 0
        %1701 = vmatpush1.bf16.msra.mxu0 0
        %1702 = vmatprep.subr.bf16.mxu0 0
        %1703 = vmatpush1.bf16.msra.mxu0 0
        %1704 = vmatprep.subr.bf16.mxu0 0
        %1705 = vmatpush1.bf16.msra.mxu0 0
        %1706 = vmatprep.subr.bf16.mxu0 0
        %1707 = vmatpush1.bf16.msra.mxu0 0
        %1708 = vmatprep.mubr.bf16.mxu0 0
        %1709 = vmatmul.mubr.bf16.gmra.mrb[0].mxu0 %v1620
        %v1710 = vpop.f32.mrb[0].mxu0
        %v1711 = vadd.f32 0.0, %v1710
        %v1712 = vpop.f32.mrb[0].mxu0
        %v1713 = vpop.f32.mrb[0].mxu0
        %v1714 = vadd.f32 0.0, %v1713
        %v1715 = vpop.f32.mrb[0].mxu0
        %1716 = vmatprep.mubr.bf16.mxu0 0
        %1717 = vmatmul.mubr.bf16.gmra.mrb[0].mxu0 %v1623
        %v1718 = vpop.f32.mrb[0].mxu0
        %v1719 = vadd.f32 0.0, %v1718
        %v1720 = vpop.f32.mrb[0].mxu0
        %v1721 = vpop.f32.mrb[0].mxu0
        %v1722 = vadd.f32 0.0, %v1721
        %v1723 = vpop.f32.mrb[0].mxu0
        %1724 = vmatprep.mubr.bf16.mxu0 0
        %1725 = vmatmul.mubr.bf16.gmra.mrb[0].mxu0 %v1626
        %v1726 = vpop.f32.mrb[0].mxu0
        %v1727 = vadd.f32 0.0, %v1726
        %v1728 = vpop.f32.mrb[0].mxu0
        %v1729 = vpop.f32.mrb[0].mxu0
        %v1730 = vadd.f32 0.0, %v1729
        %v1731 = vpop.f32.mrb[0].mxu0
        %1732 = vmatprep.mubr.bf16.mxu0 0
        %1733 = vmatmul.mubr.bf16.gmra.mrb[0].mxu0 %v1629
        %v1734 = vpop.f32.mrb[0].mxu0
        %v1735 = vadd.f32 0.0, %v1734
        %v1736 = vpop.f32.mrb[0].mxu0
        %v1737 = vpop.f32.mrb[0].mxu0
        %v1738 = vadd.f32 0.0, %v1737
        %v1739 = vpop.f32.mrb[0].mxu0
        %1740 = vmatprep.mubr.bf16.mxu0 0
        %1741 = vmatmul.mubr.bf16.gmra.mrb[0].mxu0 %v1632
        %v1742 = vpop.f32.mrb[0].mxu0
        %v1743 = vadd.f32 0.0, %v1742
        %v1744 = vpop.f32.mrb[0].mxu0
        %v1745 = vpop.f32.mrb[0].mxu0
        %v1746 = vadd.f32 0.0, %v1745
        %v1747 = vpop.f32.mrb[0].mxu0
        %1748 = vmatprep.mubr.bf16.mxu0 0
        %1749 = vmatmul.mubr.bf16.gmra.mrb[0].mxu0 %v1635
        %v1750 = vpop.f32.mrb[0].mxu0
        %v1751 = vadd.f32 0.0, %v1750
        %v1752 = vpop.f32.mrb[0].mxu0
        %v1753 = vpop.f32.mrb[0].mxu0
        %v1754 = vadd.f32 0.0, %v1753
        %v1755 = vpop.f32.mrb[0].mxu0
        %1756 = vmatprep.mubr.bf16.mxu0 0
        %1757 = vmatmul.mubr.bf16.gmra.mrb[0].mxu0 %v1638
        %v1758 = vpop.f32.mrb[0].mxu0
        %v1759 = vadd.f32 0.0, %v1758
        %v1760 = vpop.f32.mrb[0].mxu0
        %v1761 = vpop.f32.mrb[0].mxu0
        %v1762 = vadd.f32 0.0, %v1761
        %v1763 = vpop.f32.mrb[0].mxu0
        %1764 = vmatprep.mubr.bf16.mxu0 0
        %1765 = vmatmul.mubr.bf16.gmra.mrb[0].mxu0 %v1641
        %v1766 = vpop.f32.mrb[0].mxu0
        %v1767 = vadd.f32 0.0, %v1766
        %v1768 = vpop.f32.mrb[0].mxu0
        %v1769 = vpop.f32.mrb[0].mxu0
        %v1770 = vadd.f32 0.0, %v1769
        %v1771 = vpop.f32.mrb[0].mxu0
        %1772 = vmatprep.mubr.bf16.mxu0 0
        %1773 = vmatmul.mubr.bf16.gmra.mrb[0].mxu0 %v1644
        %v1774 = vpop.f32.mrb[0].mxu0
        %v1775 = vadd.f32 0.0, %v1774
        %v1776 = vpop.f32.mrb[0].mxu0
        %v1777 = vpop.f32.mrb[0].mxu0
        %v1778 = vadd.f32 0.0, %v1777
        %v1779 = vpop.f32.mrb[0].mxu0
        %1780 = vmatprep.mubr.bf16.mxu0 0
        %1781 = vmatmul.mubr.bf16.gmra.mrb[0].mxu0 %v1647
        %v1782 = vpop.f32.mrb[0].mxu0
        %v1783 = vadd.f32 0.0, %v1782
        %v1784 = vpop.f32.mrb[0].mxu0
        %v1785 = vpop.f32.mrb[0].mxu0
        %v1786 = vadd.f32 0.0, %v1785
        %v1787 = vpop.f32.mrb[0].mxu0
        %1788 = vmatprep.mubr.bf16.mxu0 0
        %1789 = vmatmul.mubr.bf16.gmra.mrb[0].mxu0 %v1650
        %v1790 = vpop.f32.mrb[0].mxu0
        %v1791 = vadd.f32 0.0, %v1790
        %v1792 = vpop.f32.mrb[0].mxu0
        %v1793 = vpop.f32.mrb[0].mxu0
        %v1794 = vadd.f32 0.0, %v1793
        %v1795 = vpop.f32.mrb[0].mxu0
        %1796 = vmatprep.mubr.bf16.mxu0 0
        %1797 = vmatmul.mubr.bf16.gmra.mrb[0].mxu0 %v1653
        %v1798 = vpop.f32.mrb[0].mxu0
        %v1799 = vadd.f32 0.0, %v1798
        %v1800 = vpop.f32.mrb[0].mxu0
        %v1801 = vpop.f32.mrb[0].mxu0
        %v1802 = vadd.f32 0.0, %v1801
        %v1803 = vpop.f32.mrb[0].mxu0
        %1804 = vmatprep.mubr.bf16.mxu0 0
        %1805 = vmatmul.mubr.bf16.gmra.mrb[0].mxu0 %v1656
        %v1806 = vpop.f32.mrb[0].mxu0
        %v1807 = vadd.f32 0.0, %v1806
        %v1808 = vpop.f32.mrb[0].mxu0
        %v1809 = vpop.f32.mrb[0].mxu0
        %v1810 = vadd.f32 0.0, %v1809
        %v1811 = vpop.f32.mrb[0].mxu0
        %1812 = vmatprep.mubr.bf16.mxu0 0
        %1813 = vmatmul.mubr.bf16.gmra.mrb[0].mxu0 %v1659
        %v1814 = vpop.f32.mrb[0].mxu0
        %v1815 = vadd.f32 0.0, %v1814
        %v1816 = vpop.f32.mrb[0].mxu0
        %v1817 = vpop.f32.mrb[0].mxu0
        %v1818 = vadd.f32 0.0, %v1817
        %v1819 = vpop.f32.mrb[0].mxu0
        %1820 = vmatprep.mubr.bf16.mxu0 0
        %1821 = vmatmul.mubr.bf16.gmra.mrb[0].mxu0 %v1662
        %v1822 = vpop.f32.mrb[0].mxu0
        %v1823 = vadd.f32 0.0, %v1822
        %v1824 = vpop.f32.mrb[0].mxu0
        %v1825 = vpop.f32.mrb[0].mxu0
        %v1826 = vadd.f32 0.0, %v1825
        %v1827 = vpop.f32.mrb[0].mxu0
        %1828 = vmatprep.mubr.bf16.mxu0 0
        %1829 = vmatmul.mubr.bf16.gmra.mrb[0].mxu0 %v1665
        %v1830 = vpop.f32.mrb[0].mxu0
        %v1831 = vadd.f32 0.0, %v1830
        %v1832 = vpop.f32.mrb[0].mxu0
        %v1833 = vpop.f32.mrb[0].mxu0
        %v1834 = vadd.f32 0.0, %v1833
        %v1835 = vpop.f32.mrb[0].mxu0
        %1836 = vmatprep.mubr.bf16.mxu0 0
        %1837 = vmatmul.mubr.bf16.gmra.mrb[0].mxu0 %v1668
        %v1838 = vpop.f32.mrb[0].mxu0
        %v1839 = vadd.f32 0.0, %v1838
        %v1840 = vpop.f32.mrb[0].mxu0
        %v1841 = vpop.f32.mrb[0].mxu0
        %v1842 = vadd.f32 0.0, %v1841
        %v1843 = vpop.f32.mrb[0].mxu0
        %1844 = vmatprep.mubr.bf16.mxu0 0
        %1845 = vmatmul.mubr.bf16.gmra.mrb[0].mxu0 %v1671
        %v1846 = vpop.f32.mrb[0].mxu0
        %v1847 = vadd.f32 0.0, %v1846
        %v1848 = vpop.f32.mrb[0].mxu0
        %v1849 = vpop.f32.mrb[0].mxu0
        %v1850 = vadd.f32 0.0, %v1849
        %v1851 = vpop.f32.mrb[0].mxu0
        %1852 = vdwg.mxu0
        %v1853 = vadd.f32 %v1495, %v1711
        %v1854 = vadd.f32 %v1496, %v1714
        %v1855 = vadd.f32 %v1497, %v1719
        %v1856 = vadd.f32 %v1498, %v1722
        %v1857 = vadd.f32 %v1499, %v1727
        %v1858 = vadd.f32 %v1500, %v1730
        %v1859 = vadd.f32 %v1501, %v1735
        %v1860 = vadd.f32 %v1502, %v1738
        %v1861 = vadd.f32 %v1503, %v1743
        %v1862 = vadd.f32 %v1504, %v1746
        %v1863 = vadd.f32 %v1505, %v1751
        %v1864 = vadd.f32 %v1506, %v1754
        %v1865 = vadd.f32 %v1507, %v1759
        %v1866 = vadd.f32 %v1508, %v1762
        %v1867 = vadd.f32 %v1509, %v1767
        %v1868 = vadd.f32 %v1510, %v1770
        %v1869 = vadd.f32 %v1511, %v1775
        %v1870 = vadd.f32 %v1512, %v1778
        %v1871 = vadd.f32 %v1513, %v1783
        %v1872 = vadd.f32 %v1514, %v1786
        %v1873 = vadd.f32 %v1515, %v1791
        %v1874 = vadd.f32 %v1516, %v1794
        %v1875 = vadd.f32 %v1517, %v1799
        %v1876 = vadd.f32 %v1518, %v1802
        %v1877 = vadd.f32 %v1519, %v1807
        %v1878 = vadd.f32 %v1520, %v1810
        %v1879 = vadd.f32 %v1521, %v1815
        %v1880 = vadd.f32 %v1522, %v1818
        %v1881 = vadd.f32 %v1523, %v1823
        %v1882 = vadd.f32 %v1524, %v1826
        %v1883 = vadd.f32 %v1525, %v1831
        %v1884 = vadd.f32 %v1526, %v1834
        %v1885 = vadd.f32 %v1527, %v1839
        %v1886 = vadd.f32 %v1528, %v1842
        %v1887 = vadd.f32 %v1529, %v1847
        %v1888 = vadd.f32 %v1530, %v1850
        %s1889 = scalar_lea.vmem %s1, 10
        %v1890 = vld [vmem:[%s1889] sm:$0x3]
        %vm1891 = vcmask 1045504
        %v1892 = vrot.slane %v348, 2
        %v1893 = vrot.slane %v349, 2
        %v1894 = vsel %vm1891, %v1892, %v1893
        %v1895 = vrot.slane %v350, 2
        %v1896 = vsel %vm1891, %v1893, %v1895
        %v1897 = vrot.slane %v351, 2
        %v1898 = vsel %vm1891, %v1895, %v1897
        %v1899 = vrot.slane %v352, 2
        %v1900 = vsel %vm1891, %v1897, %v1899
        %v1901 = vrot.slane %v353, 2
        %v1902 = vsel %vm1891, %v1899, %v1901
        %v1903 = vrot.slane %v354, 2
        %v1904 = vsel %vm1891, %v1901, %v1903
        %v1905 = vrot.slane %v355, 2
        %v1906 = vsel %vm1891, %v1903, %v1905
        %v1907 = vrot.slane %v356, 2
        %v1908 = vsel %vm1891, %v1905, %v1907
        %v1909 = vrot.slane %v357, 2
        %v1910 = vsel %vm1891, %v1907, %v1909
        %v1911 = vrot.slane %v358, 2
        %v1912 = vsel %vm1891, %v1909, %v1911
        %v1913 = vrot.slane %v359, 2
        %v1914 = vsel %vm1891, %v1911, %v1913
        %v1915 = vrot.slane %v360, 2
        %v1916 = vsel %vm1891, %v1913, %v1915
        %v1917 = vrot.slane %v361, 2
        %v1918 = vsel %vm1891, %v1915, %v1917
        %v1919 = vrot.slane %v362, 2
        %v1920 = vsel %vm1891, %v1917, %v1919
        %v1921 = vrot.slane %v363, 2
        %v1922 = vsel %vm1891, %v1919, %v1921
        %v1923 = vrot.slane %v364, 2
        %v1924 = vsel %vm1891, %v1921, %v1923
        %v1925 = vrot.slane %v1299, 2
        %v1926 = vsel %vm1891, %v1923, %v1925
        %v1927 = vrot.slane %v1300, 2
        %v1928 = vsel %vm1891, %v1925, %v1927
        %v1930 = vsel %vm518, %v1894, 0
        %v1933 = vsel %vm518, %v1896, 0
        %v1936 = vsel %vm518, %v1898, 0
        %v1939 = vsel %vm518, %v1900, 0
        %v1942 = vsel %vm518, %v1902, 0
        %v1945 = vsel %vm518, %v1904, 0
        %v1948 = vsel %vm518, %v1906, 0
        %v1951 = vsel %vm518, %v1908, 0
        %v1954 = vsel %vm518, %v1910, 0
        %v1957 = vsel %vm518, %v1912, 0
        %v1960 = vsel %vm518, %v1914, 0
        %v1963 = vsel %vm518, %v1916, 0
        %v1966 = vsel %vm518, %v1918, 0
        %v1969 = vsel %vm518, %v1920, 0
        %v1972 = vsel %vm518, %v1922, 0
        %v1975 = vsel %vm518, %v1924, 0
        %v1978 = vsel %vm518, %v1926, 0
        %v1981 = vsel %vm518, %v1928, 0
        %v1984 = vsel %vm573, %v1890, 0
        %1986 = vmatprep.subr.bf16.mxu0 0
        %1987 = vmatpush1.bf16.msra.mxu0 %v1984
        %1988 = vmatprep.subr.bf16.mxu0 0
        %1989 = vmatpush1.bf16.msra.mxu0 0
        %1990 = vmatprep.subr.bf16.mxu0 0
        %1991 = vmatpush1.bf16.msra.mxu0 0
        %1992 = vmatprep.subr.bf16.mxu0 0
        %1993 = vmatpush1.bf16.msra.mxu0 0
        %1994 = vmatprep.subr.bf16.mxu0 0
        %1995 = vmatpush1.bf16.msra.mxu0 0
        %1996 = vmatprep.subr.bf16.mxu0 0
        %1997 = vmatpush1.bf16.msra.mxu0 0
        %1998 = vmatprep.subr.bf16.mxu0 0
        %1999 = vmatpush1.bf16.msra.mxu0 0
        %2000 = vmatprep.subr.bf16.mxu0 0
        %2001 = vmatpush1.bf16.msra.mxu0 0
        %2002 = vmatprep.subr.bf16.mxu0 0
        %2003 = vmatpush1.bf16.msra.mxu0 0
        %2004 = vmatprep.subr.bf16.mxu0 0
        %2005 = vmatpush1.bf16.msra.mxu0 0
        %2006 = vmatprep.subr.bf16.mxu0 0
        %2007 = vmatpush1.bf16.msra.mxu0 0
        %2008 = vmatprep.subr.bf16.mxu0 0
        %2009 = vmatpush1.bf16.msra.mxu0 0
        %2010 = vmatprep.subr.bf16.mxu0 0
        %2011 = vmatpush1.bf16.msra.mxu0 0
        %2012 = vmatprep.subr.bf16.mxu0 0
        %2013 = vmatpush1.bf16.msra.mxu0 0
        %2014 = vmatprep.subr.bf16.mxu0 0
        %2015 = vmatpush1.bf16.msra.mxu0 0
        %2016 = vmatprep.subr.bf16.mxu0 0
        %2017 = vmatpush1.bf16.msra.mxu0 0
        %2018 = vmatprep.mubr.bf16.mxu0 0
        %2019 = vmatmul.mubr.bf16.gmra.mrb[0].mxu0 %v1930
        %v2020 = vpop.f32.mrb[0].mxu0
        %v2021 = vadd.f32 0.0, %v2020
        %v2022 = vpop.f32.mrb[0].mxu0
        %v2023 = vpop.f32.mrb[0].mxu0
        %v2024 = vadd.f32 0.0, %v2023
        %v2025 = vpop.f32.mrb[0].mxu0
        %2026 = vmatprep.mubr.bf16.mxu0 0
        %2027 = vmatmul.mubr.bf16.gmra.mrb[0].mxu0 %v1933
        %v2028 = vpop.f32.mrb[0].mxu0
        %v2029 = vadd.f32 0.0, %v2028
        %v2030 = vpop.f32.mrb[0].mxu0
        %v2031 = vpop.f32.mrb[0].mxu0
        %v2032 = vadd.f32 0.0, %v2031
        %v2033 = vpop.f32.mrb[0].mxu0
        %2034 = vmatprep.mubr.bf16.mxu0 0
        %2035 = vmatmul.mubr.bf16.gmra.mrb[0].mxu0 %v1936
        %v2036 = vpop.f32.mrb[0].mxu0
        %v2037 = vadd.f32 0.0, %v2036
        %v2038 = vpop.f32.mrb[0].mxu0
        %v2039 = vpop.f32.mrb[0].mxu0
        %v2040 = vadd.f32 0.0, %v2039
        %v2041 = vpop.f32.mrb[0].mxu0
        %2042 = vmatprep.mubr.bf16.mxu0 0
        %2043 = vmatmul.mubr.bf16.gmra.mrb[0].mxu0 %v1939
        %v2044 = vpop.f32.mrb[0].mxu0
        %v2045 = vadd.f32 0.0, %v2044
        %v2046 = vpop.f32.mrb[0].mxu0
        %v2047 = vpop.f32.mrb[0].mxu0
        %v2048 = vadd.f32 0.0, %v2047
        %v2049 = vpop.f32.mrb[0].mxu0
        %2050 = vmatprep.mubr.bf16.mxu0 0
        %2051 = vmatmul.mubr.bf16.gmra.mrb[0].mxu0 %v1942
        %v2052 = vpop.f32.mrb[0].mxu0
        %v2053 = vadd.f32 0.0, %v2052
        %v2054 = vpop.f32.mrb[0].mxu0
        %v2055 = vpop.f32.mrb[0].mxu0
        %v2056 = vadd.f32 0.0, %v2055
        %v2057 = vpop.f32.mrb[0].mxu0
        %2058 = vmatprep.mubr.bf16.mxu0 0
        %2059 = vmatmul.mubr.bf16.gmra.mrb[0].mxu0 %v1945
        %v2060 = vpop.f32.mrb[0].mxu0
        %v2061 = vadd.f32 0.0, %v2060
        %v2062 = vpop.f32.mrb[0].mxu0
        %v2063 = vpop.f32.mrb[0].mxu0
        %v2064 = vadd.f32 0.0, %v2063
        %v2065 = vpop.f32.mrb[0].mxu0
        %2066 = vmatprep.mubr.bf16.mxu0 0
        %2067 = vmatmul.mubr.bf16.gmra.mrb[0].mxu0 %v1948
        %v2068 = vpop.f32.mrb[0].mxu0
        %v2069 = vadd.f32 0.0, %v2068
        %v2070 = vpop.f32.mrb[0].mxu0
        %v2071 = vpop.f32.mrb[0].mxu0
        %v2072 = vadd.f32 0.0, %v2071
        %v2073 = vpop.f32.mrb[0].mxu0
        %2074 = vmatprep.mubr.bf16.mxu0 0
        %2075 = vmatmul.mubr.bf16.gmra.mrb[0].mxu0 %v1951
        %v2076 = vpop.f32.mrb[0].mxu0
        %v2077 = vadd.f32 0.0, %v2076
        %v2078 = vpop.f32.mrb[0].mxu0
        %v2079 = vpop.f32.mrb[0].mxu0
        %v2080 = vadd.f32 0.0, %v2079
        %v2081 = vpop.f32.mrb[0].mxu0
        %2082 = vmatprep.mubr.bf16.mxu0 0
        %2083 = vmatmul.mubr.bf16.gmra.mrb[0].mxu0 %v1954
        %v2084 = vpop.f32.mrb[0].mxu0
        %v2085 = vadd.f32 0.0, %v2084
        %v2086 = vpop.f32.mrb[0].mxu0
        %v2087 = vpop.f32.mrb[0].mxu0
        %v2088 = vadd.f32 0.0, %v2087
        %v2089 = vpop.f32.mrb[0].mxu0
        %2090 = vmatprep.mubr.bf16.mxu0 0
        %2091 = vmatmul.mubr.bf16.gmra.mrb[0].mxu0 %v1957
        %v2092 = vpop.f32.mrb[0].mxu0
        %v2093 = vadd.f32 0.0, %v2092
        %v2094 = vpop.f32.mrb[0].mxu0
        %v2095 = vpop.f32.mrb[0].mxu0
        %v2096 = vadd.f32 0.0, %v2095
        %v2097 = vpop.f32.mrb[0].mxu0
        %2098 = vmatprep.mubr.bf16.mxu0 0
        %2099 = vmatmul.mubr.bf16.gmra.mrb[0].mxu0 %v1960
        %v2100 = vpop.f32.mrb[0].mxu0
        %v2101 = vadd.f32 0.0, %v2100
        %v2102 = vpop.f32.mrb[0].mxu0
        %v2103 = vpop.f32.mrb[0].mxu0
        %v2104 = vadd.f32 0.0, %v2103
        %v2105 = vpop.f32.mrb[0].mxu0
        %2106 = vmatprep.mubr.bf16.mxu0 0
        %2107 = vmatmul.mubr.bf16.gmra.mrb[0].mxu0 %v1963
        %v2108 = vpop.f32.mrb[0].mxu0
        %v2109 = vadd.f32 0.0, %v2108
        %v2110 = vpop.f32.mrb[0].mxu0
        %v2111 = vpop.f32.mrb[0].mxu0
        %v2112 = vadd.f32 0.0, %v2111
        %v2113 = vpop.f32.mrb[0].mxu0
        %2114 = vmatprep.mubr.bf16.mxu0 0
        %2115 = vmatmul.mubr.bf16.gmra.mrb[0].mxu0 %v1966
        %v2116 = vpop.f32.mrb[0].mxu0
        %v2117 = vadd.f32 0.0, %v2116
        %v2118 = vpop.f32.mrb[0].mxu0
        %v2119 = vpop.f32.mrb[0].mxu0
        %v2120 = vadd.f32 0.0, %v2119
        %v2121 = vpop.f32.mrb[0].mxu0
        %2122 = vmatprep.mubr.bf16.mxu0 0
        %2123 = vmatmul.mubr.bf16.gmra.mrb[0].mxu0 %v1969
        %v2124 = vpop.f32.mrb[0].mxu0
        %v2125 = vadd.f32 0.0, %v2124
        %v2126 = vpop.f32.mrb[0].mxu0
        %v2127 = vpop.f32.mrb[0].mxu0
        %v2128 = vadd.f32 0.0, %v2127
        %v2129 = vpop.f32.mrb[0].mxu0
        %2130 = vmatprep.mubr.bf16.mxu0 0
        %2131 = vmatmul.mubr.bf16.gmra.mrb[0].mxu0 %v1972
        %v2132 = vpop.f32.mrb[0].mxu0
        %v2133 = vadd.f32 0.0, %v2132
        %v2134 = vpop.f32.mrb[0].mxu0
        %v2135 = vpop.f32.mrb[0].mxu0
        %v2136 = vadd.f32 0.0, %v2135
        %v2137 = vpop.f32.mrb[0].mxu0
        %2138 = vmatprep.mubr.bf16.mxu0 0
        %2139 = vmatmul.mubr.bf16.gmra.mrb[0].mxu0 %v1975
        %v2140 = vpop.f32.mrb[0].mxu0
        %v2141 = vadd.f32 0.0, %v2140
        %v2142 = vpop.f32.mrb[0].mxu0
        %v2143 = vpop.f32.mrb[0].mxu0
        %v2144 = vadd.f32 0.0, %v2143
        %v2145 = vpop.f32.mrb[0].mxu0
        %2146 = vmatprep.mubr.bf16.mxu0 0
        %2147 = vmatmul.mubr.bf16.gmra.mrb[0].mxu0 %v1978
        %v2148 = vpop.f32.mrb[0].mxu0
        %v2149 = vadd.f32 0.0, %v2148
        %v2150 = vpop.f32.mrb[0].mxu0
        %v2151 = vpop.f32.mrb[0].mxu0
        %v2152 = vadd.f32 0.0, %v2151
        %v2153 = vpop.f32.mrb[0].mxu0
        %2154 = vmatprep.mubr.bf16.mxu0 0
        %2155 = vmatmul.mubr.bf16.gmra.mrb[0].mxu0 %v1981
        %v2156 = vpop.f32.mrb[0].mxu0
        %v2157 = vadd.f32 0.0, %v2156
        %v2158 = vpop.f32.mrb[0].mxu0
        %v2159 = vpop.f32.mrb[0].mxu0
        %v2160 = vadd.f32 0.0, %v2159
        %v2161 = vpop.f32.mrb[0].mxu0
        %2162 = vdwg.mxu0
        %v2163 = vadd.f32 %v1853, %v2021
        %v2164 = vadd.f32 %v1854, %v2024
        %v2165 = vadd.f32 %v1855, %v2029
        %v2166 = vadd.f32 %v1856, %v2032
        %v2167 = vadd.f32 %v1857, %v2037
        %v2168 = vadd.f32 %v1858, %v2040
        %v2169 = vadd.f32 %v1859, %v2045
        %v2170 = vadd.f32 %v1860, %v2048
        %v2171 = vadd.f32 %v1861, %v2053
        %v2172 = vadd.f32 %v1862, %v2056
        %v2173 = vadd.f32 %v1863, %v2061
        %v2174 = vadd.f32 %v1864, %v2064
        %v2175 = vadd.f32 %v1865, %v2069
        %v2176 = vadd.f32 %v1866, %v2072
        %v2177 = vadd.f32 %v1867, %v2077
        %v2178 = vadd.f32 %v1868, %v2080
        %v2179 = vadd.f32 %v1869, %v2085
        %v2180 = vadd.f32 %v1870, %v2088
        %v2181 = vadd.f32 %v1871, %v2093
        %v2182 = vadd.f32 %v1872, %v2096
        %v2183 = vadd.f32 %v1873, %v2101
        %v2184 = vadd.f32 %v1874, %v2104
        %v2185 = vadd.f32 %v1875, %v2109
        %v2186 = vadd.f32 %v1876, %v2112
        %v2187 = vadd.f32 %v1877, %v2117
        %v2188 = vadd.f32 %v1878, %v2120
        %v2189 = vadd.f32 %v1879, %v2125
        %v2190 = vadd.f32 %v1880, %v2128
        %v2191 = vadd.f32 %v1881, %v2133
        %v2192 = vadd.f32 %v1882, %v2136
        %v2193 = vadd.f32 %v1883, %v2141
        %v2194 = vadd.f32 %v1884, %v2144
        %v2195 = vadd.f32 %v1885, %v2149
        %v2196 = vadd.f32 %v1886, %v2152
        %v2197 = vadd.f32 %v1887, %v2157
        %v2198 = vadd.f32 %v1888, %v2160
        %v2199 = vpack.c.bf16 %v345, %v344
        %v2200 = vpack.c.bf16 %v346, %v346
        %s2201 = scalar_lea.vmem %s1, 12
        %v2202 = vld [vmem:[%s2201] sm:$0x3]
        %v2205 = vrot.slane %v2199, 2
        %v2206 = vsel %vm1891, %v1925, %v2205
        %v2207 = vrot.slane %v2200, 2
        %v2208 = vsel %vm1891, %v2205, %v2207
        %v2210 = vsel %vm518, %v2206, 0
        %v2213 = vsel %vm518, %v2208, 0
        %v2216 = vsel %vm573, %v2202, 0
        %2218 = vmatprep.subr.bf16.mxu0 0
        %2219 = vmatpush1.bf16.msra.mxu0 %v2216
        %2220 = vmatprep.subr.bf16.mxu0 0
        %2221 = vmatpush1.bf16.msra.mxu0 0
        %2222 = vmatprep.subr.bf16.mxu0 0
        %2223 = vmatpush1.bf16.msra.mxu0 0
        %2224 = vmatprep.subr.bf16.mxu0 0
        %2225 = vmatpush1.bf16.msra.mxu0 0
        %2226 = vmatprep.subr.bf16.mxu0 0
        %2227 = vmatpush1.bf16.msra.mxu0 0
        %2228 = vmatprep.subr.bf16.mxu0 0
        %2229 = vmatpush1.bf16.msra.mxu0 0
        %2230 = vmatprep.subr.bf16.mxu0 0
        %2231 = vmatpush1.bf16.msra.mxu0 0
        %2232 = vmatprep.subr.bf16.mxu0 0
        %2233 = vmatpush1.bf16.msra.mxu0 0
        %2234 = vmatprep.subr.bf16.mxu0 0
        %2235 = vmatpush1.bf16.msra.mxu0 0
        %2236 = vmatprep.subr.bf16.mxu0 0
        %2237 = vmatpush1.bf16.msra.mxu0 0
        %2238 = vmatprep.subr.bf16.mxu0 0
        %2239 = vmatpush1.bf16.msra.mxu0 0
        %2240 = vmatprep.subr.bf16.mxu0 0
        %2241 = vmatpush1.bf16.msra.mxu0 0
        %2242 = vmatprep.subr.bf16.mxu0 0
        %2243 = vmatpush1.bf16.msra.mxu0 0
        %2244 = vmatprep.subr.bf16.mxu0 0
        %2245 = vmatpush1.bf16.msra.mxu0 0
        %2246 = vmatprep.subr.bf16.mxu0 0
        %2247 = vmatpush1.bf16.msra.mxu0 0
        %2248 = vmatprep.subr.bf16.mxu0 0
        %2249 = vmatpush1.bf16.msra.mxu0 0
        %2250 = vmatprep.mubr.bf16.mxu0 0
        %2251 = vmatmul.mubr.bf16.gmra.mrb[0].mxu0 %v1933
        %v2252 = vpop.f32.mrb[0].mxu0
        %v2253 = vadd.f32 0.0, %v2252
        %v2254 = vpop.f32.mrb[0].mxu0
        %v2255 = vpop.f32.mrb[0].mxu0
        %v2256 = vadd.f32 0.0, %v2255
        %v2257 = vpop.f32.mrb[0].mxu0
        %2258 = vmatprep.mubr.bf16.mxu0 0
        %2259 = vmatmul.mubr.bf16.gmra.mrb[0].mxu0 %v1936
        %v2260 = vpop.f32.mrb[0].mxu0
        %v2261 = vadd.f32 0.0, %v2260
        %v2262 = vpop.f32.mrb[0].mxu0
        %v2263 = vpop.f32.mrb[0].mxu0
        %v2264 = vadd.f32 0.0, %v2263
        %v2265 = vpop.f32.mrb[0].mxu0
        %2266 = vmatprep.mubr.bf16.mxu0 0
        %2267 = vmatmul.mubr.bf16.gmra.mrb[0].mxu0 %v1939
        %v2268 = vpop.f32.mrb[0].mxu0
        %v2269 = vadd.f32 0.0, %v2268
        %v2270 = vpop.f32.mrb[0].mxu0
        %v2271 = vpop.f32.mrb[0].mxu0
        %v2272 = vadd.f32 0.0, %v2271
        %v2273 = vpop.f32.mrb[0].mxu0
        %2274 = vmatprep.mubr.bf16.mxu0 0
        %2275 = vmatmul.mubr.bf16.gmra.mrb[0].mxu0 %v1942
        %v2276 = vpop.f32.mrb[0].mxu0
        %v2277 = vadd.f32 0.0, %v2276
        %v2278 = vpop.f32.mrb[0].mxu0
        %v2279 = vpop.f32.mrb[0].mxu0
        %v2280 = vadd.f32 0.0, %v2279
        %v2281 = vpop.f32.mrb[0].mxu0
        %2282 = vmatprep.mubr.bf16.mxu0 0
        %2283 = vmatmul.mubr.bf16.gmra.mrb[0].mxu0 %v1945
        %v2284 = vpop.f32.mrb[0].mxu0
        %v2285 = vadd.f32 0.0, %v2284
        %v2286 = vpop.f32.mrb[0].mxu0
        %v2287 = vpop.f32.mrb[0].mxu0
        %v2288 = vadd.f32 0.0, %v2287
        %v2289 = vpop.f32.mrb[0].mxu0
        %2290 = vmatprep.mubr.bf16.mxu0 0
        %2291 = vmatmul.mubr.bf16.gmra.mrb[0].mxu0 %v1948
        %v2292 = vpop.f32.mrb[0].mxu0
        %v2293 = vadd.f32 0.0, %v2292
        %v2294 = vpop.f32.mrb[0].mxu0
        %v2295 = vpop.f32.mrb[0].mxu0
        %v2296 = vadd.f32 0.0, %v2295
        %v2297 = vpop.f32.mrb[0].mxu0
        %2298 = vmatprep.mubr.bf16.mxu0 0
        %2299 = vmatmul.mubr.bf16.gmra.mrb[0].mxu0 %v1951
        %v2300 = vpop.f32.mrb[0].mxu0
        %v2301 = vadd.f32 0.0, %v2300
        %v2302 = vpop.f32.mrb[0].mxu0
        %v2303 = vpop.f32.mrb[0].mxu0
        %v2304 = vadd.f32 0.0, %v2303
        %v2305 = vpop.f32.mrb[0].mxu0
        %2306 = vmatprep.mubr.bf16.mxu0 0
        %2307 = vmatmul.mubr.bf16.gmra.mrb[0].mxu0 %v1954
        %v2308 = vpop.f32.mrb[0].mxu0
        %v2309 = vadd.f32 0.0, %v2308
        %v2310 = vpop.f32.mrb[0].mxu0
        %v2311 = vpop.f32.mrb[0].mxu0
        %v2312 = vadd.f32 0.0, %v2311
        %v2313 = vpop.f32.mrb[0].mxu0
        %2314 = vmatprep.mubr.bf16.mxu0 0
        %2315 = vmatmul.mubr.bf16.gmra.mrb[0].mxu0 %v1957
        %v2316 = vpop.f32.mrb[0].mxu0
        %v2317 = vadd.f32 0.0, %v2316
        %v2318 = vpop.f32.mrb[0].mxu0
        %v2319 = vpop.f32.mrb[0].mxu0
        %v2320 = vadd.f32 0.0, %v2319
        %v2321 = vpop.f32.mrb[0].mxu0
        %2322 = vmatprep.mubr.bf16.mxu0 0
        %2323 = vmatmul.mubr.bf16.gmra.mrb[0].mxu0 %v1960
        %v2324 = vpop.f32.mrb[0].mxu0
        %v2325 = vadd.f32 0.0, %v2324
        %v2326 = vpop.f32.mrb[0].mxu0
        %v2327 = vpop.f32.mrb[0].mxu0
        %v2328 = vadd.f32 0.0, %v2327
        %v2329 = vpop.f32.mrb[0].mxu0
        %2330 = vmatprep.mubr.bf16.mxu0 0
        %2331 = vmatmul.mubr.bf16.gmra.mrb[0].mxu0 %v1963
        %v2332 = vpop.f32.mrb[0].mxu0
        %v2333 = vadd.f32 0.0, %v2332
        %v2334 = vpop.f32.mrb[0].mxu0
        %v2335 = vpop.f32.mrb[0].mxu0
        %v2336 = vadd.f32 0.0, %v2335
        %v2337 = vpop.f32.mrb[0].mxu0
        %2338 = vmatprep.mubr.bf16.mxu0 0
        %2339 = vmatmul.mubr.bf16.gmra.mrb[0].mxu0 %v1966
        %v2340 = vpop.f32.mrb[0].mxu0
        %v2341 = vadd.f32 0.0, %v2340
        %v2342 = vpop.f32.mrb[0].mxu0
        %v2343 = vpop.f32.mrb[0].mxu0
        %v2344 = vadd.f32 0.0, %v2343
        %v2345 = vpop.f32.mrb[0].mxu0
        %2346 = vmatprep.mubr.bf16.mxu0 0
        %2347 = vmatmul.mubr.bf16.gmra.mrb[0].mxu0 %v1969
        %v2348 = vpop.f32.mrb[0].mxu0
        %v2349 = vadd.f32 0.0, %v2348
        %v2350 = vpop.f32.mrb[0].mxu0
        %v2351 = vpop.f32.mrb[0].mxu0
        %v2352 = vadd.f32 0.0, %v2351
        %v2353 = vpop.f32.mrb[0].mxu0
        %2354 = vmatprep.mubr.bf16.mxu0 0
        %2355 = vmatmul.mubr.bf16.gmra.mrb[0].mxu0 %v1972
        %v2356 = vpop.f32.mrb[0].mxu0
        %v2357 = vadd.f32 0.0, %v2356
        %v2358 = vpop.f32.mrb[0].mxu0
        %v2359 = vpop.f32.mrb[0].mxu0
        %v2360 = vadd.f32 0.0, %v2359
        %v2361 = vpop.f32.mrb[0].mxu0
        %2362 = vmatprep.mubr.bf16.mxu0 0
        %2363 = vmatmul.mubr.bf16.gmra.mrb[0].mxu0 %v1975
        %v2364 = vpop.f32.mrb[0].mxu0
        %v2365 = vadd.f32 0.0, %v2364
        %v2366 = vpop.f32.mrb[0].mxu0
        %v2367 = vpop.f32.mrb[0].mxu0
        %v2368 = vadd.f32 0.0, %v2367
        %v2369 = vpop.f32.mrb[0].mxu0
        %2370 = vmatprep.mubr.bf16.mxu0 0
        %2371 = vmatmul.mubr.bf16.gmra.mrb[0].mxu0 %v1978
        %v2372 = vpop.f32.mrb[0].mxu0
        %v2373 = vadd.f32 0.0, %v2372
        %v2374 = vpop.f32.mrb[0].mxu0
        %v2375 = vpop.f32.mrb[0].mxu0
        %v2376 = vadd.f32 0.0, %v2375
        %v2377 = vpop.f32.mrb[0].mxu0
        %2378 = vmatprep.mubr.bf16.mxu0 0
        %2379 = vmatmul.mubr.bf16.gmra.mrb[0].mxu0 %v2210
        %v2380 = vpop.f32.mrb[0].mxu0
        %v2381 = vadd.f32 0.0, %v2380
        %v2382 = vpop.f32.mrb[0].mxu0
        %v2383 = vpop.f32.mrb[0].mxu0
        %v2384 = vadd.f32 0.0, %v2383
        %v2385 = vpop.f32.mrb[0].mxu0
        %2386 = vmatprep.mubr.bf16.mxu0 0
        %2387 = vmatmul.mubr.bf16.gmra.mrb[0].mxu0 %v2213
        %v2388 = vpop.f32.mrb[0].mxu0
        %v2389 = vadd.f32 0.0, %v2388
        %v2390 = vpop.f32.mrb[0].mxu0
        %v2391 = vpop.f32.mrb[0].mxu0
        %v2392 = vadd.f32 0.0, %v2391
        %v2393 = vpop.f32.mrb[0].mxu0
        %2394 = vdwg.mxu0
        %v2395 = vadd.f32 %v2163, %v2253
        %v2396 = vadd.f32 %v2164, %v2256
        %v2397 = vadd.f32 %v2165, %v2261
        %v2398 = vadd.f32 %v2166, %v2264
        %v2399 = vadd.f32 %v2167, %v2269
        %v2400 = vadd.f32 %v2168, %v2272
        %v2401 = vadd.f32 %v2169, %v2277
        %v2402 = vadd.f32 %v2170, %v2280
        %v2403 = vadd.f32 %v2171, %v2285
        %v2404 = vadd.f32 %v2172, %v2288
        %v2405 = vadd.f32 %v2173, %v2293
        %v2406 = vadd.f32 %v2174, %v2296
        %v2407 = vadd.f32 %v2175, %v2301
        %v2408 = vadd.f32 %v2176, %v2304
        %v2409 = vadd.f32 %v2177, %v2309
        %v2410 = vadd.f32 %v2178, %v2312
        %v2411 = vadd.f32 %v2179, %v2317
        %v2412 = vadd.f32 %v2180, %v2320
        %v2413 = vadd.f32 %v2181, %v2325
        %v2414 = vadd.f32 %v2182, %v2328
        %v2415 = vadd.f32 %v2183, %v2333
        %v2416 = vadd.f32 %v2184, %v2336
        %v2417 = vadd.f32 %v2185, %v2341
        %v2418 = vadd.f32 %v2186, %v2344
        %v2419 = vadd.f32 %v2187, %v2349
        %v2420 = vadd.f32 %v2188, %v2352
        %v2421 = vadd.f32 %v2189, %v2357
        %v2422 = vadd.f32 %v2190, %v2360
        %v2423 = vadd.f32 %v2191, %v2365
        %v2424 = vadd.f32 %v2192, %v2368
        %v2425 = vadd.f32 %v2193, %v2373
        %v2426 = vadd.f32 %v2194, %v2376
        %v2427 = vadd.f32 %v2195, %v2381
        %v2428 = vadd.f32 %v2196, %v2384
        %v2429 = vadd.f32 %v2197, %v2389
        %v2430 = vadd.f32 %v2198, %v2392
        %s2431 = scalar_lea.vmem %s1, 14
        %v2432 = vld [vmem:[%s2431] sm:$0x3]
        %vm2433 = vsmask.f32 5376
        %v2434 = vrot.slane %v390, 2
        %v2435 = vrot.slane %v386, 3
        %v2436 = vor.u32 %v2434, %v2435
        %v2437 = vrot.slane %v398, 2
        %v2438 = vrot.slane %v394, 3
        %v2439 = vor.u32 %v2437, %v2438
        %v2440 = vsel %vm2433, %v2436, %v2439
        %v2441 = vrot.slane %v406, 2
        %v2442 = vrot.slane %v402, 3
        %v2443 = vor.u32 %v2441, %v2442
        %v2444 = vsel %vm2433, %v2439, %v2443
        %v2445 = vrot.slane %v414, 2
        %v2446 = vrot.slane %v410, 3
        %v2447 = vor.u32 %v2445, %v2446
        %v2448 = vsel %vm2433, %v2443, %v2447
        %v2449 = vrot.slane %v422, 2
        %v2450 = vrot.slane %v418, 3
        %v2451 = vor.u32 %v2449, %v2450
        %v2452 = vsel %vm2433, %v2447, %v2451
        %v2453 = vrot.slane %v430, 2
        %v2454 = vrot.slane %v426, 3
        %v2455 = vor.u32 %v2453, %v2454
        %v2456 = vsel %vm2433, %v2451, %v2455
        %v2457 = vrot.slane %v438, 2
        %v2458 = vrot.slane %v434, 3
        %v2459 = vor.u32 %v2457, %v2458
        %v2460 = vsel %vm2433, %v2455, %v2459
        %v2461 = vrot.slane %v446, 2
        %v2462 = vrot.slane %v442, 3
        %v2463 = vor.u32 %v2461, %v2462
        %v2464 = vsel %vm2433, %v2459, %v2463
        %v2465 = vrot.slane %v454, 2
        %v2466 = vrot.slane %v450, 3
        %v2467 = vor.u32 %v2465, %v2466
        %v2468 = vsel %vm2433, %v2463, %v2467
        %v2469 = vrot.slane %v462, 2
        %v2470 = vrot.slane %v458, 3
        %v2471 = vor.u32 %v2469, %v2470
        %v2472 = vsel %vm2433, %v2467, %v2471
        %v2473 = vrot.slane %v470, 2
        %v2474 = vrot.slane %v466, 3
        %v2475 = vor.u32 %v2473, %v2474
        %v2476 = vsel %vm2433, %v2471, %v2475
        %v2477 = vrot.slane %v478, 2
        %v2478 = vrot.slane %v474, 3
        %v2479 = vor.u32 %v2477, %v2478
        %v2480 = vsel %vm2433, %v2475, %v2479
        %v2481 = vrot.slane %v486, 2
        %v2482 = vrot.slane %v482, 3
        %v2483 = vor.u32 %v2481, %v2482
        %v2484 = vsel %vm2433, %v2479, %v2483
        %v2485 = vrot.slane %v494, 2
        %v2486 = vrot.slane %v490, 3
        %v2487 = vor.u32 %v2485, %v2486
        %v2488 = vsel %vm2433, %v2483, %v2487
        %v2489 = vrot.slane %v502, 2
        %v2490 = vrot.slane %v498, 3
        %v2491 = vor.u32 %v2489, %v2490
        %v2492 = vsel %vm2433, %v2487, %v2491
        %v2493 = vrot.slane %v510, 2
        %v2494 = vrot.slane %v506, 3
        %v2495 = vor.u32 %v2493, %v2494
        %v2496 = vsel %vm2433, %v2491, %v2495
        %v2497 = vrot.slane %v1602, 2
        %v2498 = vrot.slane %v1605, 3
        %v2499 = vor.u32 %v2497, %v2498
        %v2500 = vsel %vm2433, %v2495, %v2499
        %v2502 = vshrl.u32 %v2199, 16
        %v2504 = vrot.slane %v2502, 2
        %v2505 = vshll.u32 %v2199, 16
        %v2507 = vrot.slane %v2505, 3
        %v2508 = vor.u32 %v2504, %v2507
        %v2509 = vsel %vm2433, %v2499, %v2508
        %v2511 = vshrl.u32 %v2200, 16
        %v2513 = vrot.slane %v2511, 2
        %v2514 = vshll.u32 %v2200, 16
        %v2516 = vrot.slane %v2514, 3
        %v2517 = vor.u32 %v2513, %v2516
        %v2518 = vsel %vm2433, %v2508, %v2517
        %v2520 = vsel %vm518, %v2440, 0
        %v2523 = vsel %vm518, %v2444, 0
        %v2526 = vsel %vm518, %v2448, 0
        %v2529 = vsel %vm518, %v2452, 0
        %v2532 = vsel %vm518, %v2456, 0
        %v2535 = vsel %vm518, %v2460, 0
        %v2538 = vsel %vm518, %v2464, 0
        %v2541 = vsel %vm518, %v2468, 0
        %v2544 = vsel %vm518, %v2472, 0
        %v2547 = vsel %vm518, %v2476, 0
        %v2550 = vsel %vm518, %v2480, 0
        %v2553 = vsel %vm518, %v2484, 0
        %v2556 = vsel %vm518, %v2488, 0
        %v2559 = vsel %vm518, %v2492, 0
        %v2562 = vsel %vm518, %v2496, 0
        %v2565 = vsel %vm518, %v2500, 0
        %v2568 = vsel %vm518, %v2509, 0
        %v2571 = vsel %vm518, %v2518, 0
        %v2574 = vsel %vm573, %v2432, 0
        %2576 = vmatprep.subr.bf16.mxu0 0
        %2577 = vmatpush1.bf16.msra.mxu0 %v2574
        %2578 = vmatprep.subr.bf16.mxu0 0
        %2579 = vmatpush1.bf16.msra.mxu0 0
        %2580 = vmatprep.subr.bf16.mxu0 0
        %2581 = vmatpush1.bf16.msra.mxu0 0
        %2582 = vmatprep.subr.bf16.mxu0 0
        %2583 = vmatpush1.bf16.msra.mxu0 0
        %2584 = vmatprep.subr.bf16.mxu0 0
        %2585 = vmatpush1.bf16.msra.mxu0 0
        %2586 = vmatprep.subr.bf16.mxu0 0
        %2587 = vmatpush1.bf16.msra.mxu0 0
        %2588 = vmatprep.subr.bf16.mxu0 0
        %2589 = vmatpush1.bf16.msra.mxu0 0
        %2590 = vmatprep.subr.bf16.mxu0 0
        %2591 = vmatpush1.bf16.msra.mxu0 0
        %2592 = vmatprep.subr.bf16.mxu0 0
        %2593 = vmatpush1.bf16.msra.mxu0 0
        %2594 = vmatprep.subr.bf16.mxu0 0
        %2595 = vmatpush1.bf16.msra.mxu0 0
        %2596 = vmatprep.subr.bf16.mxu0 0
        %2597 = vmatpush1.bf16.msra.mxu0 0
        %2598 = vmatprep.subr.bf16.mxu0 0
        %2599 = vmatpush1.bf16.msra.mxu0 0
        %2600 = vmatprep.subr.bf16.mxu0 0
        %2601 = vmatpush1.bf16.msra.mxu0 0
        %2602 = vmatprep.subr.bf16.mxu0 0
        %2603 = vmatpush1.bf16.msra.mxu0 0
        %2604 = vmatprep.subr.bf16.mxu0 0
        %2605 = vmatpush1.bf16.msra.mxu0 0
        %2606 = vmatprep.subr.bf16.mxu0 0
        %2607 = vmatpush1.bf16.msra.mxu0 0
        %2608 = vmatprep.mubr.bf16.mxu0 0
        %2609 = vmatmul.mubr.bf16.gmra.mrb[0].mxu0 %v2520
        %v2610 = vpop.f32.mrb[0].mxu0
        %v2611 = vadd.f32 0.0, %v2610
        %v2612 = vpop.f32.mrb[0].mxu0
        %v2613 = vpop.f32.mrb[0].mxu0
        %v2614 = vadd.f32 0.0, %v2613
        %v2615 = vpop.f32.mrb[0].mxu0
        %2616 = vmatprep.mubr.bf16.mxu0 0
        %2617 = vmatmul.mubr.bf16.gmra.mrb[0].mxu0 %v2523
        %v2618 = vpop.f32.mrb[0].mxu0
        %v2619 = vadd.f32 0.0, %v2618
        %v2620 = vpop.f32.mrb[0].mxu0
        %v2621 = vpop.f32.mrb[0].mxu0
        %v2622 = vadd.f32 0.0, %v2621
        %v2623 = vpop.f32.mrb[0].mxu0
        %2624 = vmatprep.mubr.bf16.mxu0 0
        %2625 = vmatmul.mubr.bf16.gmra.mrb[0].mxu0 %v2526
        %v2626 = vpop.f32.mrb[0].mxu0
        %v2627 = vadd.f32 0.0, %v2626
        %v2628 = vpop.f32.mrb[0].mxu0
        %v2629 = vpop.f32.mrb[0].mxu0
        %v2630 = vadd.f32 0.0, %v2629
        %v2631 = vpop.f32.mrb[0].mxu0
        %2632 = vmatprep.mubr.bf16.mxu0 0
        %2633 = vmatmul.mubr.bf16.gmra.mrb[0].mxu0 %v2529
        %v2634 = vpop.f32.mrb[0].mxu0
        %v2635 = vadd.f32 0.0, %v2634
        %v2636 = vpop.f32.mrb[0].mxu0
        %v2637 = vpop.f32.mrb[0].mxu0
        %v2638 = vadd.f32 0.0, %v2637
        %v2639 = vpop.f32.mrb[0].mxu0
        %2640 = vmatprep.mubr.bf16.mxu0 0
        %2641 = vmatmul.mubr.bf16.gmra.mrb[0].mxu0 %v2532
        %v2642 = vpop.f32.mrb[0].mxu0
        %v2643 = vadd.f32 0.0, %v2642
        %v2644 = vpop.f32.mrb[0].mxu0
        %v2645 = vpop.f32.mrb[0].mxu0
        %v2646 = vadd.f32 0.0, %v2645
        %v2647 = vpop.f32.mrb[0].mxu0
        %2648 = vmatprep.mubr.bf16.mxu0 0
        %2649 = vmatmul.mubr.bf16.gmra.mrb[0].mxu0 %v2535
        %v2650 = vpop.f32.mrb[0].mxu0
        %v2651 = vadd.f32 0.0, %v2650
        %v2652 = vpop.f32.mrb[0].mxu0
        %v2653 = vpop.f32.mrb[0].mxu0
        %v2654 = vadd.f32 0.0, %v2653
        %v2655 = vpop.f32.mrb[0].mxu0
        %2656 = vmatprep.mubr.bf16.mxu0 0
        %2657 = vmatmul.mubr.bf16.gmra.mrb[0].mxu0 %v2538
        %v2658 = vpop.f32.mrb[0].mxu0
        %v2659 = vadd.f32 0.0, %v2658
        %v2660 = vpop.f32.mrb[0].mxu0
        %v2661 = vpop.f32.mrb[0].mxu0
        %v2662 = vadd.f32 0.0, %v2661
        %v2663 = vpop.f32.mrb[0].mxu0
        %2664 = vmatprep.mubr.bf16.mxu0 0
        %2665 = vmatmul.mubr.bf16.gmra.mrb[0].mxu0 %v2541
        %v2666 = vpop.f32.mrb[0].mxu0
        %v2667 = vadd.f32 0.0, %v2666
        %v2668 = vpop.f32.mrb[0].mxu0
        %v2669 = vpop.f32.mrb[0].mxu0
        %v2670 = vadd.f32 0.0, %v2669
        %v2671 = vpop.f32.mrb[0].mxu0
        %2672 = vmatprep.mubr.bf16.mxu0 0
        %2673 = vmatmul.mubr.bf16.gmra.mrb[0].mxu0 %v2544
        %v2674 = vpop.f32.mrb[0].mxu0
        %v2675 = vadd.f32 0.0, %v2674
        %v2676 = vpop.f32.mrb[0].mxu0
        %v2677 = vpop.f32.mrb[0].mxu0
        %v2678 = vadd.f32 0.0, %v2677
        %v2679 = vpop.f32.mrb[0].mxu0
        %2680 = vmatprep.mubr.bf16.mxu0 0
        %2681 = vmatmul.mubr.bf16.gmra.mrb[0].mxu0 %v2547
        %v2682 = vpop.f32.mrb[0].mxu0
        %v2683 = vadd.f32 0.0, %v2682
        %v2684 = vpop.f32.mrb[0].mxu0
        %v2685 = vpop.f32.mrb[0].mxu0
        %v2686 = vadd.f32 0.0, %v2685
        %v2687 = vpop.f32.mrb[0].mxu0
        %2688 = vmatprep.mubr.bf16.mxu0 0
        %2689 = vmatmul.mubr.bf16.gmra.mrb[0].mxu0 %v2550
        %v2690 = vpop.f32.mrb[0].mxu0
        %v2691 = vadd.f32 0.0, %v2690
        %v2692 = vpop.f32.mrb[0].mxu0
        %v2693 = vpop.f32.mrb[0].mxu0
        %v2694 = vadd.f32 0.0, %v2693
        %v2695 = vpop.f32.mrb[0].mxu0
        %2696 = vmatprep.mubr.bf16.mxu0 0
        %2697 = vmatmul.mubr.bf16.gmra.mrb[0].mxu0 %v2553
        %v2698 = vpop.f32.mrb[0].mxu0
        %v2699 = vadd.f32 0.0, %v2698
        %v2700 = vpop.f32.mrb[0].mxu0
        %v2701 = vpop.f32.mrb[0].mxu0
        %v2702 = vadd.f32 0.0, %v2701
        %v2703 = vpop.f32.mrb[0].mxu0
        %2704 = vmatprep.mubr.bf16.mxu0 0
        %2705 = vmatmul.mubr.bf16.gmra.mrb[0].mxu0 %v2556
        %v2706 = vpop.f32.mrb[0].mxu0
        %v2707 = vadd.f32 0.0, %v2706
        %v2708 = vpop.f32.mrb[0].mxu0
        %v2709 = vpop.f32.mrb[0].mxu0
        %v2710 = vadd.f32 0.0, %v2709
        %v2711 = vpop.f32.mrb[0].mxu0
        %2712 = vmatprep.mubr.bf16.mxu0 0
        %2713 = vmatmul.mubr.bf16.gmra.mrb[0].mxu0 %v2559
        %v2714 = vpop.f32.mrb[0].mxu0
        %v2715 = vadd.f32 0.0, %v2714
        %v2716 = vpop.f32.mrb[0].mxu0
        %v2717 = vpop.f32.mrb[0].mxu0
        %v2718 = vadd.f32 0.0, %v2717
        %v2719 = vpop.f32.mrb[0].mxu0
        %2720 = vmatprep.mubr.bf16.mxu0 0
        %2721 = vmatmul.mubr.bf16.gmra.mrb[0].mxu0 %v2562
        %v2722 = vpop.f32.mrb[0].mxu0
        %v2723 = vadd.f32 0.0, %v2722
        %v2724 = vpop.f32.mrb[0].mxu0
        %v2725 = vpop.f32.mrb[0].mxu0
        %v2726 = vadd.f32 0.0, %v2725
        %v2727 = vpop.f32.mrb[0].mxu0
        %2728 = vmatprep.mubr.bf16.mxu0 0
        %2729 = vmatmul.mubr.bf16.gmra.mrb[0].mxu0 %v2565
        %v2730 = vpop.f32.mrb[0].mxu0
        %v2731 = vadd.f32 0.0, %v2730
        %v2732 = vpop.f32.mrb[0].mxu0
        %v2733 = vpop.f32.mrb[0].mxu0
        %v2734 = vadd.f32 0.0, %v2733
        %v2735 = vpop.f32.mrb[0].mxu0
        %2736 = vmatprep.mubr.bf16.mxu0 0
        %2737 = vmatmul.mubr.bf16.gmra.mrb[0].mxu0 %v2568
        %v2738 = vpop.f32.mrb[0].mxu0
        %v2739 = vadd.f32 0.0, %v2738
        %v2740 = vpop.f32.mrb[0].mxu0
        %v2741 = vpop.f32.mrb[0].mxu0
        %v2742 = vadd.f32 0.0, %v2741
        %v2743 = vpop.f32.mrb[0].mxu0
        %2744 = vmatprep.mubr.bf16.mxu0 0
        %2745 = vmatmul.mubr.bf16.gmra.mrb[0].mxu0 %v2571
        %v2746 = vpop.f32.mrb[0].mxu0
        %v2747 = vadd.f32 0.0, %v2746
        %v2748 = vpop.f32.mrb[0].mxu0
        %v2749 = vpop.f32.mrb[0].mxu0
        %v2750 = vadd.f32 0.0, %v2749
        %v2751 = vpop.f32.mrb[0].mxu0
        %2752 = vdwg.mxu0
        %v2753 = vadd.f32 %v2395, %v2611
        %v2754 = vadd.f32 %v2396, %v2614
        %v2755 = vadd.f32 %v2397, %v2619
        %v2756 = vadd.f32 %v2398, %v2622
        %v2757 = vadd.f32 %v2399, %v2627
        %v2758 = vadd.f32 %v2400, %v2630
        %v2759 = vadd.f32 %v2401, %v2635
        %v2760 = vadd.f32 %v2402, %v2638
        %v2761 = vadd.f32 %v2403, %v2643
        %v2762 = vadd.f32 %v2404, %v2646
        %v2763 = vadd.f32 %v2405, %v2651
        %v2764 = vadd.f32 %v2406, %v2654
        %v2765 = vadd.f32 %v2407, %v2659
        %v2766 = vadd.f32 %v2408, %v2662
        %v2767 = vadd.f32 %v2409, %v2667
        %v2768 = vadd.f32 %v2410, %v2670
        %v2769 = vadd.f32 %v2411, %v2675
        %v2770 = vadd.f32 %v2412, %v2678
        %v2771 = vadd.f32 %v2413, %v2683
        %v2772 = vadd.f32 %v2414, %v2686
        %v2773 = vadd.f32 %v2415, %v2691
        %v2774 = vadd.f32 %v2416, %v2694
        %v2775 = vadd.f32 %v2417, %v2699
        %v2776 = vadd.f32 %v2418, %v2702
        %v2777 = vadd.f32 %v2419, %v2707
        %v2778 = vadd.f32 %v2420, %v2710
        %v2779 = vadd.f32 %v2421, %v2715
        %v2780 = vadd.f32 %v2422, %v2718
        %v2781 = vadd.f32 %v2423, %v2723
        %v2782 = vadd.f32 %v2424, %v2726
        %v2783 = vadd.f32 %v2425, %v2731
        %v2784 = vadd.f32 %v2426, %v2734
        %v2785 = vadd.f32 %v2427, %v2739
        %v2786 = vadd.f32 %v2428, %v2742
        %v2787 = vadd.f32 %v2429, %v2747
        %v2788 = vadd.f32 %v2430, %v2750
        %s2789 = scalar_lea.vmem %s1, 16
        %v2790 = vld [vmem:[%s2789] sm:$0x3]
        %vm2791 = vcmask 1044480
        %v2792 = vrot.slane %v349, 3
        %v2793 = vrot.slane %v350, 3
        %v2794 = vsel %vm2791, %v2792, %v2793
        %v2795 = vrot.slane %v351, 3
        %v2796 = vsel %vm2791, %v2793, %v2795
        %v2797 = vrot.slane %v352, 3
        %v2798 = vsel %vm2791, %v2795, %v2797
        %v2799 = vrot.slane %v353, 3
        %v2800 = vsel %vm2791, %v2797, %v2799
        %v2801 = vrot.slane %v354, 3
        %v2802 = vsel %vm2791, %v2799, %v2801
        %v2803 = vrot.slane %v355, 3
        %v2804 = vsel %vm2791, %v2801, %v2803
        %v2805 = vrot.slane %v356, 3
        %v2806 = vsel %vm2791, %v2803, %v2805
        %v2807 = vrot.slane %v357, 3
        %v2808 = vsel %vm2791, %v2805, %v2807
        %v2809 = vrot.slane %v358, 3
        %v2810 = vsel %vm2791, %v2807, %v2809
        %v2811 = vrot.slane %v359, 3
        %v2812 = vsel %vm2791, %v2809, %v2811
        %v2813 = vrot.slane %v360, 3
        %v2814 = vsel %vm2791, %v2811, %v2813
        %v2815 = vrot.slane %v361, 3
        %v2816 = vsel %vm2791, %v2813, %v2815
        %v2817 = vrot.slane %v362, 3
        %v2818 = vsel %vm2791, %v2815, %v2817
        %v2819 = vrot.slane %v363, 3
        %v2820 = vsel %vm2791, %v2817, %v2819
        %v2821 = vrot.slane %v364, 3
        %v2822 = vsel %vm2791, %v2819, %v2821
        %v2823 = vrot.slane %v1299, 3
        %v2824 = vsel %vm2791, %v2821, %v2823
        %v2825 = vrot.slane %v2199, 3
        %v2826 = vsel %vm2791, %v2823, %v2825
        %v2827 = vrot.slane %v2200, 3
        %v2828 = vsel %vm2791, %v2825, %v2827
        %v2830 = vsel %vm518, %v2794, 0
        %v2833 = vsel %vm518, %v2796, 0
        %v2836 = vsel %vm518, %v2798, 0
        %v2839 = vsel %vm518, %v2800, 0
        %v2842 = vsel %vm518, %v2802, 0
        %v2845 = vsel %vm518, %v2804, 0
        %v2848 = vsel %vm518, %v2806, 0
        %v2851 = vsel %vm518, %v2808, 0
        %v2854 = vsel %vm518, %v2810, 0
        %v2857 = vsel %vm518, %v2812, 0
        %v2860 = vsel %vm518, %v2814, 0
        %v2863 = vsel %vm518, %v2816, 0
        %v2866 = vsel %vm518, %v2818, 0
        %v2869 = vsel %vm518, %v2820, 0
        %v2872 = vsel %vm518, %v2822, 0
        %v2875 = vsel %vm518, %v2824, 0
        %v2878 = vsel %vm518, %v2826, 0
        %v2881 = vsel %vm518, %v2828, 0
        %v2884 = vsel %vm573, %v2790, 0
        %2886 = vmatprep.subr.bf16.mxu0 0
        %2887 = vmatpush1.bf16.msra.mxu0 %v2884
        %2888 = vmatprep.subr.bf16.mxu0 0
        %2889 = vmatpush1.bf16.msra.mxu0 0
        %2890 = vmatprep.subr.bf16.mxu0 0
        %2891 = vmatpush1.bf16.msra.mxu0 0
        %2892 = vmatprep.subr.bf16.mxu0 0
        %2893 = vmatpush1.bf16.msra.mxu0 0
        %2894 = vmatprep.subr.bf16.mxu0 0
        %2895 = vmatpush1.bf16.msra.mxu0 0
        %2896 = vmatprep.subr.bf16.mxu0 0
        %2897 = vmatpush1.bf16.msra.mxu0 0
        %2898 = vmatprep.subr.bf16.mxu0 0
        %2899 = vmatpush1.bf16.msra.mxu0 0
        %2900 = vmatprep.subr.bf16.mxu0 0
        %2901 = vmatpush1.bf16.msra.mxu0 0
        %2902 = vmatprep.subr.bf16.mxu0 0
        %2903 = vmatpush1.bf16.msra.mxu0 0
        %2904 = vmatprep.subr.bf16.mxu0 0
        %2905 = vmatpush1.bf16.msra.mxu0 0
        %2906 = vmatprep.subr.bf16.mxu0 0
        %2907 = vmatpush1.bf16.msra.mxu0 0
        %2908 = vmatprep.subr.bf16.mxu0 0
        %2909 = vmatpush1.bf16.msra.mxu0 0
        %2910 = vmatprep.subr.bf16.mxu0 0
        %2911 = vmatpush1.bf16.msra.mxu0 0
        %2912 = vmatprep.subr.bf16.mxu0 0
        %2913 = vmatpush1.bf16.msra.mxu0 0
        %2914 = vmatprep.subr.bf16.mxu0 0
        %2915 = vmatpush1.bf16.msra.mxu0 0
        %2916 = vmatprep.subr.bf16.mxu0 0
        %2917 = vmatpush1.bf16.msra.mxu0 0
        %2918 = vmatprep.mubr.bf16.mxu0 0
        %2919 = vmatmul.mubr.bf16.gmra.mrb[0].mxu0 %v2830
        %v2920 = vpop.f32.mrb[0].mxu0
        %v2921 = vadd.f32 0.0, %v2920
        %v2922 = vpop.f32.mrb[0].mxu0
        %v2923 = vpop.f32.mrb[0].mxu0
        %v2924 = vadd.f32 0.0, %v2923
        %v2925 = vpop.f32.mrb[0].mxu0
        %2926 = vmatprep.mubr.bf16.mxu0 0
        %2927 = vmatmul.mubr.bf16.gmra.mrb[0].mxu0 %v2833
        %v2928 = vpop.f32.mrb[0].mxu0
        %v2929 = vadd.f32 0.0, %v2928
        %v2930 = vpop.f32.mrb[0].mxu0
        %v2931 = vpop.f32.mrb[0].mxu0
        %v2932 = vadd.f32 0.0, %v2931
        %v2933 = vpop.f32.mrb[0].mxu0
        %2934 = vmatprep.mubr.bf16.mxu0 0
        %2935 = vmatmul.mubr.bf16.gmra.mrb[0].mxu0 %v2836
        %v2936 = vpop.f32.mrb[0].mxu0
        %v2937 = vadd.f32 0.0, %v2936
        %v2938 = vpop.f32.mrb[0].mxu0
        %v2939 = vpop.f32.mrb[0].mxu0
        %v2940 = vadd.f32 0.0, %v2939
        %v2941 = vpop.f32.mrb[0].mxu0
        %2942 = vmatprep.mubr.bf16.mxu0 0
        %2943 = vmatmul.mubr.bf16.gmra.mrb[0].mxu0 %v2839
        %v2944 = vpop.f32.mrb[0].mxu0
        %v2945 = vadd.f32 0.0, %v2944
        %v2946 = vpop.f32.mrb[0].mxu0
        %v2947 = vpop.f32.mrb[0].mxu0
        %v2948 = vadd.f32 0.0, %v2947
        %v2949 = vpop.f32.mrb[0].mxu0
        %2950 = vmatprep.mubr.bf16.mxu0 0
        %2951 = vmatmul.mubr.bf16.gmra.mrb[0].mxu0 %v2842
        %v2952 = vpop.f32.mrb[0].mxu0
        %v2953 = vadd.f32 0.0, %v2952
        %v2954 = vpop.f32.mrb[0].mxu0
        %v2955 = vpop.f32.mrb[0].mxu0
        %v2956 = vadd.f32 0.0, %v2955
        %v2957 = vpop.f32.mrb[0].mxu0
        %2958 = vmatprep.mubr.bf16.mxu0 0
        %2959 = vmatmul.mubr.bf16.gmra.mrb[0].mxu0 %v2845
        %v2960 = vpop.f32.mrb[0].mxu0
        %v2961 = vadd.f32 0.0, %v2960
        %v2962 = vpop.f32.mrb[0].mxu0
        %v2963 = vpop.f32.mrb[0].mxu0
        %v2964 = vadd.f32 0.0, %v2963
        %v2965 = vpop.f32.mrb[0].mxu0
        %2966 = vmatprep.mubr.bf16.mxu0 0
        %2967 = vmatmul.mubr.bf16.gmra.mrb[0].mxu0 %v2848
        %v2968 = vpop.f32.mrb[0].mxu0
        %v2969 = vadd.f32 0.0, %v2968
        %v2970 = vpop.f32.mrb[0].mxu0
        %v2971 = vpop.f32.mrb[0].mxu0
        %v2972 = vadd.f32 0.0, %v2971
        %v2973 = vpop.f32.mrb[0].mxu0
        %2974 = vmatprep.mubr.bf16.mxu0 0
        %2975 = vmatmul.mubr.bf16.gmra.mrb[0].mxu0 %v2851
        %v2976 = vpop.f32.mrb[0].mxu0
        %v2977 = vadd.f32 0.0, %v2976
        %v2978 = vpop.f32.mrb[0].mxu0
        %v2979 = vpop.f32.mrb[0].mxu0
        %v2980 = vadd.f32 0.0, %v2979
        %v2981 = vpop.f32.mrb[0].mxu0
        %2982 = vmatprep.mubr.bf16.mxu0 0
        %2983 = vmatmul.mubr.bf16.gmra.mrb[0].mxu0 %v2854
        %v2984 = vpop.f32.mrb[0].mxu0
        %v2985 = vadd.f32 0.0, %v2984
        %v2986 = vpop.f32.mrb[0].mxu0
        %v2987 = vpop.f32.mrb[0].mxu0
        %v2988 = vadd.f32 0.0, %v2987
        %v2989 = vpop.f32.mrb[0].mxu0
        %2990 = vmatprep.mubr.bf16.mxu0 0
        %2991 = vmatmul.mubr.bf16.gmra.mrb[0].mxu0 %v2857
        %v2992 = vpop.f32.mrb[0].mxu0
        %v2993 = vadd.f32 0.0, %v2992
        %v2994 = vpop.f32.mrb[0].mxu0
        %v2995 = vpop.f32.mrb[0].mxu0
        %v2996 = vadd.f32 0.0, %v2995
        %v2997 = vpop.f32.mrb[0].mxu0
        %2998 = vmatprep.mubr.bf16.mxu0 0
        %2999 = vmatmul.mubr.bf16.gmra.mrb[0].mxu0 %v2860
        %v3000 = vpop.f32.mrb[0].mxu0
        %v3001 = vadd.f32 0.0, %v3000
        %v3002 = vpop.f32.mrb[0].mxu0
        %v3003 = vpop.f32.mrb[0].mxu0
        %v3004 = vadd.f32 0.0, %v3003
        %v3005 = vpop.f32.mrb[0].mxu0
        %3006 = vmatprep.mubr.bf16.mxu0 0
        %3007 = vmatmul.mubr.bf16.gmra.mrb[0].mxu0 %v2863
        %v3008 = vpop.f32.mrb[0].mxu0
        %v3009 = vadd.f32 0.0, %v3008
        %v3010 = vpop.f32.mrb[0].mxu0
        %v3011 = vpop.f32.mrb[0].mxu0
        %v3012 = vadd.f32 0.0, %v3011
        %v3013 = vpop.f32.mrb[0].mxu0
        %3014 = vmatprep.mubr.bf16.mxu0 0
        %3015 = vmatmul.mubr.bf16.gmra.mrb[0].mxu0 %v2866
        %v3016 = vpop.f32.mrb[0].mxu0
        %v3017 = vadd.f32 0.0, %v3016
        %v3018 = vpop.f32.mrb[0].mxu0
        %v3019 = vpop.f32.mrb[0].mxu0
        %v3020 = vadd.f32 0.0, %v3019
        %v3021 = vpop.f32.mrb[0].mxu0
        %3022 = vmatprep.mubr.bf16.mxu0 0
        %3023 = vmatmul.mubr.bf16.gmra.mrb[0].mxu0 %v2869
        %v3024 = vpop.f32.mrb[0].mxu0
        %v3025 = vadd.f32 0.0, %v3024
        %v3026 = vpop.f32.mrb[0].mxu0
        %v3027 = vpop.f32.mrb[0].mxu0
        %v3028 = vadd.f32 0.0, %v3027
        %v3029 = vpop.f32.mrb[0].mxu0
        %3030 = vmatprep.mubr.bf16.mxu0 0
        %3031 = vmatmul.mubr.bf16.gmra.mrb[0].mxu0 %v2872
        %v3032 = vpop.f32.mrb[0].mxu0
        %v3033 = vadd.f32 0.0, %v3032
        %v3034 = vpop.f32.mrb[0].mxu0
        %v3035 = vpop.f32.mrb[0].mxu0
        %v3036 = vadd.f32 0.0, %v3035
        %v3037 = vpop.f32.mrb[0].mxu0
        %3038 = vmatprep.mubr.bf16.mxu0 0
        %3039 = vmatmul.mubr.bf16.gmra.mrb[0].mxu0 %v2875
        %v3040 = vpop.f32.mrb[0].mxu0
        %v3041 = vadd.f32 0.0, %v3040
        %v3042 = vpop.f32.mrb[0].mxu0
        %v3043 = vpop.f32.mrb[0].mxu0
        %v3044 = vadd.f32 0.0, %v3043
        %v3045 = vpop.f32.mrb[0].mxu0
        %3046 = vmatprep.mubr.bf16.mxu0 0
        %3047 = vmatmul.mubr.bf16.gmra.mrb[0].mxu0 %v2878
        %v3048 = vpop.f32.mrb[0].mxu0
        %v3049 = vadd.f32 0.0, %v3048
        %v3050 = vpop.f32.mrb[0].mxu0
        %v3051 = vpop.f32.mrb[0].mxu0
        %v3052 = vadd.f32 0.0, %v3051
        %v3053 = vpop.f32.mrb[0].mxu0
        %3054 = vmatprep.mubr.bf16.mxu0 0
        %3055 = vmatmul.mubr.bf16.gmra.mrb[0].mxu0 %v2881
        %v3056 = vpop.f32.mrb[0].mxu0
        %v3057 = vadd.f32 0.0, %v3056
        %v3058 = vpop.f32.mrb[0].mxu0
        %v3059 = vpop.f32.mrb[0].mxu0
        %v3060 = vadd.f32 0.0, %v3059
        %v3061 = vpop.f32.mrb[0].mxu0
        %3062 = vdwg.mxu0
        %v3063 = vadd.f32 %v2753, %v2921
        %v3064 = vadd.f32 %v2754, %v2924
        %v3065 = vadd.f32 %v2755, %v2929
        %v3066 = vadd.f32 %v2756, %v2932
        %v3067 = vadd.f32 %v2757, %v2937
        %v3068 = vadd.f32 %v2758, %v2940
        %v3069 = vadd.f32 %v2759, %v2945
        %v3070 = vadd.f32 %v2760, %v2948
        %v3071 = vadd.f32 %v2761, %v2953
        %v3072 = vadd.f32 %v2762, %v2956
        %v3073 = vadd.f32 %v2763, %v2961
        %v3074 = vadd.f32 %v2764, %v2964
        %v3075 = vadd.f32 %v2765, %v2969
        %v3076 = vadd.f32 %v2766, %v2972
        %v3077 = vadd.f32 %v2767, %v2977
        %v3078 = vadd.f32 %v2768, %v2980
        %v3079 = vadd.f32 %v2769, %v2985
        %v3080 = vadd.f32 %v2770, %v2988
        %v3081 = vadd.f32 %v2771, %v2993
        %v3082 = vadd.f32 %v2772, %v2996
        %v3083 = vadd.f32 %v2773, %v3001
        %v3084 = vadd.f32 %v2774, %v3004
        %v3085 = vadd.f32 %v2775, %v3009
        %v3086 = vadd.f32 %v2776, %v3012
        %v3087 = vadd.f32 %v2777, %v3017
        %v3088 = vadd.f32 %v2778, %v3020
        %v3089 = vadd.f32 %v2779, %v3025
        %v3090 = vadd.f32 %v2780, %v3028
        %v3091 = vadd.f32 %v2781, %v3033
        %v3092 = vadd.f32 %v2782, %v3036
        %v3093 = vadd.f32 %v2783, %v3041
        %v3094 = vadd.f32 %v2784, %v3044
        %v3095 = vadd.f32 %v2785, %v3049
        %v3096 = vadd.f32 %v2786, %v3052
        %v3097 = vadd.f32 %v2787, %v3057
        %v3098 = vadd.f32 %v2788, %v3060
        %v3099 = vld [vmem:[%s2] sm:$0x1]
        %v3101 = vlaneseq
        %v3102 = vshrl.u32 %v3101, 7
        %v3103 = vsub.s32 0, %v3102
        %v3104 = vrot.slane %v3099, %v3103
        %v3106 = vadd.f32 %v3063, %v3104
        %v3107 = vadd.f32 %v3064, %v3104
        %v3108 = vadd.f32 %v3065, %v3104
        %v3109 = vadd.f32 %v3066, %v3104
        %v3110 = vadd.f32 %v3067, %v3104
        %v3111 = vadd.f32 %v3068, %v3104
        %v3112 = vadd.f32 %v3069, %v3104
        %v3113 = vadd.f32 %v3070, %v3104
        %v3114 = vadd.f32 %v3071, %v3104
        %v3115 = vadd.f32 %v3072, %v3104
        %v3116 = vadd.f32 %v3073, %v3104
        %v3117 = vadd.f32 %v3074, %v3104
        %v3118 = vadd.f32 %v3075, %v3104
        %v3119 = vadd.f32 %v3076, %v3104
        %v3120 = vadd.f32 %v3077, %v3104
        %v3121 = vadd.f32 %v3078, %v3104
        %v3122 = vadd.f32 %v3079, %v3104
        %v3123 = vadd.f32 %v3080, %v3104
        %v3124 = vadd.f32 %v3081, %v3104
        %v3125 = vadd.f32 %v3082, %v3104
        %v3126 = vadd.f32 %v3083, %v3104
        %v3127 = vadd.f32 %v3084, %v3104
        %v3128 = vadd.f32 %v3085, %v3104
        %v3129 = vadd.f32 %v3086, %v3104
        %v3130 = vadd.f32 %v3087, %v3104
        %v3131 = vadd.f32 %v3088, %v3104
        %v3132 = vadd.f32 %v3089, %v3104
        %v3133 = vadd.f32 %v3090, %v3104
        %v3134 = vadd.f32 %v3091, %v3104
        %v3135 = vadd.f32 %v3092, %v3104
        %v3136 = vadd.f32 %v3093, %v3104
        %v3137 = vadd.f32 %v3094, %v3104
        %v3138 = vadd.f32 %v3095, %v3104
        %v3139 = vadd.f32 %v3096, %v3104
        %v3140 = vadd.f32 %v3097, %v3104
        %v3141 = vadd.f32 %v3098, %v3104
        %3142 = vst [vmem:[%s247] sm:$0xff] %v3106
        %3143 = vst [vmem:[%s247 + $0x8] sm:$0xff] %v3107
        %3144 = vst [vmem:[%s247 + $0x10] sm:$0xff] %v3108
        %3145 = vst [vmem:[%s247 + $0x18] sm:$0xff] %v3109
        %3146 = vst [vmem:[%s247 + $0x20] sm:$0xff] %v3110
        %3147 = vst [vmem:[%s247 + $0x28] sm:$0xff] %v3111
        %3148 = vst [vmem:[%s247 + $0x30] sm:$0xff] %v3112
        %3149 = vst [vmem:[%s247 + $0x38] sm:$0xff] %v3113
        %3150 = vst [vmem:[%s247 + $0x40] sm:$0xff] %v3114
        %3151 = vst [vmem:[%s247 + $0x48] sm:$0xff] %v3115
        %3152 = vst [vmem:[%s247 + $0x50] sm:$0xff] %v3116
        %3153 = vst [vmem:[%s247 + $0x58] sm:$0xff] %v3117
        %3154 = vst [vmem:[%s247 + $0x60] sm:$0xff] %v3118
        %3155 = vst [vmem:[%s247 + $0x68] sm:$0xff] %v3119
        %3156 = vst [vmem:[%s247 + $0x70] sm:$0xff] %v3120
        %3157 = vst [vmem:[%s247 + $0x78] sm:$0xff] %v3121
        %3158 = vst [vmem:[%s247 + $0x80] sm:$0xff] %v3122
        %3159 = vst [vmem:[%s247 + $0x88] sm:$0xff] %v3123
        %3160 = vst [vmem:[%s247 + $0x90] sm:$0xff] %v3124
        %3161 = vst [vmem:[%s247 + $0x98] sm:$0xff] %v3125
        %3162 = vst [vmem:[%s247 + $0xa0] sm:$0xff] %v3126
        %3163 = vst [vmem:[%s247 + $0xa8] sm:$0xff] %v3127
        %3164 = vst [vmem:[%s247 + $0xb0] sm:$0xff] %v3128
        %3165 = vst [vmem:[%s247 + $0xb8] sm:$0xff] %v3129
        %3166 = vst [vmem:[%s247 + $0xc0] sm:$0xff] %v3130
        %3167 = vst [vmem:[%s247 + $0xc8] sm:$0xff] %v3131
        %3168 = vst [vmem:[%s247 + $0xd0] sm:$0xff] %v3132
        %3169 = vst [vmem:[%s247 + $0xd8] sm:$0xff] %v3133
        %3170 = vst [vmem:[%s247 + $0xe0] sm:$0xff] %v3134
        %3171 = vst [vmem:[%s247 + $0xe8] sm:$0xff] %v3135
        %3172 = vst [vmem:[%s247 + $0xf0] sm:$0xff] %v3136
        %3173 = vst [vmem:[%s247 + $0xf8] sm:$0xff] %v3137
        %3174 = vst [vmem:[%s247 + $0x100] sm:$0xff] %v3138
        %3175 = vst [vmem:[%s247 + $0x108] sm:$0xff] %v3139
        %3176 = vst [vmem:[%s247 + $0x110] sm:$0xff] %v3140
        %3177 = vst [vmem:[%s247 + $0x118] sm:$0xff] %v3141
        %v3178 = vld [vmem:[%s3] sm:$0xff]
        %v3179 = vld [vmem:[%s3 + $0x8] sm:$0xff]
        %v3180 = vld [vmem:[%s3 + $0x10] sm:$0xff]
        %v3181 = vld [vmem:[%s3 + $0x18] sm:$0xff]
        %v3182 = vld [vmem:[%s3 + $0x20] sm:$0xff]
        %v3183 = vld [vmem:[%s3 + $0x28] sm:$0xff]
        %v3184 = vld [vmem:[%s3 + $0x30] sm:$0xff]
        %v3185 = vld [vmem:[%s3 + $0x38] sm:$0xff]
        %v3186 = vld [vmem:[%s3 + $0x40] sm:$0xff]
        %v3187 = vld [vmem:[%s3 + $0x48] sm:$0xff]
        %v3188 = vld [vmem:[%s3 + $0x50] sm:$0xff]
        %v3189 = vld [vmem:[%s3 + $0x58] sm:$0xff]
        %v3190 = vld [vmem:[%s3 + $0x60] sm:$0xff]
        %v3191 = vld [vmem:[%s3 + $0x68] sm:$0xff]
        %v3192 = vld [vmem:[%s3 + $0x70] sm:$0xff]
        %v3193 = vld [vmem:[%s3 + $0x78] sm:$0xff]
        %v3194 = vld [vmem:[%s3 + $0x80] sm:$0xff]
        %v3195 = vld [vmem:[%s3 + $0x88] sm:$0xff]
        %v3196 = vld [vmem:[%s3 + $0x90] sm:$0xff]
        %v3197 = vld [vmem:[%s3 + $0x98] sm:$0xff]
        %v3198 = vld [vmem:[%s3 + $0xa0] sm:$0xff]
        %v3199 = vld [vmem:[%s3 + $0xa8] sm:$0xff]
        %v3200 = vld [vmem:[%s3 + $0xb0] sm:$0xff]
        %v3201 = vld [vmem:[%s3 + $0xb8] sm:$0xff]
        %v3202 = vld [vmem:[%s3 + $0xc0] sm:$0xff]
        %v3203 = vld [vmem:[%s3 + $0xc8] sm:$0xff]
        %v3204 = vld [vmem:[%s3 + $0xd0] sm:$0xff]
        %v3205 = vld [vmem:[%s3 + $0xd8] sm:$0xff]
        %v3206 = vld [vmem:[%s3 + $0xe0] sm:$0xff]
        %v3207 = vld [vmem:[%s3 + $0xe8] sm:$0xff]
        %v3208 = vld [vmem:[%s3 + $0xf0] sm:$0xff]
        %v3209 = vld [vmem:[%s3 + $0xf8] sm:$0xff]
        %v3210 = vld [vmem:[%s3 + $0x100] sm:$0xff]
        %v3211 = vld [vmem:[%s3 + $0x108] sm:$0xff]
        %v3212 = vld [vmem:[%s3 + $0x110] sm:$0xff]
        %v3213 = vld [vmem:[%s3 + $0x118] sm:$0xff]
        %3215 = vset.pattern.permute.xlu0 0
        %3216 = vperm.xlu0 %3215, %v3178
        %v3217 = vpop.permute.xlu0 %3216
        %3220 = vset.pattern.permute.xlu0 0
        %3221 = vperm.xlu0 %3220, %v3179
        %v3222 = vpop.permute.xlu0 %3221
        %3225 = vset.pattern.permute.xlu0 0
        %3226 = vperm.xlu0 %3225, %v3180
        %v3227 = vpop.permute.xlu0 %3226
        %3230 = vset.pattern.permute.xlu0 0
        %3231 = vperm.xlu0 %3230, %v3181
        %v3232 = vpop.permute.xlu0 %3231
        %3235 = vset.pattern.permute.xlu0 0
        %3236 = vperm.xlu0 %3235, %v3182
        %v3237 = vpop.permute.xlu0 %3236
        %3240 = vset.pattern.permute.xlu0 0
        %3241 = vperm.xlu0 %3240, %v3183
        %v3242 = vpop.permute.xlu0 %3241
        %3245 = vset.pattern.permute.xlu0 0
        %3246 = vperm.xlu0 %3245, %v3184
        %v3247 = vpop.permute.xlu0 %3246
        %3250 = vset.pattern.permute.xlu0 0
        %3251 = vperm.xlu0 %3250, %v3185
        %v3252 = vpop.permute.xlu0 %3251
        %3255 = vset.pattern.permute.xlu0 0
        %3256 = vperm.xlu0 %3255, %v3186
        %v3257 = vpop.permute.xlu0 %3256
        %3260 = vset.pattern.permute.xlu0 0
        %3261 = vperm.xlu0 %3260, %v3187
        %v3262 = vpop.permute.xlu0 %3261
        %3265 = vset.pattern.permute.xlu0 0
        %3266 = vperm.xlu0 %3265, %v3188
        %v3267 = vpop.permute.xlu0 %3266
        %3270 = vset.pattern.permute.xlu0 0
        %3271 = vperm.xlu0 %3270, %v3189
        %v3272 = vpop.permute.xlu0 %3271
        %3275 = vset.pattern.permute.xlu0 0
        %3276 = vperm.xlu0 %3275, %v3190
        %v3277 = vpop.permute.xlu0 %3276
        %3280 = vset.pattern.permute.xlu0 0
        %3281 = vperm.xlu0 %3280, %v3191
        %v3282 = vpop.permute.xlu0 %3281
        %3285 = vset.pattern.permute.xlu0 0
        %3286 = vperm.xlu0 %3285, %v3192
        %v3287 = vpop.permute.xlu0 %3286
        %3290 = vset.pattern.permute.xlu0 0
        %3291 = vperm.xlu0 %3290, %v3193
        %v3292 = vpop.permute.xlu0 %3291
        %3295 = vset.pattern.permute.xlu0 0
        %3296 = vperm.xlu0 %3295, %v3194
        %v3297 = vpop.permute.xlu0 %3296
        %3300 = vset.pattern.permute.xlu0 0
        %3301 = vperm.xlu0 %3300, %v3195
        %v3302 = vpop.permute.xlu0 %3301
        %3305 = vset.pattern.permute.xlu0 0
        %3306 = vperm.xlu0 %3305, %v3196
        %v3307 = vpop.permute.xlu0 %3306
        %3310 = vset.pattern.permute.xlu0 0
        %3311 = vperm.xlu0 %3310, %v3197
        %v3312 = vpop.permute.xlu0 %3311
        %3315 = vset.pattern.permute.xlu0 0
        %3316 = vperm.xlu0 %3315, %v3198
        %v3317 = vpop.permute.xlu0 %3316
        %3320 = vset.pattern.permute.xlu0 0
        %3321 = vperm.xlu0 %3320, %v3199
        %v3322 = vpop.permute.xlu0 %3321
        %3325 = vset.pattern.permute.xlu0 0
        %3326 = vperm.xlu0 %3325, %v3200
        %v3327 = vpop.permute.xlu0 %3326
        %3330 = vset.pattern.permute.xlu0 0
        %3331 = vperm.xlu0 %3330, %v3201
        %v3332 = vpop.permute.xlu0 %3331
        %3335 = vset.pattern.permute.xlu0 0
        %3336 = vperm.xlu0 %3335, %v3202
        %v3337 = vpop.permute.xlu0 %3336
        %3340 = vset.pattern.permute.xlu0 0
        %3341 = vperm.xlu0 %3340, %v3203
        %v3342 = vpop.permute.xlu0 %3341
        %3345 = vset.pattern.permute.xlu0 0
        %3346 = vperm.xlu0 %3345, %v3204
        %v3347 = vpop.permute.xlu0 %3346
        %3350 = vset.pattern.permute.xlu0 0
        %3351 = vperm.xlu0 %3350, %v3205
        %v3352 = vpop.permute.xlu0 %3351
        %3355 = vset.pattern.permute.xlu0 0
        %3356 = vperm.xlu0 %3355, %v3206
        %v3357 = vpop.permute.xlu0 %3356
        %3360 = vset.pattern.permute.xlu0 0
        %3361 = vperm.xlu0 %3360, %v3207
        %v3362 = vpop.permute.xlu0 %3361
        %3365 = vset.pattern.permute.xlu0 0
        %3366 = vperm.xlu0 %3365, %v3208
        %v3367 = vpop.permute.xlu0 %3366
        %3370 = vset.pattern.permute.xlu0 0
        %3371 = vperm.xlu0 %3370, %v3209
        %v3372 = vpop.permute.xlu0 %3371
        %3375 = vset.pattern.permute.xlu0 0
        %3376 = vperm.xlu0 %3375, %v3210
        %v3377 = vpop.permute.xlu0 %3376
        %3380 = vset.pattern.permute.xlu0 0
        %3381 = vperm.xlu0 %3380, %v3211
        %v3382 = vpop.permute.xlu0 %3381
        %3385 = vset.pattern.permute.xlu0 0
        %3386 = vperm.xlu0 %3385, %v3212
        %v3387 = vpop.permute.xlu0 %3386
        %3390 = vset.pattern.permute.xlu0 0
        %3391 = vperm.xlu0 %3390, %v3213
        %v3392 = vpop.permute.xlu0 %3391
        %v3394 = vmul.f32 %v3106, %v3217
        %v3395 = vmul.f32 %v3107, %v3222
        %v3396 = vmul.f32 %v3108, %v3227
        %v3397 = vmul.f32 %v3109, %v3232
        %v3398 = vmul.f32 %v3110, %v3237
        %v3399 = vmul.f32 %v3111, %v3242
        %v3400 = vmul.f32 %v3112, %v3247
        %v3401 = vmul.f32 %v3113, %v3252
        %v3402 = vmul.f32 %v3114, %v3257
        %v3403 = vmul.f32 %v3115, %v3262
        %v3404 = vmul.f32 %v3116, %v3267
        %v3405 = vmul.f32 %v3117, %v3272
        %v3406 = vmul.f32 %v3118, %v3277
        %v3407 = vmul.f32 %v3119, %v3282
        %v3408 = vmul.f32 %v3120, %v3287
        %v3409 = vmul.f32 %v3121, %v3292
        %v3410 = vmul.f32 %v3122, %v3297
        %v3411 = vmul.f32 %v3123, %v3302
        %v3412 = vmul.f32 %v3124, %v3307
        %v3413 = vmul.f32 %v3125, %v3312
        %v3414 = vmul.f32 %v3126, %v3317
        %v3415 = vmul.f32 %v3127, %v3322
        %v3416 = vmul.f32 %v3128, %v3327
        %v3417 = vmul.f32 %v3129, %v3332
        %v3418 = vmul.f32 %v3130, %v3337
        %v3419 = vmul.f32 %v3131, %v3342
        %v3420 = vmul.f32 %v3132, %v3347
        %v3421 = vmul.f32 %v3133, %v3352
        %v3422 = vmul.f32 %v3134, %v3357
        %v3423 = vmul.f32 %v3135, %v3362
        %v3424 = vmul.f32 %v3136, %v3367
        %v3425 = vmul.f32 %v3137, %v3372
        %v3426 = vmul.f32 %v3138, %v3377
        %v3427 = vmul.f32 %v3139, %v3382
        %v3428 = vmul.f32 %v3140, %v3387
        %v3429 = vmul.f32 %v3141, %v3392
        %v3430 = vadd.f32 %v3394, %v3395
        %v3431 = vadd.f32 %v3430, %v3396
        %v3432 = vadd.f32 %v3431, %v3397
        %v3433 = vadd.f32 %v3432, %v3398
        %v3434 = vadd.f32 %v3433, %v3399
        %v3435 = vadd.f32 %v3434, %v3400
        %v3436 = vadd.f32 %v3435, %v3401
        %v3437 = vadd.f32 %v3436, %v3402
        %v3438 = vadd.f32 %v3437, %v3403
        %v3439 = vadd.f32 %v3438, %v3404
        %v3440 = vadd.f32 %v3439, %v3405
        %v3441 = vadd.f32 %v3440, %v3406
        %v3442 = vadd.f32 %v3441, %v3407
        %v3443 = vadd.f32 %v3442, %v3408
        %v3444 = vadd.f32 %v3443, %v3409
        %v3445 = vadd.f32 %v3444, %v3410
        %v3446 = vadd.f32 %v3445, %v3411
        %v3447 = vadd.f32 %v3446, %v3412
        %v3448 = vadd.f32 %v3447, %v3413
        %v3449 = vadd.f32 %v3448, %v3414
        %v3450 = vadd.f32 %v3449, %v3415
        %v3451 = vadd.f32 %v3450, %v3416
        %v3452 = vadd.f32 %v3451, %v3417
        %v3453 = vadd.f32 %v3452, %v3418
        %v3454 = vadd.f32 %v3453, %v3419
        %v3455 = vadd.f32 %v3454, %v3420
        %v3456 = vadd.f32 %v3455, %v3421
        %v3457 = vadd.f32 %v3456, %v3422
        %v3458 = vadd.f32 %v3457, %v3423
        %v3459 = vadd.f32 %v3458, %v3424
        %v3460 = vadd.f32 %v3459, %v3425
        %v3461 = vadd.f32 %v3460, %v3426
        %v3462 = vadd.f32 %v3461, %v3427
        %v3463 = vadd.f32 %v3462, %v3428
        %v3464 = vadd.f32 %v3463, %v3429
        %v3465 = vrot.slane %v3464, 4
        %v3466 = vadd.f32 %v3464, %v3465
        %v3467 = vrot.slane %v3466, 2
        %v3468 = vadd.f32 %v3466, %v3467
        %v3469 = vrot.slane %v3468, 1
        %v3470 = vadd.f32 %v3468, %v3469
        %3471 = vst [vmem:[%s254] sm:$0x1] %v3470
        %v3472 = vmul.f32 %v3106, %v3106
        %v3473 = vmul.f32 %v3107, %v3107
        %v3474 = vmul.f32 %v3108, %v3108
        %v3475 = vmul.f32 %v3109, %v3109
        %v3476 = vmul.f32 %v3110, %v3110
        %v3477 = vmul.f32 %v3111, %v3111
        %v3478 = vmul.f32 %v3112, %v3112
        %v3479 = vmul.f32 %v3113, %v3113
        %v3480 = vmul.f32 %v3114, %v3114
        %v3481 = vmul.f32 %v3115, %v3115
        %v3482 = vmul.f32 %v3116, %v3116
        %v3483 = vmul.f32 %v3117, %v3117
        %v3484 = vmul.f32 %v3118, %v3118
        %v3485 = vmul.f32 %v3119, %v3119
        %v3486 = vmul.f32 %v3120, %v3120
        %v3487 = vmul.f32 %v3121, %v3121
        %v3488 = vmul.f32 %v3122, %v3122
        %v3489 = vmul.f32 %v3123, %v3123
        %v3490 = vmul.f32 %v3124, %v3124
        %v3491 = vmul.f32 %v3125, %v3125
        %v3492 = vmul.f32 %v3126, %v3126
        %v3493 = vmul.f32 %v3127, %v3127
        %v3494 = vmul.f32 %v3128, %v3128
        %v3495 = vmul.f32 %v3129, %v3129
        %v3496 = vmul.f32 %v3130, %v3130
        %v3497 = vmul.f32 %v3131, %v3131
        %v3498 = vmul.f32 %v3132, %v3132
        %v3499 = vmul.f32 %v3133, %v3133
        %v3500 = vmul.f32 %v3134, %v3134
        %v3501 = vmul.f32 %v3135, %v3135
        %v3502 = vmul.f32 %v3136, %v3136
        %v3503 = vmul.f32 %v3137, %v3137
        %v3504 = vmul.f32 %v3138, %v3138
        %v3505 = vmul.f32 %v3139, %v3139
        %v3506 = vmul.f32 %v3140, %v3140
        %v3507 = vmul.f32 %v3141, %v3141
        %v3508 = vmul.f32 %v3472, %v3217
        %v3509 = vmul.f32 %v3473, %v3222
        %v3510 = vmul.f32 %v3474, %v3227
        %v3511 = vmul.f32 %v3475, %v3232
        %v3512 = vmul.f32 %v3476, %v3237
        %v3513 = vmul.f32 %v3477, %v3242
        %v3514 = vmul.f32 %v3478, %v3247
        %v3515 = vmul.f32 %v3479, %v3252
        %v3516 = vmul.f32 %v3480, %v3257
        %v3517 = vmul.f32 %v3481, %v3262
        %v3518 = vmul.f32 %v3482, %v3267
        %v3519 = vmul.f32 %v3483, %v3272
        %v3520 = vmul.f32 %v3484, %v3277
        %v3521 = vmul.f32 %v3485, %v3282
        %v3522 = vmul.f32 %v3486, %v3287
        %v3523 = vmul.f32 %v3487, %v3292
        %v3524 = vmul.f32 %v3488, %v3297
        %v3525 = vmul.f32 %v3489, %v3302
        %v3526 = vmul.f32 %v3490, %v3307
        %v3527 = vmul.f32 %v3491, %v3312
        %v3528 = vmul.f32 %v3492, %v3317
        %v3529 = vmul.f32 %v3493, %v3322
        %v3530 = vmul.f32 %v3494, %v3327
        %v3531 = vmul.f32 %v3495, %v3332
        %v3532 = vmul.f32 %v3496, %v3337
        %v3533 = vmul.f32 %v3497, %v3342
        %v3534 = vmul.f32 %v3498, %v3347
        %v3535 = vmul.f32 %v3499, %v3352
        %v3536 = vmul.f32 %v3500, %v3357
        %v3537 = vmul.f32 %v3501, %v3362
        %v3538 = vmul.f32 %v3502, %v3367
        %v3539 = vmul.f32 %v3503, %v3372
        %v3540 = vmul.f32 %v3504, %v3377
        %v3541 = vmul.f32 %v3505, %v3382
        %v3542 = vmul.f32 %v3506, %v3387
        %v3543 = vmul.f32 %v3507, %v3392
        %v3544 = vadd.f32 %v3508, %v3509
        %v3545 = vadd.f32 %v3544, %v3510
        %v3546 = vadd.f32 %v3545, %v3511
        %v3547 = vadd.f32 %v3546, %v3512
        %v3548 = vadd.f32 %v3547, %v3513
        %v3549 = vadd.f32 %v3548, %v3514
        %v3550 = vadd.f32 %v3549, %v3515
        %v3551 = vadd.f32 %v3550, %v3516
        %v3552 = vadd.f32 %v3551, %v3517
        %v3553 = vadd.f32 %v3552, %v3518
        %v3554 = vadd.f32 %v3553, %v3519
        %v3555 = vadd.f32 %v3554, %v3520
        %v3556 = vadd.f32 %v3555, %v3521
        %v3557 = vadd.f32 %v3556, %v3522
        %v3558 = vadd.f32 %v3557, %v3523
        %v3559 = vadd.f32 %v3558, %v3524
        %v3560 = vadd.f32 %v3559, %v3525
        %v3561 = vadd.f32 %v3560, %v3526
        %v3562 = vadd.f32 %v3561, %v3527
        %v3563 = vadd.f32 %v3562, %v3528
        %v3564 = vadd.f32 %v3563, %v3529
        %v3565 = vadd.f32 %v3564, %v3530
        %v3566 = vadd.f32 %v3565, %v3531
        %v3567 = vadd.f32 %v3566, %v3532
        %v3568 = vadd.f32 %v3567, %v3533
        %v3569 = vadd.f32 %v3568, %v3534
        %v3570 = vadd.f32 %v3569, %v3535
        %v3571 = vadd.f32 %v3570, %v3536
        %v3572 = vadd.f32 %v3571, %v3537
        %v3573 = vadd.f32 %v3572, %v3538
        %v3574 = vadd.f32 %v3573, %v3539
        %v3575 = vadd.f32 %v3574, %v3540
        %v3576 = vadd.f32 %v3575, %v3541
        %v3577 = vadd.f32 %v3576, %v3542
        %v3578 = vadd.f32 %v3577, %v3543
        %v3579 = vrot.slane %v3578, 4
        %v3580 = vadd.f32 %v3578, %v3579
        %v3581 = vrot.slane %v3580, 2
        %v3582 = vadd.f32 %v3580, %v3581
        %v3583 = vrot.slane %v3582, 1
        %v3584 = vadd.f32 %v3582, %v3583
        %3585 = vst [vmem:[%s254 + $0x1] sm:$0x1] %v3584
        %s3586 = sand.u32 %s136, 1
        %s3587 = scalar_lea.sflag [#allocation3], %s3586
        %s3588 = sand.u32 %s136, 1
        %s3589 = smul.addr %s3588, 288
        %s3590 = scalar_lea.vmem [#allocation2], %s3589
        %s3591 = sand.u32 %s164, 1
        %s3592 = scalar_lea.sflag [#allocation5], %s3591
        %s3593 = sand.u32 %s164, 1
        %s3594 = smul.addr %s3593, 2
        %s3595 = scalar_lea.vmem [#allocation4], %s3594
        // Predicated region
        $region37: #{tpu_custom_call.1} parent=35 // pred_check
          %p3596 = pneg %p146
        $region38: #{tpu_custom_call.1} parent=35 // pred_check_branch
          %3598 = sbr.rel (%p3596) target = $region40
        $region39: #{tpu_custom_call.1} parent=35 // pred_region
          %s3600 = ssub.s32 4608, 4608
          %3601 = vsyncadd %s3587, %s3600
          %s3602 = smul.addr %s28, 36
          %s3603 = smul.addr %s27, 36
          %s3604 = sadd.s32 %s3602, %s3603
          %s3605 = smul.addr %s3604, 128
          %s3606 = scalar_lea.hbm %s4, %s3605
          %s3607 = sshll.u32 %s3590, 4
          %s3608 = int_to_ptr.vmem [resolvable:$true] %s3607
          %3613 = dma.vmem_to_hbm [thread:$0]  %s3608, 4608, %s3606, %s3587, 128, 128, 8
        $region40: #{tpu_custom_call.1} parent=35 // pred_fallthru
          _
        // Predicated region
        $region41: #{tpu_custom_call.1} parent=35 // pred_check
          %p3614 = pneg %p174
        $region42: #{tpu_custom_call.1} parent=35 // pred_check_branch
          %3616 = sbr.rel (%p3614) target = $region44
        $region43: #{tpu_custom_call.1} parent=35 // pred_region
          %s3618 = ssub.s32 32, 32
          %3619 = vsyncadd %s3592, %s3618
          %s3620 = sadd.s32 %s28, %s27
          %s3621 = smul.addr %s3620, 32
          %s3622 = scalar_lea.hbm %s5, %s3621
          %s3624 = sshll.u32 %s3595, 4
          %s3625 = int_to_ptr.vmem [resolvable:$true] %s3624
          %3627 = dma.vmem_to_hbm [thread:$0]  %s3625, 32, %s3622, %s3592
        $region44: #{tpu_custom_call.1} parent=35 // pred_fallthru
          _
      $region36: #{tpu_custom_call.1} parent=5 // pred_fallthru
        _
      %p3628 = scmp.le.s32.totalorder 2, %s18
      // Predicated region
      $region45: #{tpu_custom_call.1} parent=5 // pred_check
        %p3629 = pneg %p3628
      $region46: #{tpu_custom_call.1} parent=5 // pred_check_branch
        %3631 = sbr.rel (%p3629) target = $region48
      $region47: #{tpu_custom_call.1} parent=5 // pred_region
        %s3632 = ssub.s32 %s18, 2
        // Predicated region
        $region49: #{tpu_custom_call.1} parent=47 // pred_check
          %p3633 = pneg %p152
        $region50: #{tpu_custom_call.1} parent=47 // pred_check_branch
          %3635 = sbr.rel (%p3633) target = $region52
        $region51: #{tpu_custom_call.1} parent=47 // pred_region
          %s3636 = sand.u32 %s137, 1
          %s3637 = scalar_lea.sflag [#allocation3], %s3636
          %s3638 = sand.u32 %s137, 1
          %s3639 = smul.addr %s3638, 288
          %s3640 = scalar_lea.vmem [#allocation2], %s3639
          %3641 = dma.done %s3637, 4608
        $region52: #{tpu_custom_call.1} parent=47 // pred_fallthru
          _
        // Predicated region
        $region53: #{tpu_custom_call.1} parent=47 // pred_check
          %p3642 = pneg %p180
        $region54: #{tpu_custom_call.1} parent=47 // pred_check_branch
          %3644 = sbr.rel (%p3642) target = $region56
        $region55: #{tpu_custom_call.1} parent=47 // pred_region
          %s3645 = sand.u32 %s165, 1
          %s3646 = scalar_lea.sflag [#allocation5], %s3645
          %s3647 = sand.u32 %s165, 1
          %s3648 = smul.addr %s3647, 2
          %s3649 = scalar_lea.vmem [#allocation4], %s3648
          %3650 = dma.done %s3646, 32
        $region56: #{tpu_custom_call.1} parent=47 // pred_fallthru
          _
      $region48: #{tpu_custom_call.1} parent=5 // pred_fallthru
        _
    $region6: #{tpu_custom_call.1} parent=1 // loop_footer
      %s22 = sadd.s32 1, %s18
    $region7: #{tpu_custom_call.1} parent=1 // loop_footer_branch
      %17 = sbr.rel target = $region3
    $region8: #{tpu_custom_call.1} parent=1 // loop_exit
      _
    %3651 = vsyncpa [#allocation3], 1
    %s3652 = scalar_lea.sflag [#allocation3], 1
    %3653 = vsyncpa %s3652, 1
    %3654 = vsyncpa [#allocation5], 1
    %s3655 = scalar_lea.sflag [#allocation5], 1
    %3656 = vsyncpa %s3655, 1

</llo_original>
